<compile_context>
chip_gen: v7x
topology: tpu7x:2x2x1
jax: 0.10.0
libtpu: 0.0.40
codegen_flags: <defaults>
</compile_context>

<pallas_src>
import functools

import jax
import jax.numpy as jnp
from jax import lax
from jax.experimental import pallas as pl
from jax.experimental.pallas import tpu as pltpu


def _lse_lane(a):
    """logsumexp along the last (lane) axis, keepdims -> (N, 1)."""
    m = jnp.max(a, axis=-1, keepdims=True)
    return m + jnp.log(jnp.sum(jnp.exp(a - m), axis=-1, keepdims=True))


def bpa_kernel(x_ref, out_ref, *, inv_reg, num_iters, diag_log_k):
    x = x_ref[...].astype(jnp.float32)                       # (N, D)
    n = x.shape[0]

    # --- L2 normalize (F.normalize semantics) via rsqrt (EUP, no divide) ----
    sumsq = jnp.sum(x * x, axis=-1, keepdims=True)
    x_n = x * lax.rsqrt(jnp.maximum(sumsq, 1e-24))           # eps^2 = (1e-12)^2

    # --- Gram matrix on the MXU: contract last dims directly (no .T) --------
    sim = lax.dot_general(
        x_n, x_n,
        dimension_numbers=(((1,), (1,)), ((), ())),
        preferred_element_type=jnp.float32)                  # (N, N), symmetric

    # --- fused cost -> log-kernel, diagonal masked once ----------------------
    #   log_K = -(1 - sim)/reg ;  diag -> -diag_val/reg
    row = lax.broadcasted_iota(jnp.int32, (n, n), 0)
    col = lax.broadcasted_iota(jnp.int32, (n, n), 1)
    diag = row == col
    log_k = jnp.where(diag, diag_log_k, (sim - 1.0) * inv_reg)

    # --- log-domain Sinkhorn --------------------------------------------------
    # log_K is symmetric, so both half-updates are lane-axis logsumexps; only
    # the (N,1)<->(1,N) vector transposes move data across lanes.
    log_u = jnp.zeros((n, 1), jnp.float32)
    log_v_row = jnp.zeros((1, n), jnp.float32)
    for _ in range(num_iters):                                # static, unrolled
        log_u = -_lse_lane(log_k + log_v_row)                 # (N, 1)
        log_v = -_lse_lane(log_k + jnp.transpose(log_u))      # (N, 1), by symmetry
        log_v_row = jnp.transpose(log_v)                      # (1, N)
    log_p = log_u + log_k + log_v_row

    # --- exp, per-instance max-scale (scalar reciprocal), diagonal -> 1 -----
    p = jnp.exp(log_p)
    p = p * (1.0 / jnp.max(p))
    p = jnp.where(diag, 1.0, p)
    out_ref[...] = p.astype(out_ref.dtype)


def bpa_forward(x, *, ot_reg=0.1, sinkhorn_iterations=10, diagonal_val=1e5):
    """BPA forward. Accepts x of shape [N, D] or batched [B, N, D]."""
    squeeze = x.ndim == 2
    if squeeze:
        x = x[None]
    b, n, d = x.shape

    kernel = functools.partial(
        bpa_kernel,
        inv_reg=1.0 / ot_reg,
        num_iters=sinkhorn_iterations,
        diag_log_k=-diagonal_val / ot_reg)

    # Advisory cost hint for XLA scheduling around the custom call.
    flops = int(b * (2 * n * n * d + 10 * n * n * sinkhorn_iterations))
    transcendentals = int(b * n * n * (2 * sinkhorn_iterations + 1))
    bytes_accessed = int(b * 4 * (n * d + n * n))

    # A few live NxN f32 buffers per instance + double-buffered I/O tiles.
    approx_vmem = 10 * n * n * 4 + 4 * n * d * 4 + (1 << 20)
    vmem_limit = int(min(max(approx_vmem, 32 << 20), 64 << 20))
    # TODO(synk): for N in the multi-thousand range, keep log_K in a single
    # pltpu.VMEM scratch and stream row-tiles of the logsumexp passes instead
    # of the all-resident design (v7x has only 64 MiB VMEM).

    out = pl.pallas_call(
        kernel,
        out_shape=jax.ShapeDtypeStruct((b, n, n), jnp.float32),
        grid=(b,),
        in_specs=[pl.BlockSpec((None, n, d), lambda i: (i, 0, 0))],
        out_specs=pl.BlockSpec((None, n, n), lambda i: (i, 0, 0)),
        compiler_params=pltpu.CompilerParams(
            dimension_semantics=("parallel",),
            vmem_limit_bytes=vmem_limit),
        cost_estimate=pl.CostEstimate(
            flops=flops,
            transcendentals=transcendentals,
            bytes_accessed=bytes_accessed),
    )(x)
    return out[0] if squeeze else out


def bpa_reference_2d(x, *, ot_reg=0.1, sinkhorn_iterations=10, diagonal_val=1e5):
    """Pure-JAX reference (original math / orientation) for one [N, D] instance."""
    x = x.astype(jnp.float32)
    n = x.shape[0]
    x_n = x / jnp.maximum(jnp.linalg.norm(x, axis=-1, keepdims=True), 1e-12)
    cost = 1.0 - x_n @ x_n.T
    eye = jnp.eye(n, dtype=bool)
    cost = jnp.where(eye, diagonal_val, cost)
    log_k = -cost / ot_reg
    log_u = jnp.zeros((n, 1), jnp.float32)
    log_v = jnp.zeros((1, n), jnp.float32)
    for _ in range(sinkhorn_iterations):
        log_u = -jax.scipy.special.logsumexp(log_k + log_v, axis=1, keepdims=True)
        log_v = -jax.scipy.special.logsumexp(log_u + log_k, axis=0, keepdims=True)
    p = jnp.exp(log_u + log_k + log_v)
    p = p / jnp.max(p)
    return jnp.where(eye, 1.0, p)


if __name__ == "__main__":
    # Batched few-shot-style shapes: B=4 tasks, N=128 samples, D=64 features.
    # N=128 keeps the output writeback lane-dense.
    key = jax.random.PRNGKey(0)
    x = jax.random.normal(key, (4, 128, 64), dtype=jnp.float32)

    out = bpa_forward(x)
    out = jax.block_until_ready(out)
    assert out.shape == (4, 128, 128)

    ref = jax.vmap(bpa_reference_2d)(x)
    assert jnp.allclose(out, ref, rtol=5e-4, atol=1e-5), "batched mismatch vs reference"

    # Also exercise the 2-D (single-instance) input path of BPA.forward.
    out2d = jax.block_until_ready(bpa_forward(x[0]))
    ref2d = bpa_reference_2d(x[0])
    assert out2d.shape == (128, 128)
    assert jnp.allclose(out2d, ref2d, rtol=5e-4, atol=1e-5), "2-D mismatch vs reference"

    print("KERNEL_OK")
</pallas_src>

<mosaic_0001>
module attributes {stable_mosaic.version = 11 : i64} {
  func.func @bpa_kernel(%arg0: i32, %arg1: memref<1x128x64xf32, #tpu.memory_space<vmem>>, %arg2: memref<1x128x128xf32, #tpu.memory_space<vmem>>) attributes {dimension_semantics = [#tpu.dimension_semantics<parallel>], iteration_bounds = array<i64: 4>, scalar_prefetch = 0 : i64, scratch_operands = 0 : i64, tpu.core_type = #tpu.core_type<tc>, window_params = [{transform_indices = @transform_0, window_bounds = array<i64: 1, 128, 64>}, {transform_indices = @transform_1, window_bounds = array<i64: 1, 128, 128>}]} {
    %c0 = arith.constant 0 : index
    %c0_0 = arith.constant 0 : index
    %c0_1 = arith.constant 0 : index
    %0 = vector.load %arg1[%c0, %c0_0, %c0_1] : memref<1x128x64xf32, #tpu.memory_space<vmem>>, vector<1x128x64xf32>
    %1 = vector.shape_cast %0 : vector<1x128x64xf32> to vector<128x64xf32>
    %2 = arith.mulf %1, %1 : vector<128x64xf32>
    %cst = arith.constant dense<0.000000e+00> : vector<128xf32>
    %3 = vector.multi_reduction <add>, %2, %cst [1] : vector<128x64xf32> to vector<128xf32>
    %4 = vector.shape_cast %3 : vector<128xf32> to vector<128x1xf32>
    %cst_2 = arith.constant 1.000000e-24 : f32
    %5 = vector.broadcast %cst_2 : f32 to vector<128x1xf32>
    %6 = arith.maximumf %4, %5 : vector<128x1xf32>
    %7 = math.rsqrt %6 : vector<128x1xf32>
    %8 = vector.broadcast %7 : vector<128x1xf32> to vector<128x64xf32>
    %9 = arith.mulf %1, %8 : vector<128x64xf32>
    %cst_3 = arith.constant dense<0.000000e+00> : vector<128x128xf32>
    %10 = tpu.matmul %9, %9, %cst_3 {dimension_numbers = #tpu.dot_dimension_numbers<[1], [1], [0], [0], [0, 0, 1, 0], [], []>} : vector<128x64xf32>, vector<128x64xf32>, vector<128x128xf32> -> vector<128x128xf32>
    %11 = tpu.iota {dimensions = array<i32: 0>} : vector<128x128xi32>
    %12 = tpu.iota {dimensions = array<i32: 1>} : vector<128x128xi32>
    %13 = arith.cmpi eq, %11, %12 : vector<128x128xi32>
    %cst_4 = arith.constant 1.000000e+00 : f32
    %14 = vector.broadcast %cst_4 : f32 to vector<128x128xf32>
    %15 = arith.subf %10, %14 : vector<128x128xf32>
    %cst_5 = arith.constant 1.000000e+01 : f32
    %16 = vector.broadcast %cst_5 : f32 to vector<128x128xf32>
    %17 = arith.mulf %15, %16 : vector<128x128xf32>
    %cst_6 = arith.constant -1.000000e+06 : f32
    %18 = vector.broadcast %cst_6 : f32 to vector<128x128xf32>
    %19 = arith.select %13, %18, %17 : vector<128x128xi1>, vector<128x128xf32>
    %cst_7 = arith.constant 0.000000e+00 : f32
    %20 = vector.broadcast %cst_7 : f32 to vector<1x128xf32>
    %21 = vector.broadcast %20 : vector<1x128xf32> to vector<128x128xf32>
    %22 = arith.addf %19, %21 : vector<128x128xf32>
    %cst_8 = arith.constant dense<0xFF800000> : vector<128xf32>
    %23 = vector.multi_reduction <maximumf>, %22, %cst_8 [1] : vector<128x128xf32> to vector<128xf32>
    %24 = vector.shape_cast %23 : vector<128xf32> to vector<128x1xf32>
    %25 = vector.broadcast %24 : vector<128x1xf32> to vector<128x128xf32>
    %26 = arith.subf %22, %25 : vector<128x128xf32>
    %27 = math.exp %26 : vector<128x128xf32>
    %cst_9 = arith.constant dense<0.000000e+00> : vector<128xf32>
    %28 = vector.multi_reduction <add>, %27, %cst_9 [1] : vector<128x128xf32> to vector<128xf32>
    %29 = vector.shape_cast %28 : vector<128xf32> to vector<128x1xf32>
    %30 = math.log %29 : vector<128x1xf32>
    %31 = arith.addf %24, %30 : vector<128x1xf32>
    %cst_10 = arith.constant 0.000000e+00 : f32
    %32 = vector.broadcast %cst_10 : f32 to vector<128x1xf32>
    %33 = arith.subf %32, %31 : vector<128x1xf32>
    %34 = tpu.transpose %33, [1, 0] : vector<128x1xf32> -> vector<1x128xf32>
    %35 = vector.broadcast %34 : vector<1x128xf32> to vector<128x128xf32>
    %36 = arith.addf %19, %35 : vector<128x128xf32>
    %cst_11 = arith.constant dense<0xFF800000> : vector<128xf32>
    %37 = vector.multi_reduction <maximumf>, %36, %cst_11 [1] : vector<128x128xf32> to vector<128xf32>
    %38 = vector.shape_cast %37 : vector<128xf32> to vector<128x1xf32>
    %39 = vector.broadcast %38 : vector<128x1xf32> to vector<128x128xf32>
    %40 = arith.subf %36, %39 : vector<128x128xf32>
    %41 = math.exp %40 : vector<128x128xf32>
    %cst_12 = arith.constant dense<0.000000e+00> : vector<128xf32>
    %42 = vector.multi_reduction <add>, %41, %cst_12 [1] : vector<128x128xf32> to vector<128xf32>
    %43 = vector.shape_cast %42 : vector<128xf32> to vector<128x1xf32>
    %44 = math.log %43 : vector<128x1xf32>
    %45 = arith.addf %38, %44 : vector<128x1xf32>
    %cst_13 = arith.constant 0.000000e+00 : f32
    %46 = vector.broadcast %cst_13 : f32 to vector<128x1xf32>
    %47 = arith.subf %46, %45 : vector<128x1xf32>
    %48 = tpu.transpose %47, [1, 0] : vector<128x1xf32> -> vector<1x128xf32>
    %49 = vector.broadcast %48 : vector<1x128xf32> to vector<128x128xf32>
    %50 = arith.addf %19, %49 : vector<128x128xf32>
    %cst_14 = arith.constant dense<0xFF800000> : vector<128xf32>
    %51 = vector.multi_reduction <maximumf>, %50, %cst_14 [1] : vector<128x128xf32> to vector<128xf32>
    %52 = vector.shape_cast %51 : vector<128xf32> to vector<128x1xf32>
    %53 = vector.broadcast %52 : vector<128x1xf32> to vector<128x128xf32>
    %54 = arith.subf %50, %53 : vector<128x128xf32>
    %55 = math.exp %54 : vector<128x128xf32>
    %cst_15 = arith.constant dense<0.000000e+00> : vector<128xf32>
    %56 = vector.multi_reduction <add>, %55, %cst_15 [1] : vector<128x128xf32> to vector<128xf32>
    %57 = vector.shape_cast %56 : vector<128xf32> to vector<128x1xf32>
    %58 = math.log %57 : vector<128x1xf32>
    %59 = arith.addf %52, %58 : vector<128x1xf32>
    %cst_16 = arith.constant 0.000000e+00 : f32
    %60 = vector.broadcast %cst_16 : f32 to vector<128x1xf32>
    %61 = arith.subf %60, %59 : vector<128x1xf32>
    %62 = tpu.transpose %61, [1, 0] : vector<128x1xf32> -> vector<1x128xf32>
    %63 = vector.broadcast %62 : vector<1x128xf32> to vector<128x128xf32>
    %64 = arith.addf %19, %63 : vector<128x128xf32>
    %cst_17 = arith.constant dense<0xFF800000> : vector<128xf32>
    %65 = vector.multi_reduction <maximumf>, %64, %cst_17 [1] : vector<128x128xf32> to vector<128xf32>
    %66 = vector.shape_cast %65 : vector<128xf32> to vector<128x1xf32>
    %67 = vector.broadcast %66 : vector<128x1xf32> to vector<128x128xf32>
    %68 = arith.subf %64, %67 : vector<128x128xf32>
    %69 = math.exp %68 : vector<128x128xf32>
    %cst_18 = arith.constant dense<0.000000e+00> : vector<128xf32>
    %70 = vector.multi_reduction <add>, %69, %cst_18 [1] : vector<128x128xf32> to vector<128xf32>
    %71 = vector.shape_cast %70 : vector<128xf32> to vector<128x1xf32>
    %72 = math.log %71 : vector<128x1xf32>
    %73 = arith.addf %66, %72 : vector<128x1xf32>
    %cst_19 = arith.constant 0.000000e+00 : f32
    %74 = vector.broadcast %cst_19 : f32 to vector<128x1xf32>
    %75 = arith.subf %74, %73 : vector<128x1xf32>
    %76 = tpu.transpose %75, [1, 0] : vector<128x1xf32> -> vector<1x128xf32>
    %77 = vector.broadcast %76 : vector<1x128xf32> to vector<128x128xf32>
    %78 = arith.addf %19, %77 : vector<128x128xf32>
    %cst_20 = arith.constant dense<0xFF800000> : vector<128xf32>
    %79 = vector.multi_reduction <maximumf>, %78, %cst_20 [1] : vector<128x128xf32> to vector<128xf32>
    %80 = vector.shape_cast %79 : vector<128xf32> to vector<128x1xf32>
    %81 = vector.broadcast %80 : vector<128x1xf32> to vector<128x128xf32>
    %82 = arith.subf %78, %81 : vector<128x128xf32>
    %83 = math.exp %82 : vector<128x128xf32>
    %cst_21 = arith.constant dense<0.000000e+00> : vector<128xf32>
    %84 = vector.multi_reduction <add>, %83, %cst_21 [1] : vector<128x128xf32> to vector<128xf32>
    %85 = vector.shape_cast %84 : vector<128xf32> to vector<128x1xf32>
    %86 = math.log %85 : vector<128x1xf32>
    %87 = arith.addf %80, %86 : vector<128x1xf32>
    %cst_22 = arith.constant 0.000000e+00 : f32
    %88 = vector.broadcast %cst_22 : f32 to vector<128x1xf32>
    %89 = arith.subf %88, %87 : vector<128x1xf32>
    %90 = tpu.transpose %89, [1, 0] : vector<128x1xf32> -> vector<1x128xf32>
    %91 = vector.broadcast %90 : vector<1x128xf32> to vector<128x128xf32>
    %92 = arith.addf %19, %91 : vector<128x128xf32>
    %cst_23 = arith.constant dense<0xFF800000> : vector<128xf32>
    %93 = vector.multi_reduction <maximumf>, %92, %cst_23 [1] : vector<128x128xf32> to vector<128xf32>
    %94 = vector.shape_cast %93 : vector<128xf32> to vector<128x1xf32>
    %95 = vector.broadcast %94 : vector<128x1xf32> to vector<128x128xf32>
    %96 = arith.subf %92, %95 : vector<128x128xf32>
    %97 = math.exp %96 : vector<128x128xf32>
    %cst_24 = arith.constant dense<0.000000e+00> : vector<128xf32>
    %98 = vector.multi_reduction <add>, %97, %cst_24 [1] : vector<128x128xf32> to vector<128xf32>
    %99 = vector.shape_cast %98 : vector<128xf32> to vector<128x1xf32>
    %100 = math.log %99 : vector<128x1xf32>
    %101 = arith.addf %94, %100 : vector<128x1xf32>
    %cst_25 = arith.constant 0.000000e+00 : f32
    %102 = vector.broadcast %cst_25 : f32 to vector<128x1xf32>
    %103 = arith.subf %102, %101 : vector<128x1xf32>
    %104 = tpu.transpose %103, [1, 0] : vector<128x1xf32> -> vector<1x128xf32>
    %105 = vector.broadcast %104 : vector<1x128xf32> to vector<128x128xf32>
    %106 = arith.addf %19, %105 : vector<128x128xf32>
    %cst_26 = arith.constant dense<0xFF800000> : vector<128xf32>
    %107 = vector.multi_reduction <maximumf>, %106, %cst_26 [1] : vector<128x128xf32> to vector<128xf32>
    %108 = vector.shape_cast %107 : vector<128xf32> to vector<128x1xf32>
    %109 = vector.broadcast %108 : vector<128x1xf32> to vector<128x128xf32>
    %110 = arith.subf %106, %109 : vector<128x128xf32>
    %111 = math.exp %110 : vector<128x128xf32>
    %cst_27 = arith.constant dense<0.000000e+00> : vector<128xf32>
    %112 = vector.multi_reduction <add>, %111, %cst_27 [1] : vector<128x128xf32> to vector<128xf32>
    %113 = vector.shape_cast %112 : vector<128xf32> to vector<128x1xf32>
    %114 = math.log %113 : vector<128x1xf32>
    %115 = arith.addf %108, %114 : vector<128x1xf32>
    %cst_28 = arith.constant 0.000000e+00 : f32
    %116 = vector.broadcast %cst_28 : f32 to vector<128x1xf32>
    %117 = arith.subf %116, %115 : vector<128x1xf32>
    %118 = tpu.transpose %117, [1, 0] : vector<128x1xf32> -> vector<1x128xf32>
    %119 = vector.broadcast %118 : vector<1x128xf32> to vector<128x128xf32>
    %120 = arith.addf %19, %119 : vector<128x128xf32>
    %cst_29 = arith.constant dense<0xFF800000> : vector<128xf32>
    %121 = vector.multi_reduction <maximumf>, %120, %cst_29 [1] : vector<128x128xf32> to vector<128xf32>
    %122 = vector.shape_cast %121 : vector<128xf32> to vector<128x1xf32>
    %123 = vector.broadcast %122 : vector<128x1xf32> to vector<128x128xf32>
    %124 = arith.subf %120, %123 : vector<128x128xf32>
    %125 = math.exp %124 : vector<128x128xf32>
    %cst_30 = arith.constant dense<0.000000e+00> : vector<128xf32>
    %126 = vector.multi_reduction <add>, %125, %cst_30 [1] : vector<128x128xf32> to vector<128xf32>
    %127 = vector.shape_cast %126 : vector<128xf32> to vector<128x1xf32>
    %128 = math.log %127 : vector<128x1xf32>
    %129 = arith.addf %122, %128 : vector<128x1xf32>
    %cst_31 = arith.constant 0.000000e+00 : f32
    %130 = vector.broadcast %cst_31 : f32 to vector<128x1xf32>
    %131 = arith.subf %130, %129 : vector<128x1xf32>
    %132 = tpu.transpose %131, [1, 0] : vector<128x1xf32> -> vector<1x128xf32>
    %133 = vector.broadcast %132 : vector<1x128xf32> to vector<128x128xf32>
    %134 = arith.addf %19, %133 : vector<128x128xf32>
    %cst_32 = arith.constant dense<0xFF800000> : vector<128xf32>
    %135 = vector.multi_reduction <maximumf>, %134, %cst_32 [1] : vector<128x128xf32> to vector<128xf32>
    %136 = vector.shape_cast %135 : vector<128xf32> to vector<128x1xf32>
    %137 = vector.broadcast %136 : vector<128x1xf32> to vector<128x128xf32>
    %138 = arith.subf %134, %137 : vector<128x128xf32>
    %139 = math.exp %138 : vector<128x128xf32>
    %cst_33 = arith.constant dense<0.000000e+00> : vector<128xf32>
    %140 = vector.multi_reduction <add>, %139, %cst_33 [1] : vector<128x128xf32> to vector<128xf32>
    %141 = vector.shape_cast %140 : vector<128xf32> to vector<128x1xf32>
    %142 = math.log %141 : vector<128x1xf32>
    %143 = arith.addf %136, %142 : vector<128x1xf32>
    %cst_34 = arith.constant 0.000000e+00 : f32
    %144 = vector.broadcast %cst_34 : f32 to vector<128x1xf32>
    %145 = arith.subf %144, %143 : vector<128x1xf32>
    %146 = tpu.transpose %145, [1, 0] : vector<128x1xf32> -> vector<1x128xf32>
    %147 = vector.broadcast %146 : vector<1x128xf32> to vector<128x128xf32>
    %148 = arith.addf %19, %147 : vector<128x128xf32>
    %cst_35 = arith.constant dense<0xFF800000> : vector<128xf32>
    %149 = vector.multi_reduction <maximumf>, %148, %cst_35 [1] : vector<128x128xf32> to vector<128xf32>
    %150 = vector.shape_cast %149 : vector<128xf32> to vector<128x1xf32>
    %151 = vector.broadcast %150 : vector<128x1xf32> to vector<128x128xf32>
    %152 = arith.subf %148, %151 : vector<128x128xf32>
    %153 = math.exp %152 : vector<128x128xf32>
    %cst_36 = arith.constant dense<0.000000e+00> : vector<128xf32>
    %154 = vector.multi_reduction <add>, %153, %cst_36 [1] : vector<128x128xf32> to vector<128xf32>
    %155 = vector.shape_cast %154 : vector<128xf32> to vector<128x1xf32>
    %156 = math.log %155 : vector<128x1xf32>
    %157 = arith.addf %150, %156 : vector<128x1xf32>
    %cst_37 = arith.constant 0.000000e+00 : f32
    %158 = vector.broadcast %cst_37 : f32 to vector<128x1xf32>
    %159 = arith.subf %158, %157 : vector<128x1xf32>
    %160 = tpu.transpose %159, [1, 0] : vector<128x1xf32> -> vector<1x128xf32>
    %161 = vector.broadcast %160 : vector<1x128xf32> to vector<128x128xf32>
    %162 = arith.addf %19, %161 : vector<128x128xf32>
    %cst_38 = arith.constant dense<0xFF800000> : vector<128xf32>
    %163 = vector.multi_reduction <maximumf>, %162, %cst_38 [1] : vector<128x128xf32> to vector<128xf32>
    %164 = vector.shape_cast %163 : vector<128xf32> to vector<128x1xf32>
    %165 = vector.broadcast %164 : vector<128x1xf32> to vector<128x128xf32>
    %166 = arith.subf %162, %165 : vector<128x128xf32>
    %167 = math.exp %166 : vector<128x128xf32>
    %cst_39 = arith.constant dense<0.000000e+00> : vector<128xf32>
    %168 = vector.multi_reduction <add>, %167, %cst_39 [1] : vector<128x128xf32> to vector<128xf32>
    %169 = vector.shape_cast %168 : vector<128xf32> to vector<128x1xf32>
    %170 = math.log %169 : vector<128x1xf32>
    %171 = arith.addf %164, %170 : vector<128x1xf32>
    %cst_40 = arith.constant 0.000000e+00 : f32
    %172 = vector.broadcast %cst_40 : f32 to vector<128x1xf32>
    %173 = arith.subf %172, %171 : vector<128x1xf32>
    %174 = tpu.transpose %173, [1, 0] : vector<128x1xf32> -> vector<1x128xf32>
    %175 = vector.broadcast %174 : vector<1x128xf32> to vector<128x128xf32>
    %176 = arith.addf %19, %175 : vector<128x128xf32>
    %cst_41 = arith.constant dense<0xFF800000> : vector<128xf32>
    %177 = vector.multi_reduction <maximumf>, %176, %cst_41 [1] : vector<128x128xf32> to vector<128xf32>
    %178 = vector.shape_cast %177 : vector<128xf32> to vector<128x1xf32>
    %179 = vector.broadcast %178 : vector<128x1xf32> to vector<128x128xf32>
    %180 = arith.subf %176, %179 : vector<128x128xf32>
    %181 = math.exp %180 : vector<128x128xf32>
    %cst_42 = arith.constant dense<0.000000e+00> : vector<128xf32>
    %182 = vector.multi_reduction <add>, %181, %cst_42 [1] : vector<128x128xf32> to vector<128xf32>
    %183 = vector.shape_cast %182 : vector<128xf32> to vector<128x1xf32>
    %184 = math.log %183 : vector<128x1xf32>
    %185 = arith.addf %178, %184 : vector<128x1xf32>
    %cst_43 = arith.constant 0.000000e+00 : f32
    %186 = vector.broadcast %cst_43 : f32 to vector<128x1xf32>
    %187 = arith.subf %186, %185 : vector<128x1xf32>
    %188 = tpu.transpose %187, [1, 0] : vector<128x1xf32> -> vector<1x128xf32>
    %189 = vector.broadcast %188 : vector<1x128xf32> to vector<128x128xf32>
    %190 = arith.addf %19, %189 : vector<128x128xf32>
    %cst_44 = arith.constant dense<0xFF800000> : vector<128xf32>
    %191 = vector.multi_reduction <maximumf>, %190, %cst_44 [1] : vector<128x128xf32> to vector<128xf32>
    %192 = vector.shape_cast %191 : vector<128xf32> to vector<128x1xf32>
    %193 = vector.broadcast %192 : vector<128x1xf32> to vector<128x128xf32>
    %194 = arith.subf %190, %193 : vector<128x128xf32>
    %195 = math.exp %194 : vector<128x128xf32>
    %cst_45 = arith.constant dense<0.000000e+00> : vector<128xf32>
    %196 = vector.multi_reduction <add>, %195, %cst_45 [1] : vector<128x128xf32> to vector<128xf32>
    %197 = vector.shape_cast %196 : vector<128xf32> to vector<128x1xf32>
    %198 = math.log %197 : vector<128x1xf32>
    %199 = arith.addf %192, %198 : vector<128x1xf32>
    %cst_46 = arith.constant 0.000000e+00 : f32
    %200 = vector.broadcast %cst_46 : f32 to vector<128x1xf32>
    %201 = arith.subf %200, %199 : vector<128x1xf32>
    %202 = tpu.transpose %201, [1, 0] : vector<128x1xf32> -> vector<1x128xf32>
    %203 = vector.broadcast %202 : vector<1x128xf32> to vector<128x128xf32>
    %204 = arith.addf %19, %203 : vector<128x128xf32>
    %cst_47 = arith.constant dense<0xFF800000> : vector<128xf32>
    %205 = vector.multi_reduction <maximumf>, %204, %cst_47 [1] : vector<128x128xf32> to vector<128xf32>
    %206 = vector.shape_cast %205 : vector<128xf32> to vector<128x1xf32>
    %207 = vector.broadcast %206 : vector<128x1xf32> to vector<128x128xf32>
    %208 = arith.subf %204, %207 : vector<128x128xf32>
    %209 = math.exp %208 : vector<128x128xf32>
    %cst_48 = arith.constant dense<0.000000e+00> : vector<128xf32>
    %210 = vector.multi_reduction <add>, %209, %cst_48 [1] : vector<128x128xf32> to vector<128xf32>
    %211 = vector.shape_cast %210 : vector<128xf32> to vector<128x1xf32>
    %212 = math.log %211 : vector<128x1xf32>
    %213 = arith.addf %206, %212 : vector<128x1xf32>
    %cst_49 = arith.constant 0.000000e+00 : f32
    %214 = vector.broadcast %cst_49 : f32 to vector<128x1xf32>
    %215 = arith.subf %214, %213 : vector<128x1xf32>
    %216 = tpu.transpose %215, [1, 0] : vector<128x1xf32> -> vector<1x128xf32>
    %217 = vector.broadcast %216 : vector<1x128xf32> to vector<128x128xf32>
    %218 = arith.addf %19, %217 : vector<128x128xf32>
    %cst_50 = arith.constant dense<0xFF800000> : vector<128xf32>
    %219 = vector.multi_reduction <maximumf>, %218, %cst_50 [1] : vector<128x128xf32> to vector<128xf32>
    %220 = vector.shape_cast %219 : vector<128xf32> to vector<128x1xf32>
    %221 = vector.broadcast %220 : vector<128x1xf32> to vector<128x128xf32>
    %222 = arith.subf %218, %221 : vector<128x128xf32>
    %223 = math.exp %222 : vector<128x128xf32>
    %cst_51 = arith.constant dense<0.000000e+00> : vector<128xf32>
    %224 = vector.multi_reduction <add>, %223, %cst_51 [1] : vector<128x128xf32> to vector<128xf32>
    %225 = vector.shape_cast %224 : vector<128xf32> to vector<128x1xf32>
    %226 = math.log %225 : vector<128x1xf32>
    %227 = arith.addf %220, %226 : vector<128x1xf32>
    %cst_52 = arith.constant 0.000000e+00 : f32
    %228 = vector.broadcast %cst_52 : f32 to vector<128x1xf32>
    %229 = arith.subf %228, %227 : vector<128x1xf32>
    %230 = tpu.transpose %229, [1, 0] : vector<128x1xf32> -> vector<1x128xf32>
    %231 = vector.broadcast %230 : vector<1x128xf32> to vector<128x128xf32>
    %232 = arith.addf %19, %231 : vector<128x128xf32>
    %cst_53 = arith.constant dense<0xFF800000> : vector<128xf32>
    %233 = vector.multi_reduction <maximumf>, %232, %cst_53 [1] : vector<128x128xf32> to vector<128xf32>
    %234 = vector.shape_cast %233 : vector<128xf32> to vector<128x1xf32>
    %235 = vector.broadcast %234 : vector<128x1xf32> to vector<128x128xf32>
    %236 = arith.subf %232, %235 : vector<128x128xf32>
    %237 = math.exp %236 : vector<128x128xf32>
    %cst_54 = arith.constant dense<0.000000e+00> : vector<128xf32>
    %238 = vector.multi_reduction <add>, %237, %cst_54 [1] : vector<128x128xf32> to vector<128xf32>
    %239 = vector.shape_cast %238 : vector<128xf32> to vector<128x1xf32>
    %240 = math.log %239 : vector<128x1xf32>
    %241 = arith.addf %234, %240 : vector<128x1xf32>
    %cst_55 = arith.constant 0.000000e+00 : f32
    %242 = vector.broadcast %cst_55 : f32 to vector<128x1xf32>
    %243 = arith.subf %242, %241 : vector<128x1xf32>
    %244 = tpu.transpose %243, [1, 0] : vector<128x1xf32> -> vector<1x128xf32>
    %245 = vector.broadcast %244 : vector<1x128xf32> to vector<128x128xf32>
    %246 = arith.addf %19, %245 : vector<128x128xf32>
    %cst_56 = arith.constant dense<0xFF800000> : vector<128xf32>
    %247 = vector.multi_reduction <maximumf>, %246, %cst_56 [1] : vector<128x128xf32> to vector<128xf32>
    %248 = vector.shape_cast %247 : vector<128xf32> to vector<128x1xf32>
    %249 = vector.broadcast %248 : vector<128x1xf32> to vector<128x128xf32>
    %250 = arith.subf %246, %249 : vector<128x128xf32>
    %251 = math.exp %250 : vector<128x128xf32>
    %cst_57 = arith.constant dense<0.000000e+00> : vector<128xf32>
    %252 = vector.multi_reduction <add>, %251, %cst_57 [1] : vector<128x128xf32> to vector<128xf32>
    %253 = vector.shape_cast %252 : vector<128xf32> to vector<128x1xf32>
    %254 = math.log %253 : vector<128x1xf32>
    %255 = arith.addf %248, %254 : vector<128x1xf32>
    %cst_58 = arith.constant 0.000000e+00 : f32
    %256 = vector.broadcast %cst_58 : f32 to vector<128x1xf32>
    %257 = arith.subf %256, %255 : vector<128x1xf32>
    %258 = tpu.transpose %257, [1, 0] : vector<128x1xf32> -> vector<1x128xf32>
    %259 = vector.broadcast %258 : vector<1x128xf32> to vector<128x128xf32>
    %260 = arith.addf %19, %259 : vector<128x128xf32>
    %cst_59 = arith.constant dense<0xFF800000> : vector<128xf32>
    %261 = vector.multi_reduction <maximumf>, %260, %cst_59 [1] : vector<128x128xf32> to vector<128xf32>
    %262 = vector.shape_cast %261 : vector<128xf32> to vector<128x1xf32>
    %263 = vector.broadcast %262 : vector<128x1xf32> to vector<128x128xf32>
    %264 = arith.subf %260, %263 : vector<128x128xf32>
    %265 = math.exp %264 : vector<128x128xf32>
    %cst_60 = arith.constant dense<0.000000e+00> : vector<128xf32>
    %266 = vector.multi_reduction <add>, %265, %cst_60 [1] : vector<128x128xf32> to vector<128xf32>
    %267 = vector.shape_cast %266 : vector<128xf32> to vector<128x1xf32>
    %268 = math.log %267 : vector<128x1xf32>
    %269 = arith.addf %262, %268 : vector<128x1xf32>
    %cst_61 = arith.constant 0.000000e+00 : f32
    %270 = vector.broadcast %cst_61 : f32 to vector<128x1xf32>
    %271 = arith.subf %270, %269 : vector<128x1xf32>
    %272 = tpu.transpose %271, [1, 0] : vector<128x1xf32> -> vector<1x128xf32>
    %273 = vector.broadcast %272 : vector<1x128xf32> to vector<128x128xf32>
    %274 = arith.addf %19, %273 : vector<128x128xf32>
    %cst_62 = arith.constant dense<0xFF800000> : vector<128xf32>
    %275 = vector.multi_reduction <maximumf>, %274, %cst_62 [1] : vector<128x128xf32> to vector<128xf32>
    %276 = vector.shape_cast %275 : vector<128xf32> to vector<128x1xf32>
    %277 = vector.broadcast %276 : vector<128x1xf32> to vector<128x128xf32>
    %278 = arith.subf %274, %277 : vector<128x128xf32>
    %279 = math.exp %278 : vector<128x128xf32>
    %cst_63 = arith.constant dense<0.000000e+00> : vector<128xf32>
    %280 = vector.multi_reduction <add>, %279, %cst_63 [1] : vector<128x128xf32> to vector<128xf32>
    %281 = vector.shape_cast %280 : vector<128xf32> to vector<128x1xf32>
    %282 = math.log %281 : vector<128x1xf32>
    %283 = arith.addf %276, %282 : vector<128x1xf32>
    %cst_64 = arith.constant 0.000000e+00 : f32
    %284 = vector.broadcast %cst_64 : f32 to vector<128x1xf32>
    %285 = arith.subf %284, %283 : vector<128x1xf32>
    %286 = tpu.transpose %285, [1, 0] : vector<128x1xf32> -> vector<1x128xf32>
    %287 = vector.broadcast %286 : vector<1x128xf32> to vector<128x128xf32>
    %288 = arith.addf %19, %287 : vector<128x128xf32>
    %cst_65 = arith.constant dense<0xFF800000> : vector<128xf32>
    %289 = vector.multi_reduction <maximumf>, %288, %cst_65 [1] : vector<128x128xf32> to vector<128xf32>
    %290 = vector.shape_cast %289 : vector<128xf32> to vector<128x1xf32>
    %291 = vector.broadcast %290 : vector<128x1xf32> to vector<128x128xf32>
    %292 = arith.subf %288, %291 : vector<128x128xf32>
    %293 = math.exp %292 : vector<128x128xf32>
    %cst_66 = arith.constant dense<0.000000e+00> : vector<128xf32>
    %294 = vector.multi_reduction <add>, %293, %cst_66 [1] : vector<128x128xf32> to vector<128xf32>
    %295 = vector.shape_cast %294 : vector<128xf32> to vector<128x1xf32>
    %296 = math.log %295 : vector<128x1xf32>
    %297 = arith.addf %290, %296 : vector<128x1xf32>
    %cst_67 = arith.constant 0.000000e+00 : f32
    %298 = vector.broadcast %cst_67 : f32 to vector<128x1xf32>
    %299 = arith.subf %298, %297 : vector<128x1xf32>
    %300 = tpu.transpose %299, [1, 0] : vector<128x1xf32> -> vector<1x128xf32>
    %301 = vector.broadcast %285 : vector<128x1xf32> to vector<128x128xf32>
    %302 = arith.addf %301, %19 : vector<128x128xf32>
    %303 = vector.broadcast %300 : vector<1x128xf32> to vector<128x128xf32>
    %304 = arith.addf %302, %303 : vector<128x128xf32>
    %305 = math.exp %304 : vector<128x128xf32>
    %306 = vector.shape_cast %305 : vector<128x128xf32> to vector<1x128x128xf32>
    %cst_68 = arith.constant dense<0xFF800000> : vector<1xf32>
    %307 = vector.multi_reduction <maximumf>, %306, %cst_68 [1, 2] : vector<1x128x128xf32> to vector<1xf32>
    %308 = vector.shape_cast %307 : vector<1xf32> to vector<1x1x1xf32>
    %309 = vector.extract %308[0, 0, 0] : f32 from vector<1x1x1xf32>
    %cst_69 = arith.constant 1.000000e+00 : f32
    %310 = arith.divf %cst_69, %309 : f32
    %311 = vector.broadcast %310 : f32 to vector<128x128xf32>
    %312 = arith.mulf %305, %311 : vector<128x128xf32>
    %cst_70 = arith.constant 1.000000e+00 : f32
    %313 = vector.broadcast %cst_70 : f32 to vector<128x128xf32>
    %314 = arith.select %13, %313, %312 : vector<128x128xi1>, vector<128x128xf32>
    %c0_71 = arith.constant 0 : index
    %c0_72 = arith.constant 0 : index
    %c0_73 = arith.constant 0 : index
    %315 = vector.load %arg2[%c0_71, %c0_72, %c0_73] : memref<1x128x128xf32, #tpu.memory_space<vmem>>, vector<1x128x128xf32>
    %316 = vector.shape_cast %315 : vector<1x128x128xf32> to vector<128x128xf32>
    %317 = vector.shape_cast %314 : vector<128x128xf32> to vector<1x128x128xf32>
    tpu.vector_store %arg2[%c0_71, %c0_72, %c0_73], %317 {strides = array<i32>} : memref<1x128x128xf32, #tpu.memory_space<vmem>>, vector<1x128x128xf32>,
    return
  }
  func.func @transform_0(%arg0: i32) -> (i32, i32, i32) {
    %c0_i32 = arith.constant 0 : i32
    %c0_i32_0 = arith.constant 0 : i32
    %c0_i32_1 = arith.constant 0 : i32
    return %arg0, %c0_i32, %c0_i32_0 : i32, i32, i32
  }
  func.func @transform_1(%arg0: i32) -> (i32, i32, i32) {
    %c0_i32 = arith.constant 0 : i32
    %c0_i32_0 = arith.constant 0 : i32
    %c0_i32_1 = arith.constant 0 : i32
    return %arg0, %c0_i32, %c0_i32_0 : i32, i32, i32
  }
}

</mosaic_0001>

<llo_original>
// kernel: tpu_custom_call.1
$region0: #{tpu_custom_call.1}
  #allocation0 [shape = 'u32[]', space=smem, size = 0x4, offset = 0x4, fixed_abs, tag = 'smem constant byte address 0x4 - core index']
  #allocation1 [shape = 'u32[144,128]{1,0:T(1,128)}', space=vmem, size = 0x12000, scoped, tag = 'internal scratch']
  %s0 = inlined_call_operand.vmem [shape: f32[4,128,64], index: 0, kind: input, shape index: {}]
  %s1 = inlined_call_operand.hbm [shape: f32[4,128,128], index: 1, kind: output, shape index: {}]
  %s2 = sld [smem:[#allocation0]]
  $region37: #{tpu_custom_call.1} parent=0
    _
  %s4 = ssub.s32 1, %s2
  %s5 = scalar_select 0, %s4, %s2
  $region1: #{tpu_custom_call.1} parent=0
    #allocation2 [shape = 'u8[131072]{0}', space=vmem, size = 0x20000, scoped, tag = 'output window, operand 0']
    #allocation3 [shape = 's32[2]{0}', space=sflag, size = 0x8, scoped, tag = 'scoped memory for tpu_custom_call.1']
    %6 = vsyncpa [#allocation3], 0
    %s7 = scalar_lea.sflag [#allocation3], 1
    %8 = vsyncpa %s7, 0
    loop: start=0, step=1, limit=6
    $region2: #{tpu_custom_call.1} parent=1 // loop_pre_header
      _
    $region3: #{tpu_custom_call.1} parent=1 // loop_header
      %s10 = sphi 0, %s14
      %p11 = scmp.ge.s32.totalorder %s10, 6
      %s20 = sphi 0, %s22
      %s23 = sphi 0, %s20
      %s24 = sphi 0, %s23
      %s40 = sphi 0, %s24
      %s46 = sphi 0, %s48
      %s49 = sphi 0, %s46
      %s50 = sphi 0, %s49
      %s66 = sphi 0, %s50
    $region4: #{tpu_custom_call.1} parent=1 // loop_header_branch
      %13 = sbr.rel (%p11) target = $region8
    $region5: #{tpu_custom_call.1} parent=1 // loop_body
      %s15 = ssub.s32 %s10, 1
      %s16 = ssub.s32 %s10, 2
      %s17 = sadd.s32 %s10, 1
      %s18 = ssub.s32 %s10, %s17
      %p19 = scmp.eq.s32.totalorder %s18, 0
      %s21 = sadd.s32 %s20, 1
      %s22 = scalar_select %p19, %s20, %s21
      %p25 = pneg %p19
      %p26 = scmp.eq.s32.totalorder %s10, 3
      %p27 = por %p25, %p26
      %p28 = scmp.ne.s32.totalorder %s20, %s23
      %p29 = scmp.eq.s32.totalorder %s10, 0
      %p30 = por %p28, %p29
      %p31 = scmp.ne.s32.totalorder %s20, %s23
      %p32 = scmp.eq.s32.totalorder %s15, 3
      %p33 = por %p31, %p32
      %p34 = scmp.ne.s32.totalorder %s23, %s24
      %p35 = scmp.eq.s32.totalorder %s15, 0
      %p36 = por %p34, %p35
      %p37 = scmp.ne.s32.totalorder %s23, %s24
      %p38 = scmp.eq.s32.totalorder %s16, 3
      %p39 = por %p37, %p38
      %p41 = scmp.ne.s32.totalorder %s24, %s40
      %p42 = scmp.eq.s32.totalorder %s16, 0
      %p43 = por %p41, %p42
      %s44 = ssub.s32 %s10, %s17
      %p45 = scmp.eq.s32.totalorder %s44, 0
      %s47 = sadd.s32 %s46, 1
      %s48 = scalar_select %p45, %s46, %s47
      %p51 = pneg %p45
      %p52 = scmp.eq.s32.totalorder %s10, 3
      %p53 = por %p51, %p52
      %p54 = scmp.ne.s32.totalorder %s46, %s49
      %p55 = scmp.eq.s32.totalorder %s10, 0
      %p56 = por %p54, %p55
      %p57 = scmp.ne.s32.totalorder %s46, %s49
      %p58 = scmp.eq.s32.totalorder %s15, 3
      %p59 = por %p57, %p58
      %p60 = scmp.ne.s32.totalorder %s49, %s50
      %p61 = scmp.eq.s32.totalorder %s15, 0
      %p62 = por %p60, %p61
      %p63 = scmp.ne.s32.totalorder %s49, %s50
      %p64 = scmp.eq.s32.totalorder %s16, 3
      %p65 = por %p63, %p64
      %p67 = scmp.ne.s32.totalorder %s50, %s66
      %p68 = scmp.eq.s32.totalorder %s16, 0
      %p69 = por %p67, %p68
      %p70 = scmp.le.s32.totalorder 1, %s10
      %p71 = scmp.lt.s32.totalorder %s10, 5
      %p72 = pnand %p70, %p71
      %p73 = pneg %p72
      // Predicated region
      $region9: #{tpu_custom_call.1} parent=5 // pred_check
        _
      $region10: #{tpu_custom_call.1} parent=5 // pred_check_branch
        %75 = sbr.rel (%p72) target = $region12
      $region11: #{tpu_custom_call.1} parent=5 // pred_region
        %s76 = ssub.s32 %s10, 1
      $region12: #{tpu_custom_call.1} parent=5 // pred_fallthru
        _
      %p77 = scmp.lt.s32.totalorder %s10, 4
      // Predicated region
      $region13: #{tpu_custom_call.1} parent=5 // pred_check
        %p78 = pneg %p77
      $region14: #{tpu_custom_call.1} parent=5 // pred_check_branch
        %80 = sbr.rel (%p78) target = $region16
      $region15: #{tpu_custom_call.1} parent=5 // pred_region
        // Predicated region
        $region17: #{tpu_custom_call.1} parent=15 // pred_check
          %p81 = pneg %p30
        $region18: #{tpu_custom_call.1} parent=15 // pred_check_branch
          %83 = sbr.rel (%p81) target = $region20
        $region19: #{tpu_custom_call.1} parent=15 // pred_region
          %p84 = scmp.lt.s32.totalorder %s10, 3
          %s85 = scalar_select %p84, %s10, 3
          %s86 = smul.addr %s85, 16
          %s87 = smul.addr %s86, 8
          %s88 = scalar_lea.vmem %s0, %s87
        $region20: #{tpu_custom_call.1} parent=15 // pred_fallthru
          _
      $region16: #{tpu_custom_call.1} parent=5 // pred_fallthru
        _
      %p89 = scmp.le.s32.totalorder 1, %s10
      %p90 = scmp.lt.s32.totalorder %s10, 5
      %p91 = pnand %p89, %p90
      %p92 = pneg %p91
      // Predicated region
      $region21: #{tpu_custom_call.1} parent=5 // pred_check
        _
      $region22: #{tpu_custom_call.1} parent=5 // pred_check_branch
        %94 = sbr.rel (%p91) target = $region24
      $region23: #{tpu_custom_call.1} parent=5 // pred_region
        %s95 = ssub.s32 %s10, 1
        %p96 = scmp.lt.s32.totalorder %s15, 3
        %s97 = scalar_select %p96, %s15, 3
        %s98 = smul.addr %s97, 16
        %s99 = smul.addr %s98, 8
        %s100 = scalar_lea.vmem %s0, %s99
        %p101 = pneg %p36
        %p102 = pneg %p33
        %p103 = pneg %p62
        %p104 = pneg %p59
        %s105 = sand.u32 %s49, 1
        %s106 = scalar_lea.sflag [#allocation3], %s105
        %s107 = sand.u32 %s49, 1
        %s108 = smul.addr %s107, 128
        %s109 = scalar_lea.vmem [#allocation2], %s108
        %p110 = scmp.lt.s32.totalorder %s15, 3
        %s111 = scalar_select %p110, %s15, 3
        %s112 = smul.addr %s111, 16
        %s113 = smul.addr %s112, 8
        %s114 = scalar_lea.vmem %s0, %s113
        %v115 = vld [vmem:[%s114] sm:$0xff]
        %v116 = vld [vmem:[%s114 + $0x8] sm:$0xff]
        %v117 = vld [vmem:[%s114 + $0x10] sm:$0xff]
        %v118 = vld [vmem:[%s114 + $0x18] sm:$0xff]
        %v119 = vld [vmem:[%s114 + $0x20] sm:$0xff]
        %v120 = vld [vmem:[%s114 + $0x28] sm:$0xff]
        %v121 = vld [vmem:[%s114 + $0x30] sm:$0xff]
        %v122 = vld [vmem:[%s114 + $0x38] sm:$0xff]
        %v123 = vld [vmem:[%s114 + $0x40] sm:$0xff]
        %v124 = vld [vmem:[%s114 + $0x48] sm:$0xff]
        %v125 = vld [vmem:[%s114 + $0x50] sm:$0xff]
        %v126 = vld [vmem:[%s114 + $0x58] sm:$0xff]
        %v127 = vld [vmem:[%s114 + $0x60] sm:$0xff]
        %v128 = vld [vmem:[%s114 + $0x68] sm:$0xff]
        %v129 = vld [vmem:[%s114 + $0x70] sm:$0xff]
        %v130 = vld [vmem:[%s114 + $0x78] sm:$0xff]
        %v131 = vmul.f32 %v115, %v115
        %v132 = vmul.f32 %v116, %v116
        %v133 = vmul.f32 %v117, %v117
        %v134 = vmul.f32 %v118, %v118
        %v135 = vmul.f32 %v119, %v119
        %v136 = vmul.f32 %v120, %v120
        %v137 = vmul.f32 %v121, %v121
        %v138 = vmul.f32 %v122, %v122
        %v139 = vmul.f32 %v123, %v123
        %v140 = vmul.f32 %v124, %v124
        %v141 = vmul.f32 %v125, %v125
        %v142 = vmul.f32 %v126, %v126
        %v143 = vmul.f32 %v127, %v127
        %v144 = vmul.f32 %v128, %v128
        %v145 = vmul.f32 %v129, %v129
        %v146 = vmul.f32 %v130, %v130
        %vm147 = vcmask 523264
        %v148 = vsel %vm147, %v131, 0.0
        %149 = vadd.xlane.f32.xlu0 %v148
        %v150 = vpop.xlane.xlu0 %149
        %v151 = vsel %vm147, %v132, 0.0
        %152 = vadd.xlane.f32.xlu0 %v151
        %v153 = vpop.xlane.xlu0 %152
        %v154 = vsel %vm147, %v133, 0.0
        %155 = vadd.xlane.f32.xlu0 %v154
        %v156 = vpop.xlane.xlu0 %155
        %v157 = vsel %vm147, %v134, 0.0
        %158 = vadd.xlane.f32.xlu0 %v157
        %v159 = vpop.xlane.xlu0 %158
        %v160 = vsel %vm147, %v135, 0.0
        %161 = vadd.xlane.f32.xlu0 %v160
        %v162 = vpop.xlane.xlu0 %161
        %v163 = vsel %vm147, %v136, 0.0
        %164 = vadd.xlane.f32.xlu0 %v163
        %v165 = vpop.xlane.xlu0 %164
        %v166 = vsel %vm147, %v137, 0.0
        %167 = vadd.xlane.f32.xlu0 %v166
        %v168 = vpop.xlane.xlu0 %167
        %v169 = vsel %vm147, %v138, 0.0
        %170 = vadd.xlane.f32.xlu0 %v169
        %v171 = vpop.xlane.xlu0 %170
        %v172 = vsel %vm147, %v139, 0.0
        %173 = vadd.xlane.f32.xlu0 %v172
        %v174 = vpop.xlane.xlu0 %173
        %v175 = vsel %vm147, %v140, 0.0
        %176 = vadd.xlane.f32.xlu0 %v175
        %v177 = vpop.xlane.xlu0 %176
        %v178 = vsel %vm147, %v141, 0.0
        %179 = vadd.xlane.f32.xlu0 %v178
        %v180 = vpop.xlane.xlu0 %179
        %v181 = vsel %vm147, %v142, 0.0
        %182 = vadd.xlane.f32.xlu0 %v181
        %v183 = vpop.xlane.xlu0 %182
        %v184 = vsel %vm147, %v143, 0.0
        %185 = vadd.xlane.f32.xlu0 %v184
        %v186 = vpop.xlane.xlu0 %185
        %v187 = vsel %vm147, %v144, 0.0
        %188 = vadd.xlane.f32.xlu0 %v187
        %v189 = vpop.xlane.xlu0 %188
        %v190 = vsel %vm147, %v145, 0.0
        %191 = vadd.xlane.f32.xlu0 %v190
        %v192 = vpop.xlane.xlu0 %191
        %v193 = vsel %vm147, %v146, 0.0
        %194 = vadd.xlane.f32.xlu0 %v193
        %v195 = vpop.xlane.xlu0 %194
        %v196 = vmax.f32 %v150, 1e-24
        %v197 = vmax.f32 %v153, 1e-24
        %v198 = vmax.f32 %v156, 1e-24
        %v199 = vmax.f32 %v159, 1e-24
        %v200 = vmax.f32 %v162, 1e-24
        %v201 = vmax.f32 %v165, 1e-24
        %v202 = vmax.f32 %v168, 1e-24
        %v203 = vmax.f32 %v171, 1e-24
        %v204 = vmax.f32 %v174, 1e-24
        %v205 = vmax.f32 %v177, 1e-24
        %v206 = vmax.f32 %v180, 1e-24
        %v207 = vmax.f32 %v183, 1e-24
        %v208 = vmax.f32 %v186, 1e-24
        %v209 = vmax.f32 %v189, 1e-24
        %v210 = vmax.f32 %v192, 1e-24
        %v211 = vmax.f32 %v195, 1e-24
        %v212 = vrsqrt.pop %v196
        %v213 = vrsqrt.pop %v197
        %v214 = vrsqrt.pop %v198
        %v215 = vrsqrt.pop %v199
        %v216 = vrsqrt.pop %v200
        %v217 = vrsqrt.pop %v201
        %v218 = vrsqrt.pop %v202
        %v219 = vrsqrt.pop %v203
        %v220 = vrsqrt.pop %v204
        %v221 = vrsqrt.pop %v205
        %v222 = vrsqrt.pop %v206
        %v223 = vrsqrt.pop %v207
        %v224 = vrsqrt.pop %v208
        %v225 = vrsqrt.pop %v209
        %v226 = vrsqrt.pop %v210
        %v227 = vrsqrt.pop %v211
        %v228 = vmul.f32 %v115, %v212
        %v229 = vmul.f32 %v116, %v213
        %v230 = vmul.f32 %v117, %v214
        %v231 = vmul.f32 %v118, %v215
        %v232 = vmul.f32 %v119, %v216
        %v233 = vmul.f32 %v120, %v217
        %v234 = vmul.f32 %v121, %v218
        %v235 = vmul.f32 %v122, %v219
        %v236 = vmul.f32 %v123, %v220
        %v237 = vmul.f32 %v124, %v221
        %v238 = vmul.f32 %v125, %v222
        %v239 = vmul.f32 %v126, %v223
        %v240 = vmul.f32 %v127, %v224
        %v241 = vmul.f32 %v128, %v225
        %v242 = vmul.f32 %v129, %v226
        %v243 = vmul.f32 %v130, %v227
        %v245 = vsel %vm147, %v228, 0
        %v248 = vsel %vm147, %v229, 0
        %v251 = vsel %vm147, %v230, 0
        %v254 = vsel %vm147, %v231, 0
        %v257 = vsel %vm147, %v232, 0
        %v260 = vsel %vm147, %v233, 0
        %v263 = vsel %vm147, %v234, 0
        %v266 = vsel %vm147, %v235, 0
        %v269 = vsel %vm147, %v236, 0
        %v272 = vsel %vm147, %v237, 0
        %v275 = vsel %vm147, %v238, 0
        %v278 = vsel %vm147, %v239, 0
        %v281 = vsel %vm147, %v240, 0
        %v284 = vsel %vm147, %v241, 0
        %v287 = vsel %vm147, %v242, 0
        %v290 = vsel %vm147, %v243, 0
        %292 = vmatprep.subr.mxu0 0.0
        %293 = vmatpush1.xpose.msra.mxu0 %v245
        %294 = vmatprep.subr.mxu0 0.0
        %295 = vmatpush1.xpose.msra.mxu0 %v248
        %296 = vmatprep.subr.mxu0 0.0
        %297 = vmatpush1.xpose.msra.mxu0 %v251
        %298 = vmatprep.subr.mxu0 0.0
        %299 = vmatpush1.xpose.msra.mxu0 %v254
        %300 = vmatprep.subr.mxu0 0.0
        %301 = vmatpush1.xpose.msra.mxu0 %v257
        %302 = vmatprep.subr.mxu0 0.0
        %303 = vmatpush1.xpose.msra.mxu0 %v260
        %304 = vmatprep.subr.mxu0 0.0
        %305 = vmatpush1.xpose.msra.mxu0 %v263
        %306 = vmatprep.subr.mxu0 0.0
        %307 = vmatpush1.xpose.msra.mxu0 %v266
        %308 = vmatprep.subr.mxu0 0.0
        %309 = vmatpush1.xpose.msra.mxu0 %v269
        %310 = vmatprep.subr.mxu0 0.0
        %311 = vmatpush1.xpose.msra.mxu0 %v272
        %312 = vmatprep.subr.mxu0 0.0
        %313 = vmatpush1.xpose.msra.mxu0 %v275
        %314 = vmatprep.subr.mxu0 0.0
        %315 = vmatpush1.xpose.msra.mxu0 %v278
        %316 = vmatprep.subr.mxu0 0.0
        %317 = vmatpush1.xpose.msra.mxu0 %v281
        %318 = vmatprep.subr.mxu0 0.0
        %319 = vmatpush1.xpose.msra.mxu0 %v284
        %320 = vmatprep.subr.mxu0 0.0
        %321 = vmatpush1.xpose.msra.mxu0 %v287
        %322 = vmatprep.subr.mxu0 0.0
        %323 = vmatpush1.xpose.msra.mxu0 %v290
        %324 = vmatprep.subr.mxu0 0.0
        %325 = vmatpush1.xpose.msra.mxu0 0.0
        %326 = vmatprep.subr.mxu0 0.0
        %327 = vmatpush1.xpose.msra.mxu0 0.0
        %328 = vmatprep.subr.mxu0 0.0
        %329 = vmatpush1.xpose.msra.mxu0 0.0
        %330 = vmatprep.subr.mxu0 0.0
        %331 = vmatpush1.xpose.msra.mxu0 0.0
        %332 = vmatprep.subr.mxu0 0.0
        %333 = vmatpush1.xpose.msra.mxu0 0.0
        %334 = vmatprep.subr.mxu0 0.0
        %335 = vmatpush1.xpose.msra.mxu0 0.0
        %336 = vmatprep.subr.mxu0 0.0
        %337 = vmatpush1.xpose.msra.mxu0 0.0
        %338 = vmatprep.subr.mxu0 0.0
        %339 = vmatpush1.xpose.msra.mxu0 0.0
        %340 = vmatprep.subr.mxu0 0.0
        %341 = vmatpush1.xpose.msra.mxu0 0.0
        %342 = vmatprep.subr.mxu0 0.0
        %343 = vmatpush1.xpose.msra.mxu0 0.0
        %344 = vmatprep.subr.mxu0 0.0
        %345 = vmatpush1.xpose.msra.mxu0 0.0
        %346 = vmatprep.subr.mxu0 0.0
        %347 = vmatpush1.xpose.msra.mxu0 0.0
        %348 = vmatprep.subr.mxu0 0.0
        %349 = vmatpush1.xpose.msra.mxu0 0.0
        %350 = vmatprep.subr.mxu0 0.0
        %351 = vmatpush1.xpose.msra.mxu0 0.0
        %352 = vmatprep.subr.mxu0 0.0
        %353 = vmatpush1.xpose.msra.mxu0 0.0
        %354 = vmatprep.subr.mxu0 0.0
        %355 = vmatpush1.xpose.msra.mxu0 0.0
        %356 = vmatprep.mubr.f32.mxu0 0.0
        %357 = vmatmul.mubr.f32.gmra.mrb[0].mxu0 %v245
        %v358 = vpop.f32.mrb[0].mxu0
        %v359 = vadd.f32 0.0, %v358
        %v360 = vpop.f32.mrb[0].mxu0
        %361 = vmatprep.mubr.f32.mxu0 0.0
        %362 = vmatmul.mubr.f32.gmra.mrb[0].mxu0 %v248
        %v363 = vpop.f32.mrb[0].mxu0
        %v364 = vadd.f32 0.0, %v363
        %v365 = vpop.f32.mrb[0].mxu0
        %366 = vmatprep.mubr.f32.mxu0 0.0
        %367 = vmatmul.mubr.f32.gmra.mrb[0].mxu0 %v251
        %v368 = vpop.f32.mrb[0].mxu0
        %v369 = vadd.f32 0.0, %v368
        %v370 = vpop.f32.mrb[0].mxu0
        %371 = vmatprep.mubr.f32.mxu0 0.0
        %372 = vmatmul.mubr.f32.gmra.mrb[0].mxu0 %v254
        %v373 = vpop.f32.mrb[0].mxu0
        %v374 = vadd.f32 0.0, %v373
        %v375 = vpop.f32.mrb[0].mxu0
        %376 = vmatprep.mubr.f32.mxu0 0.0
        %377 = vmatmul.mubr.f32.gmra.mrb[0].mxu0 %v257
        %v378 = vpop.f32.mrb[0].mxu0
        %v379 = vadd.f32 0.0, %v378
        %v380 = vpop.f32.mrb[0].mxu0
        %381 = vmatprep.mubr.f32.mxu0 0.0
        %382 = vmatmul.mubr.f32.gmra.mrb[0].mxu0 %v260
        %v383 = vpop.f32.mrb[0].mxu0
        %v384 = vadd.f32 0.0, %v383
        %v385 = vpop.f32.mrb[0].mxu0
        %386 = vmatprep.mubr.f32.mxu0 0.0
        %387 = vmatmul.mubr.f32.gmra.mrb[0].mxu0 %v263
        %v388 = vpop.f32.mrb[0].mxu0
        %v389 = vadd.f32 0.0, %v388
        %v390 = vpop.f32.mrb[0].mxu0
        %391 = vmatprep.mubr.f32.mxu0 0.0
        %392 = vmatmul.mubr.f32.gmra.mrb[0].mxu0 %v266
        %v393 = vpop.f32.mrb[0].mxu0
        %v394 = vadd.f32 0.0, %v393
        %v395 = vpop.f32.mrb[0].mxu0
        %396 = vmatprep.mubr.f32.mxu0 0.0
        %397 = vmatmul.mubr.f32.gmra.mrb[0].mxu0 %v269
        %v398 = vpop.f32.mrb[0].mxu0
        %v399 = vadd.f32 0.0, %v398
        %v400 = vpop.f32.mrb[0].mxu0
        %401 = vmatprep.mubr.f32.mxu0 0.0
        %402 = vmatmul.mubr.f32.gmra.mrb[0].mxu0 %v272
        %v403 = vpop.f32.mrb[0].mxu0
        %v404 = vadd.f32 0.0, %v403
        %v405 = vpop.f32.mrb[0].mxu0
        %406 = vmatprep.mubr.f32.mxu0 0.0
        %407 = vmatmul.mubr.f32.gmra.mrb[0].mxu0 %v275
        %v408 = vpop.f32.mrb[0].mxu0
        %v409 = vadd.f32 0.0, %v408
        %v410 = vpop.f32.mrb[0].mxu0
        %411 = vmatprep.mubr.f32.mxu0 0.0
        %412 = vmatmul.mubr.f32.gmra.mrb[0].mxu0 %v278
        %v413 = vpop.f32.mrb[0].mxu0
        %v414 = vadd.f32 0.0, %v413
        %v415 = vpop.f32.mrb[0].mxu0
        %416 = vmatprep.mubr.f32.mxu0 0.0
        %417 = vmatmul.mubr.f32.gmra.mrb[0].mxu0 %v281
        %v418 = vpop.f32.mrb[0].mxu0
        %v419 = vadd.f32 0.0, %v418
        %v420 = vpop.f32.mrb[0].mxu0
        %421 = vmatprep.mubr.f32.mxu0 0.0
        %422 = vmatmul.mubr.f32.gmra.mrb[0].mxu0 %v284
        %v423 = vpop.f32.mrb[0].mxu0
        %v424 = vadd.f32 0.0, %v423
        %v425 = vpop.f32.mrb[0].mxu0
        %426 = vmatprep.mubr.f32.mxu0 0.0
        %427 = vmatmul.mubr.f32.gmra.mrb[0].mxu0 %v287
        %v428 = vpop.f32.mrb[0].mxu0
        %v429 = vadd.f32 0.0, %v428
        %v430 = vpop.f32.mrb[0].mxu0
        %431 = vmatprep.mubr.f32.mxu0 0.0
        %432 = vmatmul.mubr.f32.gmra.mrb[0].mxu0 %v290
        %v433 = vpop.f32.mrb[0].mxu0
        %v434 = vadd.f32 0.0, %v433
        %v435 = vpop.f32.mrb[0].mxu0
        %436 = vdwg.mxu0
        %v437 = vlaneseq
        %v438 = vshrl.u32 %v437, 7
        %v439 = vadd.s32 %v438, 8
        %v440 = vadd.s32 %v438, 16
        %v441 = vadd.s32 %v438, 24
        %v442 = vadd.s32 %v438, 32
        %v443 = vadd.s32 %v438, 40
        %v444 = vadd.s32 %v438, 48
        %v445 = vadd.s32 %v438, 56
        %v446 = vadd.s32 %v438, 64
        %v447 = vadd.s32 %v438, 72
        %v448 = vadd.s32 %v438, 80
        %v449 = vadd.s32 %v438, 88
        %v450 = vadd.s32 %v438, 96
        %v451 = vadd.s32 %v438, 104
        %v452 = vadd.s32 %v438, 112
        %v453 = vadd.s32 %v438, 120
        %v454 = vlaneseq
        %v455 = vand.u32 %v454, 127
        %vm456 = vcmp.eq.s32.totalorder %v438, %v455
        %vm457 = vcmp.eq.s32.totalorder %v439, %v455
        %vm458 = vcmp.eq.s32.totalorder %v440, %v455
        %vm459 = vcmp.eq.s32.totalorder %v441, %v455
        %vm460 = vcmp.eq.s32.totalorder %v442, %v455
        %vm461 = vcmp.eq.s32.totalorder %v443, %v455
        %vm462 = vcmp.eq.s32.totalorder %v444, %v455
        %vm463 = vcmp.eq.s32.totalorder %v445, %v455
        %vm464 = vcmp.eq.s32.totalorder %v446, %v455
        %vm465 = vcmp.eq.s32.totalorder %v447, %v455
        %vm466 = vcmp.eq.s32.totalorder %v448, %v455
        %vm467 = vcmp.eq.s32.totalorder %v449, %v455
        %vm468 = vcmp.eq.s32.totalorder %v450, %v455
        %vm469 = vcmp.eq.s32.totalorder %v451, %v455
        %vm470 = vcmp.eq.s32.totalorder %v452, %v455
        %vm471 = vcmp.eq.s32.totalorder %v453, %v455
        %v472 = vsub.f32 %v359, 1.0
        %v473 = vsub.f32 %v364, 1.0
        %v474 = vsub.f32 %v369, 1.0
        %v475 = vsub.f32 %v374, 1.0
        %v476 = vsub.f32 %v379, 1.0
        %v477 = vsub.f32 %v384, 1.0
        %v478 = vsub.f32 %v389, 1.0
        %v479 = vsub.f32 %v394, 1.0
        %v480 = vsub.f32 %v399, 1.0
        %v481 = vsub.f32 %v404, 1.0
        %v482 = vsub.f32 %v409, 1.0
        %v483 = vsub.f32 %v414, 1.0
        %v484 = vsub.f32 %v419, 1.0
        %v485 = vsub.f32 %v424, 1.0
        %v486 = vsub.f32 %v429, 1.0
        %v487 = vsub.f32 %v434, 1.0
        %v488 = vmul.f32 %v472, 10.0
        %v489 = vmul.f32 %v473, 10.0
        %v490 = vmul.f32 %v474, 10.0
        %v491 = vmul.f32 %v475, 10.0
        %v492 = vmul.f32 %v476, 10.0
        %v493 = vmul.f32 %v477, 10.0
        %v494 = vmul.f32 %v478, 10.0
        %v495 = vmul.f32 %v479, 10.0
        %v496 = vmul.f32 %v480, 10.0
        %v497 = vmul.f32 %v481, 10.0
        %v498 = vmul.f32 %v482, 10.0
        %v499 = vmul.f32 %v483, 10.0
        %v500 = vmul.f32 %v484, 10.0
        %v501 = vmul.f32 %v485, 10.0
        %v502 = vmul.f32 %v486, 10.0
        %v503 = vmul.f32 %v487, 10.0
        %v504 = vsel %vm456, -1000000.0, %v488
        %v505 = vsel %vm457, -1000000.0, %v489
        %v506 = vsel %vm458, -1000000.0, %v490
        %v507 = vsel %vm459, -1000000.0, %v491
        %v508 = vsel %vm460, -1000000.0, %v492
        %v509 = vsel %vm461, -1000000.0, %v493
        %v510 = vsel %vm462, -1000000.0, %v494
        %v511 = vsel %vm463, -1000000.0, %v495
        %v512 = vsel %vm464, -1000000.0, %v496
        %v513 = vsel %vm465, -1000000.0, %v497
        %v514 = vsel %vm466, -1000000.0, %v498
        %v515 = vsel %vm467, -1000000.0, %v499
        %v516 = vsel %vm468, -1000000.0, %v500
        %v517 = vsel %vm469, -1000000.0, %v501
        %v518 = vsel %vm470, -1000000.0, %v502
        %v519 = vsel %vm471, -1000000.0, %v503
        %v520 = vadd.f32 %v504, 0.0
        %v521 = vadd.f32 %v505, 0.0
        %v522 = vadd.f32 %v506, 0.0
        %v523 = vadd.f32 %v507, 0.0
        %v524 = vadd.f32 %v508, 0.0
        %v525 = vadd.f32 %v509, 0.0
        %v526 = vadd.f32 %v510, 0.0
        %v527 = vadd.f32 %v511, 0.0
        %v528 = vadd.f32 %v512, 0.0
        %v529 = vadd.f32 %v513, 0.0
        %v530 = vadd.f32 %v514, 0.0
        %v531 = vadd.f32 %v515, 0.0
        %v532 = vadd.f32 %v516, 0.0
        %v533 = vadd.f32 %v517, 0.0
        %v534 = vadd.f32 %v518, 0.0
        %v535 = vadd.f32 %v519, 0.0
        %536 = vmax.xlane.f32.xlu0 %v520
        %v537 = vpop.xlane.xlu0 %536
        %538 = vmax.xlane.f32.xlu0 %v521
        %v539 = vpop.xlane.xlu0 %538
        %540 = vmax.xlane.f32.xlu0 %v522
        %v541 = vpop.xlane.xlu0 %540
        %542 = vmax.xlane.f32.xlu0 %v523
        %v543 = vpop.xlane.xlu0 %542
        %544 = vmax.xlane.f32.xlu0 %v524
        %v545 = vpop.xlane.xlu0 %544
        %546 = vmax.xlane.f32.xlu0 %v525
        %v547 = vpop.xlane.xlu0 %546
        %548 = vmax.xlane.f32.xlu0 %v526
        %v549 = vpop.xlane.xlu0 %548
        %550 = vmax.xlane.f32.xlu0 %v527
        %v551 = vpop.xlane.xlu0 %550
        %552 = vmax.xlane.f32.xlu0 %v528
        %v553 = vpop.xlane.xlu0 %552
        %554 = vmax.xlane.f32.xlu0 %v529
        %v555 = vpop.xlane.xlu0 %554
        %556 = vmax.xlane.f32.xlu0 %v530
        %v557 = vpop.xlane.xlu0 %556
        %558 = vmax.xlane.f32.xlu0 %v531
        %v559 = vpop.xlane.xlu0 %558
        %560 = vmax.xlane.f32.xlu0 %v532
        %v561 = vpop.xlane.xlu0 %560
        %562 = vmax.xlane.f32.xlu0 %v533
        %v563 = vpop.xlane.xlu0 %562
        %564 = vmax.xlane.f32.xlu0 %v534
        %v565 = vpop.xlane.xlu0 %564
        %566 = vmax.xlane.f32.xlu0 %v535
        %v567 = vpop.xlane.xlu0 %566
        %v568 = vsub.f32 %v520, %v537
        %v569 = vsub.f32 %v521, %v539
        %v570 = vsub.f32 %v522, %v541
        %v571 = vsub.f32 %v523, %v543
        %v572 = vsub.f32 %v524, %v545
        %v573 = vsub.f32 %v525, %v547
        %v574 = vsub.f32 %v526, %v549
        %v575 = vsub.f32 %v527, %v551
        %v576 = vsub.f32 %v528, %v553
        %v577 = vsub.f32 %v529, %v555
        %v578 = vsub.f32 %v530, %v557
        %v579 = vsub.f32 %v531, %v559
        %v580 = vsub.f32 %v532, %v561
        %v581 = vsub.f32 %v533, %v563
        %v582 = vsub.f32 %v534, %v565
        %v583 = vsub.f32 %v535, %v567
        %v584 = vmul.f32 %v568, 1.442695
        %v585 = vpow.pop %v584
        %v586 = vmul.f32 %v569, 1.442695
        %v587 = vpow.pop %v586
        %v588 = vmul.f32 %v570, 1.442695
        %v589 = vpow.pop %v588
        %v590 = vmul.f32 %v571, 1.442695
        %v591 = vpow.pop %v590
        %v592 = vmul.f32 %v572, 1.442695
        %v593 = vpow.pop %v592
        %v594 = vmul.f32 %v573, 1.442695
        %v595 = vpow.pop %v594
        %v596 = vmul.f32 %v574, 1.442695
        %v597 = vpow.pop %v596
        %v598 = vmul.f32 %v575, 1.442695
        %v599 = vpow.pop %v598
        %v600 = vmul.f32 %v576, 1.442695
        %v601 = vpow.pop %v600
        %v602 = vmul.f32 %v577, 1.442695
        %v603 = vpow.pop %v602
        %v604 = vmul.f32 %v578, 1.442695
        %v605 = vpow.pop %v604
        %v606 = vmul.f32 %v579, 1.442695
        %v607 = vpow.pop %v606
        %v608 = vmul.f32 %v580, 1.442695
        %v609 = vpow.pop %v608
        %v610 = vmul.f32 %v581, 1.442695
        %v611 = vpow.pop %v610
        %v612 = vmul.f32 %v582, 1.442695
        %v613 = vpow.pop %v612
        %v614 = vmul.f32 %v583, 1.442695
        %v615 = vpow.pop %v614
        %616 = vadd.xlane.f32.xlu0 %v585
        %v617 = vpop.xlane.xlu0 %616
        %618 = vadd.xlane.f32.xlu0 %v587
        %v619 = vpop.xlane.xlu0 %618
        %620 = vadd.xlane.f32.xlu0 %v589
        %v621 = vpop.xlane.xlu0 %620
        %622 = vadd.xlane.f32.xlu0 %v591
        %v623 = vpop.xlane.xlu0 %622
        %624 = vadd.xlane.f32.xlu0 %v593
        %v625 = vpop.xlane.xlu0 %624
        %626 = vadd.xlane.f32.xlu0 %v595
        %v627 = vpop.xlane.xlu0 %626
        %628 = vadd.xlane.f32.xlu0 %v597
        %v629 = vpop.xlane.xlu0 %628
        %630 = vadd.xlane.f32.xlu0 %v599
        %v631 = vpop.xlane.xlu0 %630
        %632 = vadd.xlane.f32.xlu0 %v601
        %v633 = vpop.xlane.xlu0 %632
        %634 = vadd.xlane.f32.xlu0 %v603
        %v635 = vpop.xlane.xlu0 %634
        %636 = vadd.xlane.f32.xlu0 %v605
        %v637 = vpop.xlane.xlu0 %636
        %638 = vadd.xlane.f32.xlu0 %v607
        %v639 = vpop.xlane.xlu0 %638
        %640 = vadd.xlane.f32.xlu0 %v609
        %v641 = vpop.xlane.xlu0 %640
        %642 = vadd.xlane.f32.xlu0 %v611
        %v643 = vpop.xlane.xlu0 %642
        %644 = vadd.xlane.f32.xlu0 %v613
        %v645 = vpop.xlane.xlu0 %644
        %646 = vadd.xlane.f32.xlu0 %v615
        %v647 = vpop.xlane.xlu0 %646
        %v648 = vlog2.pop %v617
        %v649 = vmul.f32 %v648, 0.6931472
        %v650 = vlog2.pop %v619
        %v651 = vmul.f32 %v650, 0.6931472
        %v652 = vlog2.pop %v621
        %v653 = vmul.f32 %v652, 0.6931472
        %v654 = vlog2.pop %v623
        %v655 = vmul.f32 %v654, 0.6931472
        %v656 = vlog2.pop %v625
        %v657 = vmul.f32 %v656, 0.6931472
        %v658 = vlog2.pop %v627
        %v659 = vmul.f32 %v658, 0.6931472
        %v660 = vlog2.pop %v629
        %v661 = vmul.f32 %v660, 0.6931472
        %v662 = vlog2.pop %v631
        %v663 = vmul.f32 %v662, 0.6931472
        %v664 = vlog2.pop %v633
        %v665 = vmul.f32 %v664, 0.6931472
        %v666 = vlog2.pop %v635
        %v667 = vmul.f32 %v666, 0.6931472
        %v668 = vlog2.pop %v637
        %v669 = vmul.f32 %v668, 0.6931472
        %v670 = vlog2.pop %v639
        %v671 = vmul.f32 %v670, 0.6931472
        %v672 = vlog2.pop %v641
        %v673 = vmul.f32 %v672, 0.6931472
        %v674 = vlog2.pop %v643
        %v675 = vmul.f32 %v674, 0.6931472
        %v676 = vlog2.pop %v645
        %v677 = vmul.f32 %v676, 0.6931472
        %v678 = vlog2.pop %v647
        %v679 = vmul.f32 %v678, 0.6931472
        %v680 = vadd.f32 %v537, %v649
        %v681 = vadd.f32 %v539, %v651
        %v682 = vadd.f32 %v541, %v653
        %v683 = vadd.f32 %v543, %v655
        %v684 = vadd.f32 %v545, %v657
        %v685 = vadd.f32 %v547, %v659
        %v686 = vadd.f32 %v549, %v661
        %v687 = vadd.f32 %v551, %v663
        %v688 = vadd.f32 %v553, %v665
        %v689 = vadd.f32 %v555, %v667
        %v690 = vadd.f32 %v557, %v669
        %v691 = vadd.f32 %v559, %v671
        %v692 = vadd.f32 %v561, %v673
        %v693 = vadd.f32 %v563, %v675
        %v694 = vadd.f32 %v565, %v677
        %v695 = vadd.f32 %v567, %v679
        %v696 = vsub.f32 0.0, %v680
        %v697 = vsub.f32 0.0, %v681
        %v698 = vsub.f32 0.0, %v682
        %v699 = vsub.f32 0.0, %v683
        %v700 = vsub.f32 0.0, %v684
        %v701 = vsub.f32 0.0, %v685
        %v702 = vsub.f32 0.0, %v686
        %v703 = vsub.f32 0.0, %v687
        %v704 = vsub.f32 0.0, %v688
        %v705 = vsub.f32 0.0, %v689
        %v706 = vsub.f32 0.0, %v690
        %v707 = vsub.f32 0.0, %v691
        %v708 = vsub.f32 0.0, %v692
        %v709 = vsub.f32 0.0, %v693
        %v710 = vsub.f32 0.0, %v694
        %v711 = vsub.f32 0.0, %v695
        %712 = vxpose.xlu0.b32.start [1/16] %v696, 128
        %713 = vxpose.xlu0.b32.cont [2/16] %v697, 128
        %714 = vxpose.xlu0.b32.cont [3/16] %v698, 128
        %715 = vxpose.xlu0.b32.cont [4/16] %v699, 128
        %716 = vxpose.xlu0.b32.cont [5/16] %v700, 128
        %717 = vxpose.xlu0.b32.cont [6/16] %v701, 128
        %718 = vxpose.xlu0.b32.cont [7/16] %v702, 128
        %719 = vxpose.xlu0.b32.cont [8/16] %v703, 128
        %720 = vxpose.xlu0.b32.cont [9/16] %v704, 128
        %721 = vxpose.xlu0.b32.cont [10/16] %v705, 128
        %722 = vxpose.xlu0.b32.cont [11/16] %v706, 128
        %723 = vxpose.xlu0.b32.cont [12/16] %v707, 128
        %724 = vxpose.xlu0.b32.cont [13/16] %v708, 128
        %725 = vxpose.xlu0.b32.cont [14/16] %v709, 128
        %726 = vxpose.xlu0.b32.cont [15/16] %v710, 128
        %727 = vxpose.xlu0.b32.end [16/16] %v711, 128
        %v728 = vpop.trf.xlu0
        %v729 = vpop.trf.xlu0
        %v730 = vpop.trf.xlu0
        %v731 = vpop.trf.xlu0
        %v732 = vpop.trf.xlu0
        %v733 = vpop.trf.xlu0
        %v734 = vpop.trf.xlu0
        %v735 = vpop.trf.xlu0
        %v736 = vpop.trf.xlu0
        %v737 = vpop.trf.xlu0
        %v738 = vpop.trf.xlu0
        %v739 = vpop.trf.xlu0
        %v740 = vpop.trf.xlu0
        %v741 = vpop.trf.xlu0
        %v742 = vpop.trf.xlu0
        %v743 = vpop.trf.xlu0
        %v744 = vlaneseq
        %v745 = vshrl.u32 %v744, 7
        %v746 = vsub.s32 0, %v745
        %v747 = vrot.slane %v728, %v746
        %v748 = vadd.f32 %v504, %v747
        %v749 = vadd.f32 %v505, %v747
        %v750 = vadd.f32 %v506, %v747
        %v751 = vadd.f32 %v507, %v747
        %v752 = vadd.f32 %v508, %v747
        %v753 = vadd.f32 %v509, %v747
        %v754 = vadd.f32 %v510, %v747
        %v755 = vadd.f32 %v511, %v747
        %v756 = vadd.f32 %v512, %v747
        %v757 = vadd.f32 %v513, %v747
        %v758 = vadd.f32 %v514, %v747
        %v759 = vadd.f32 %v515, %v747
        %v760 = vadd.f32 %v516, %v747
        %v761 = vadd.f32 %v517, %v747
        %v762 = vadd.f32 %v518, %v747
        %v763 = vadd.f32 %v519, %v747
        %764 = vmax.xlane.f32.xlu0 %v748
        %v765 = vpop.xlane.xlu0 %764
        %766 = vmax.xlane.f32.xlu0 %v749
        %v767 = vpop.xlane.xlu0 %766
        %768 = vmax.xlane.f32.xlu0 %v750
        %v769 = vpop.xlane.xlu0 %768
        %770 = vmax.xlane.f32.xlu0 %v751
        %v771 = vpop.xlane.xlu0 %770
        %772 = vmax.xlane.f32.xlu0 %v752
        %v773 = vpop.xlane.xlu0 %772
        %774 = vmax.xlane.f32.xlu0 %v753
        %v775 = vpop.xlane.xlu0 %774
        %776 = vmax.xlane.f32.xlu0 %v754
        %v777 = vpop.xlane.xlu0 %776
        %778 = vmax.xlane.f32.xlu0 %v755
        %v779 = vpop.xlane.xlu0 %778
        %780 = vmax.xlane.f32.xlu0 %v756
        %v781 = vpop.xlane.xlu0 %780
        %782 = vmax.xlane.f32.xlu0 %v757
        %v783 = vpop.xlane.xlu0 %782
        %784 = vmax.xlane.f32.xlu0 %v758
        %v785 = vpop.xlane.xlu0 %784
        %786 = vmax.xlane.f32.xlu0 %v759
        %v787 = vpop.xlane.xlu0 %786
        %788 = vmax.xlane.f32.xlu0 %v760
        %v789 = vpop.xlane.xlu0 %788
        %790 = vmax.xlane.f32.xlu0 %v761
        %v791 = vpop.xlane.xlu0 %790
        %792 = vmax.xlane.f32.xlu0 %v762
        %v793 = vpop.xlane.xlu0 %792
        %794 = vmax.xlane.f32.xlu0 %v763
        %v795 = vpop.xlane.xlu0 %794
        %v796 = vsub.f32 %v748, %v765
        %v797 = vsub.f32 %v749, %v767
        %v798 = vsub.f32 %v750, %v769
        %v799 = vsub.f32 %v751, %v771
        %v800 = vsub.f32 %v752, %v773
        %v801 = vsub.f32 %v753, %v775
        %v802 = vsub.f32 %v754, %v777
        %v803 = vsub.f32 %v755, %v779
        %v804 = vsub.f32 %v756, %v781
        %v805 = vsub.f32 %v757, %v783
        %v806 = vsub.f32 %v758, %v785
        %v807 = vsub.f32 %v759, %v787
        %v808 = vsub.f32 %v760, %v789
        %v809 = vsub.f32 %v761, %v791
        %v810 = vsub.f32 %v762, %v793
        %v811 = vsub.f32 %v763, %v795
        %v812 = vmul.f32 %v796, 1.442695
        %v813 = vpow.pop %v812
        %v814 = vmul.f32 %v797, 1.442695
        %v815 = vpow.pop %v814
        %v816 = vmul.f32 %v798, 1.442695
        %v817 = vpow.pop %v816
        %v818 = vmul.f32 %v799, 1.442695
        %v819 = vpow.pop %v818
        %v820 = vmul.f32 %v800, 1.442695
        %v821 = vpow.pop %v820
        %v822 = vmul.f32 %v801, 1.442695
        %v823 = vpow.pop %v822
        %v824 = vmul.f32 %v802, 1.442695
        %v825 = vpow.pop %v824
        %v826 = vmul.f32 %v803, 1.442695
        %v827 = vpow.pop %v826
        %v828 = vmul.f32 %v804, 1.442695
        %v829 = vpow.pop %v828
        %v830 = vmul.f32 %v805, 1.442695
        %v831 = vpow.pop %v830
        %v832 = vmul.f32 %v806, 1.442695
        %v833 = vpow.pop %v832
        %v834 = vmul.f32 %v807, 1.442695
        %v835 = vpow.pop %v834
        %v836 = vmul.f32 %v808, 1.442695
        %v837 = vpow.pop %v836
        %v838 = vmul.f32 %v809, 1.442695
        %v839 = vpow.pop %v838
        %v840 = vmul.f32 %v810, 1.442695
        %v841 = vpow.pop %v840
        %v842 = vmul.f32 %v811, 1.442695
        %v843 = vpow.pop %v842
        %844 = vadd.xlane.f32.xlu0 %v813
        %v845 = vpop.xlane.xlu0 %844
        %846 = vadd.xlane.f32.xlu0 %v815
        %v847 = vpop.xlane.xlu0 %846
        %848 = vadd.xlane.f32.xlu0 %v817
        %v849 = vpop.xlane.xlu0 %848
        %850 = vadd.xlane.f32.xlu0 %v819
        %v851 = vpop.xlane.xlu0 %850
        %852 = vadd.xlane.f32.xlu0 %v821
        %v853 = vpop.xlane.xlu0 %852
        %854 = vadd.xlane.f32.xlu0 %v823
        %v855 = vpop.xlane.xlu0 %854
        %856 = vadd.xlane.f32.xlu0 %v825
        %v857 = vpop.xlane.xlu0 %856
        %858 = vadd.xlane.f32.xlu0 %v827
        %v859 = vpop.xlane.xlu0 %858
        %860 = vadd.xlane.f32.xlu0 %v829
        %v861 = vpop.xlane.xlu0 %860
        %862 = vadd.xlane.f32.xlu0 %v831
        %v863 = vpop.xlane.xlu0 %862
        %864 = vadd.xlane.f32.xlu0 %v833
        %v865 = vpop.xlane.xlu0 %864
        %866 = vadd.xlane.f32.xlu0 %v835
        %v867 = vpop.xlane.xlu0 %866
        %868 = vadd.xlane.f32.xlu0 %v837
        %v869 = vpop.xlane.xlu0 %868
        %870 = vadd.xlane.f32.xlu0 %v839
        %v871 = vpop.xlane.xlu0 %870
        %872 = vadd.xlane.f32.xlu0 %v841
        %v873 = vpop.xlane.xlu0 %872
        %874 = vadd.xlane.f32.xlu0 %v843
        %v875 = vpop.xlane.xlu0 %874
        %v876 = vlog2.pop %v845
        %v877 = vmul.f32 %v876, 0.6931472
        %v878 = vlog2.pop %v847
        %v879 = vmul.f32 %v878, 0.6931472
        %v880 = vlog2.pop %v849
        %v881 = vmul.f32 %v880, 0.6931472
        %v882 = vlog2.pop %v851
        %v883 = vmul.f32 %v882, 0.6931472
        %v884 = vlog2.pop %v853
        %v885 = vmul.f32 %v884, 0.6931472
        %v886 = vlog2.pop %v855
        %v887 = vmul.f32 %v886, 0.6931472
        %v888 = vlog2.pop %v857
        %v889 = vmul.f32 %v888, 0.6931472
        %v890 = vlog2.pop %v859
        %v891 = vmul.f32 %v890, 0.6931472
        %v892 = vlog2.pop %v861
        %v893 = vmul.f32 %v892, 0.6931472
        %v894 = vlog2.pop %v863
        %v895 = vmul.f32 %v894, 0.6931472
        %v896 = vlog2.pop %v865
        %v897 = vmul.f32 %v896, 0.6931472
        %v898 = vlog2.pop %v867
        %v899 = vmul.f32 %v898, 0.6931472
        %v900 = vlog2.pop %v869
        %v901 = vmul.f32 %v900, 0.6931472
        %v902 = vlog2.pop %v871
        %v903 = vmul.f32 %v902, 0.6931472
        %v904 = vlog2.pop %v873
        %v905 = vmul.f32 %v904, 0.6931472
        %v906 = vlog2.pop %v875
        %v907 = vmul.f32 %v906, 0.6931472
        %v908 = vadd.f32 %v765, %v877
        %v909 = vadd.f32 %v767, %v879
        %v910 = vadd.f32 %v769, %v881
        %v911 = vadd.f32 %v771, %v883
        %v912 = vadd.f32 %v773, %v885
        %v913 = vadd.f32 %v775, %v887
        %v914 = vadd.f32 %v777, %v889
        %v915 = vadd.f32 %v779, %v891
        %v916 = vadd.f32 %v781, %v893
        %v917 = vadd.f32 %v783, %v895
        %v918 = vadd.f32 %v785, %v897
        %v919 = vadd.f32 %v787, %v899
        %v920 = vadd.f32 %v789, %v901
        %v921 = vadd.f32 %v791, %v903
        %v922 = vadd.f32 %v793, %v905
        %v923 = vadd.f32 %v795, %v907
        %v924 = vsub.f32 0.0, %v908
        %v925 = vsub.f32 0.0, %v909
        %v926 = vsub.f32 0.0, %v910
        %v927 = vsub.f32 0.0, %v911
        %v928 = vsub.f32 0.0, %v912
        %v929 = vsub.f32 0.0, %v913
        %v930 = vsub.f32 0.0, %v914
        %v931 = vsub.f32 0.0, %v915
        %v932 = vsub.f32 0.0, %v916
        %v933 = vsub.f32 0.0, %v917
        %v934 = vsub.f32 0.0, %v918
        %v935 = vsub.f32 0.0, %v919
        %v936 = vsub.f32 0.0, %v920
        %v937 = vsub.f32 0.0, %v921
        %v938 = vsub.f32 0.0, %v922
        %v939 = vsub.f32 0.0, %v923
        %940 = vxpose.xlu0.b32.start [1/16] %v924, 128
        %941 = vxpose.xlu0.b32.cont [2/16] %v925, 128
        %942 = vxpose.xlu0.b32.cont [3/16] %v926, 128
        %943 = vxpose.xlu0.b32.cont [4/16] %v927, 128
        %944 = vxpose.xlu0.b32.cont [5/16] %v928, 128
        %945 = vxpose.xlu0.b32.cont [6/16] %v929, 128
        %946 = vxpose.xlu0.b32.cont [7/16] %v930, 128
        %947 = vxpose.xlu0.b32.cont [8/16] %v931, 128
        %948 = vxpose.xlu0.b32.cont [9/16] %v932, 128
        %949 = vxpose.xlu0.b32.cont [10/16] %v933, 128
        %950 = vxpose.xlu0.b32.cont [11/16] %v934, 128
        %951 = vxpose.xlu0.b32.cont [12/16] %v935, 128
        %952 = vxpose.xlu0.b32.cont [13/16] %v936, 128
        %953 = vxpose.xlu0.b32.cont [14/16] %v937, 128
        %954 = vxpose.xlu0.b32.cont [15/16] %v938, 128
        %955 = vxpose.xlu0.b32.end [16/16] %v939, 128
        %v956 = vpop.trf.xlu0
        %v957 = vpop.trf.xlu0
        %v958 = vpop.trf.xlu0
        %v959 = vpop.trf.xlu0
        %v960 = vpop.trf.xlu0
        %v961 = vpop.trf.xlu0
        %v962 = vpop.trf.xlu0
        %v963 = vpop.trf.xlu0
        %v964 = vpop.trf.xlu0
        %v965 = vpop.trf.xlu0
        %v966 = vpop.trf.xlu0
        %v967 = vpop.trf.xlu0
        %v968 = vpop.trf.xlu0
        %v969 = vpop.trf.xlu0
        %v970 = vpop.trf.xlu0
        %v971 = vpop.trf.xlu0
        %v972 = vlaneseq
        %v973 = vshrl.u32 %v972, 7
        %v974 = vsub.s32 0, %v973
        %v975 = vrot.slane %v956, %v974
        %v976 = vadd.f32 %v504, %v975
        %v977 = vadd.f32 %v505, %v975
        %v978 = vadd.f32 %v506, %v975
        %v979 = vadd.f32 %v507, %v975
        %v980 = vadd.f32 %v508, %v975
        %v981 = vadd.f32 %v509, %v975
        %v982 = vadd.f32 %v510, %v975
        %v983 = vadd.f32 %v511, %v975
        %v984 = vadd.f32 %v512, %v975
        %v985 = vadd.f32 %v513, %v975
        %v986 = vadd.f32 %v514, %v975
        %v987 = vadd.f32 %v515, %v975
        %v988 = vadd.f32 %v516, %v975
        %v989 = vadd.f32 %v517, %v975
        %v990 = vadd.f32 %v518, %v975
        %v991 = vadd.f32 %v519, %v975
        %992 = vmax.xlane.f32.xlu0 %v976
        %v993 = vpop.xlane.xlu0 %992
        %994 = vmax.xlane.f32.xlu0 %v977
        %v995 = vpop.xlane.xlu0 %994
        %996 = vmax.xlane.f32.xlu0 %v978
        %v997 = vpop.xlane.xlu0 %996
        %998 = vmax.xlane.f32.xlu0 %v979
        %v999 = vpop.xlane.xlu0 %998
        %1000 = vmax.xlane.f32.xlu0 %v980
        %v1001 = vpop.xlane.xlu0 %1000
        %1002 = vmax.xlane.f32.xlu0 %v981
        %v1003 = vpop.xlane.xlu0 %1002
        %1004 = vmax.xlane.f32.xlu0 %v982
        %v1005 = vpop.xlane.xlu0 %1004
        %1006 = vmax.xlane.f32.xlu0 %v983
        %v1007 = vpop.xlane.xlu0 %1006
        %1008 = vmax.xlane.f32.xlu0 %v984
        %v1009 = vpop.xlane.xlu0 %1008
        %1010 = vmax.xlane.f32.xlu0 %v985
        %v1011 = vpop.xlane.xlu0 %1010
        %1012 = vmax.xlane.f32.xlu0 %v986
        %v1013 = vpop.xlane.xlu0 %1012
        %1014 = vmax.xlane.f32.xlu0 %v987
        %v1015 = vpop.xlane.xlu0 %1014
        %1016 = vmax.xlane.f32.xlu0 %v988
        %v1017 = vpop.xlane.xlu0 %1016
        %1018 = vmax.xlane.f32.xlu0 %v989
        %v1019 = vpop.xlane.xlu0 %1018
        %1020 = vmax.xlane.f32.xlu0 %v990
        %v1021 = vpop.xlane.xlu0 %1020
        %1022 = vmax.xlane.f32.xlu0 %v991
        %v1023 = vpop.xlane.xlu0 %1022
        %v1024 = vsub.f32 %v976, %v993
        %v1025 = vsub.f32 %v977, %v995
        %v1026 = vsub.f32 %v978, %v997
        %v1027 = vsub.f32 %v979, %v999
        %v1028 = vsub.f32 %v980, %v1001
        %v1029 = vsub.f32 %v981, %v1003
        %v1030 = vsub.f32 %v982, %v1005
        %v1031 = vsub.f32 %v983, %v1007
        %v1032 = vsub.f32 %v984, %v1009
        %v1033 = vsub.f32 %v985, %v1011
        %v1034 = vsub.f32 %v986, %v1013
        %v1035 = vsub.f32 %v987, %v1015
        %v1036 = vsub.f32 %v988, %v1017
        %v1037 = vsub.f32 %v989, %v1019
        %v1038 = vsub.f32 %v990, %v1021
        %v1039 = vsub.f32 %v991, %v1023
        %v1040 = vmul.f32 %v1024, 1.442695
        %v1041 = vpow.pop %v1040
        %v1042 = vmul.f32 %v1025, 1.442695
        %v1043 = vpow.pop %v1042
        %v1044 = vmul.f32 %v1026, 1.442695
        %v1045 = vpow.pop %v1044
        %v1046 = vmul.f32 %v1027, 1.442695
        %v1047 = vpow.pop %v1046
        %v1048 = vmul.f32 %v1028, 1.442695
        %v1049 = vpow.pop %v1048
        %v1050 = vmul.f32 %v1029, 1.442695
        %v1051 = vpow.pop %v1050
        %v1052 = vmul.f32 %v1030, 1.442695
        %v1053 = vpow.pop %v1052
        %v1054 = vmul.f32 %v1031, 1.442695
        %v1055 = vpow.pop %v1054
        %v1056 = vmul.f32 %v1032, 1.442695
        %v1057 = vpow.pop %v1056
        %v1058 = vmul.f32 %v1033, 1.442695
        %v1059 = vpow.pop %v1058
        %v1060 = vmul.f32 %v1034, 1.442695
        %v1061 = vpow.pop %v1060
        %v1062 = vmul.f32 %v1035, 1.442695
        %v1063 = vpow.pop %v1062
        %v1064 = vmul.f32 %v1036, 1.442695
        %v1065 = vpow.pop %v1064
        %v1066 = vmul.f32 %v1037, 1.442695
        %v1067 = vpow.pop %v1066
        %v1068 = vmul.f32 %v1038, 1.442695
        %v1069 = vpow.pop %v1068
        %v1070 = vmul.f32 %v1039, 1.442695
        %v1071 = vpow.pop %v1070
        %1072 = vadd.xlane.f32.xlu0 %v1041
        %v1073 = vpop.xlane.xlu0 %1072
        %1074 = vadd.xlane.f32.xlu0 %v1043
        %v1075 = vpop.xlane.xlu0 %1074
        %1076 = vadd.xlane.f32.xlu0 %v1045
        %v1077 = vpop.xlane.xlu0 %1076
        %1078 = vadd.xlane.f32.xlu0 %v1047
        %v1079 = vpop.xlane.xlu0 %1078
        %1080 = vadd.xlane.f32.xlu0 %v1049
        %v1081 = vpop.xlane.xlu0 %1080
        %1082 = vadd.xlane.f32.xlu0 %v1051
        %v1083 = vpop.xlane.xlu0 %1082
        %1084 = vadd.xlane.f32.xlu0 %v1053
        %v1085 = vpop.xlane.xlu0 %1084
        %1086 = vadd.xlane.f32.xlu0 %v1055
        %v1087 = vpop.xlane.xlu0 %1086
        %1088 = vadd.xlane.f32.xlu0 %v1057
        %v1089 = vpop.xlane.xlu0 %1088
        %1090 = vadd.xlane.f32.xlu0 %v1059
        %v1091 = vpop.xlane.xlu0 %1090
        %1092 = vadd.xlane.f32.xlu0 %v1061
        %v1093 = vpop.xlane.xlu0 %1092
        %1094 = vadd.xlane.f32.xlu0 %v1063
        %v1095 = vpop.xlane.xlu0 %1094
        %1096 = vadd.xlane.f32.xlu0 %v1065
        %v1097 = vpop.xlane.xlu0 %1096
        %1098 = vadd.xlane.f32.xlu0 %v1067
        %v1099 = vpop.xlane.xlu0 %1098
        %1100 = vadd.xlane.f32.xlu0 %v1069
        %v1101 = vpop.xlane.xlu0 %1100
        %1102 = vadd.xlane.f32.xlu0 %v1071
        %v1103 = vpop.xlane.xlu0 %1102
        %v1104 = vlog2.pop %v1073
        %v1105 = vmul.f32 %v1104, 0.6931472
        %v1106 = vlog2.pop %v1075
        %v1107 = vmul.f32 %v1106, 0.6931472
        %v1108 = vlog2.pop %v1077
        %v1109 = vmul.f32 %v1108, 0.6931472
        %v1110 = vlog2.pop %v1079
        %v1111 = vmul.f32 %v1110, 0.6931472
        %v1112 = vlog2.pop %v1081
        %v1113 = vmul.f32 %v1112, 0.6931472
        %v1114 = vlog2.pop %v1083
        %v1115 = vmul.f32 %v1114, 0.6931472
        %v1116 = vlog2.pop %v1085
        %v1117 = vmul.f32 %v1116, 0.6931472
        %v1118 = vlog2.pop %v1087
        %v1119 = vmul.f32 %v1118, 0.6931472
        %v1120 = vlog2.pop %v1089
        %v1121 = vmul.f32 %v1120, 0.6931472
        %v1122 = vlog2.pop %v1091
        %v1123 = vmul.f32 %v1122, 0.6931472
        %v1124 = vlog2.pop %v1093
        %v1125 = vmul.f32 %v1124, 0.6931472
        %v1126 = vlog2.pop %v1095
        %v1127 = vmul.f32 %v1126, 0.6931472
        %v1128 = vlog2.pop %v1097
        %v1129 = vmul.f32 %v1128, 0.6931472
        %v1130 = vlog2.pop %v1099
        %v1131 = vmul.f32 %v1130, 0.6931472
        %v1132 = vlog2.pop %v1101
        %v1133 = vmul.f32 %v1132, 0.6931472
        %v1134 = vlog2.pop %v1103
        %v1135 = vmul.f32 %v1134, 0.6931472
        %v1136 = vadd.f32 %v993, %v1105
        %v1137 = vadd.f32 %v995, %v1107
        %v1138 = vadd.f32 %v997, %v1109
        %v1139 = vadd.f32 %v999, %v1111
        %v1140 = vadd.f32 %v1001, %v1113
        %v1141 = vadd.f32 %v1003, %v1115
        %v1142 = vadd.f32 %v1005, %v1117
        %v1143 = vadd.f32 %v1007, %v1119
        %v1144 = vadd.f32 %v1009, %v1121
        %v1145 = vadd.f32 %v1011, %v1123
        %v1146 = vadd.f32 %v1013, %v1125
        %v1147 = vadd.f32 %v1015, %v1127
        %v1148 = vadd.f32 %v1017, %v1129
        %v1149 = vadd.f32 %v1019, %v1131
        %v1150 = vadd.f32 %v1021, %v1133
        %v1151 = vadd.f32 %v1023, %v1135
        %v1152 = vsub.f32 0.0, %v1136
        %v1153 = vsub.f32 0.0, %v1137
        %v1154 = vsub.f32 0.0, %v1138
        %v1155 = vsub.f32 0.0, %v1139
        %v1156 = vsub.f32 0.0, %v1140
        %v1157 = vsub.f32 0.0, %v1141
        %v1158 = vsub.f32 0.0, %v1142
        %v1159 = vsub.f32 0.0, %v1143
        %v1160 = vsub.f32 0.0, %v1144
        %v1161 = vsub.f32 0.0, %v1145
        %v1162 = vsub.f32 0.0, %v1146
        %v1163 = vsub.f32 0.0, %v1147
        %v1164 = vsub.f32 0.0, %v1148
        %v1165 = vsub.f32 0.0, %v1149
        %v1166 = vsub.f32 0.0, %v1150
        %v1167 = vsub.f32 0.0, %v1151
        %1168 = vxpose.xlu0.b32.start [1/16] %v1152, 128
        %1169 = vxpose.xlu0.b32.cont [2/16] %v1153, 128
        %1170 = vxpose.xlu0.b32.cont [3/16] %v1154, 128
        %1171 = vxpose.xlu0.b32.cont [4/16] %v1155, 128
        %1172 = vxpose.xlu0.b32.cont [5/16] %v1156, 128
        %1173 = vxpose.xlu0.b32.cont [6/16] %v1157, 128
        %1174 = vxpose.xlu0.b32.cont [7/16] %v1158, 128
        %1175 = vxpose.xlu0.b32.cont [8/16] %v1159, 128
        %1176 = vxpose.xlu0.b32.cont [9/16] %v1160, 128
        %1177 = vxpose.xlu0.b32.cont [10/16] %v1161, 128
        %1178 = vxpose.xlu0.b32.cont [11/16] %v1162, 128
        %1179 = vxpose.xlu0.b32.cont [12/16] %v1163, 128
        %1180 = vxpose.xlu0.b32.cont [13/16] %v1164, 128
        %1181 = vxpose.xlu0.b32.cont [14/16] %v1165, 128
        %1182 = vxpose.xlu0.b32.cont [15/16] %v1166, 128
        %1183 = vxpose.xlu0.b32.end [16/16] %v1167, 128
        %v1184 = vpop.trf.xlu0
        %v1185 = vpop.trf.xlu0
        %v1186 = vpop.trf.xlu0
        %v1187 = vpop.trf.xlu0
        %v1188 = vpop.trf.xlu0
        %v1189 = vpop.trf.xlu0
        %v1190 = vpop.trf.xlu0
        %v1191 = vpop.trf.xlu0
        %v1192 = vpop.trf.xlu0
        %v1193 = vpop.trf.xlu0
        %v1194 = vpop.trf.xlu0
        %v1195 = vpop.trf.xlu0
        %v1196 = vpop.trf.xlu0
        %v1197 = vpop.trf.xlu0
        %v1198 = vpop.trf.xlu0
        %v1199 = vpop.trf.xlu0
        %v1200 = vlaneseq
        %v1201 = vshrl.u32 %v1200, 7
        %v1202 = vsub.s32 0, %v1201
        %v1203 = vrot.slane %v1184, %v1202
        %v1204 = vadd.f32 %v504, %v1203
        %v1205 = vadd.f32 %v505, %v1203
        %v1206 = vadd.f32 %v506, %v1203
        %v1207 = vadd.f32 %v507, %v1203
        %v1208 = vadd.f32 %v508, %v1203
        %v1209 = vadd.f32 %v509, %v1203
        %v1210 = vadd.f32 %v510, %v1203
        %v1211 = vadd.f32 %v511, %v1203
        %v1212 = vadd.f32 %v512, %v1203
        %v1213 = vadd.f32 %v513, %v1203
        %v1214 = vadd.f32 %v514, %v1203
        %v1215 = vadd.f32 %v515, %v1203
        %v1216 = vadd.f32 %v516, %v1203
        %v1217 = vadd.f32 %v517, %v1203
        %v1218 = vadd.f32 %v518, %v1203
        %v1219 = vadd.f32 %v519, %v1203
        %1220 = vmax.xlane.f32.xlu0 %v1204
        %v1221 = vpop.xlane.xlu0 %1220
        %1222 = vmax.xlane.f32.xlu0 %v1205
        %v1223 = vpop.xlane.xlu0 %1222
        %1224 = vmax.xlane.f32.xlu0 %v1206
        %v1225 = vpop.xlane.xlu0 %1224
        %1226 = vmax.xlane.f32.xlu0 %v1207
        %v1227 = vpop.xlane.xlu0 %1226
        %1228 = vmax.xlane.f32.xlu0 %v1208
        %v1229 = vpop.xlane.xlu0 %1228
        %1230 = vmax.xlane.f32.xlu0 %v1209
        %v1231 = vpop.xlane.xlu0 %1230
        %1232 = vmax.xlane.f32.xlu0 %v1210
        %v1233 = vpop.xlane.xlu0 %1232
        %1234 = vmax.xlane.f32.xlu0 %v1211
        %v1235 = vpop.xlane.xlu0 %1234
        %1236 = vmax.xlane.f32.xlu0 %v1212
        %v1237 = vpop.xlane.xlu0 %1236
        %1238 = vmax.xlane.f32.xlu0 %v1213
        %v1239 = vpop.xlane.xlu0 %1238
        %1240 = vmax.xlane.f32.xlu0 %v1214
        %v1241 = vpop.xlane.xlu0 %1240
        %1242 = vmax.xlane.f32.xlu0 %v1215
        %v1243 = vpop.xlane.xlu0 %1242
        %1244 = vmax.xlane.f32.xlu0 %v1216
        %v1245 = vpop.xlane.xlu0 %1244
        %1246 = vmax.xlane.f32.xlu0 %v1217
        %v1247 = vpop.xlane.xlu0 %1246
        %1248 = vmax.xlane.f32.xlu0 %v1218
        %v1249 = vpop.xlane.xlu0 %1248
        %1250 = vmax.xlane.f32.xlu0 %v1219
        %v1251 = vpop.xlane.xlu0 %1250
        %v1252 = vsub.f32 %v1204, %v1221
        %v1253 = vsub.f32 %v1205, %v1223
        %v1254 = vsub.f32 %v1206, %v1225
        %v1255 = vsub.f32 %v1207, %v1227
        %v1256 = vsub.f32 %v1208, %v1229
        %v1257 = vsub.f32 %v1209, %v1231
        %v1258 = vsub.f32 %v1210, %v1233
        %v1259 = vsub.f32 %v1211, %v1235
        %v1260 = vsub.f32 %v1212, %v1237
        %v1261 = vsub.f32 %v1213, %v1239
        %v1262 = vsub.f32 %v1214, %v1241
        %v1263 = vsub.f32 %v1215, %v1243
        %v1264 = vsub.f32 %v1216, %v1245
        %v1265 = vsub.f32 %v1217, %v1247
        %v1266 = vsub.f32 %v1218, %v1249
        %v1267 = vsub.f32 %v1219, %v1251
        %v1268 = vmul.f32 %v1252, 1.442695
        %v1269 = vpow.pop %v1268
        %v1270 = vmul.f32 %v1253, 1.442695
        %v1271 = vpow.pop %v1270
        %v1272 = vmul.f32 %v1254, 1.442695
        %v1273 = vpow.pop %v1272
        %v1274 = vmul.f32 %v1255, 1.442695
        %v1275 = vpow.pop %v1274
        %v1276 = vmul.f32 %v1256, 1.442695
        %v1277 = vpow.pop %v1276
        %v1278 = vmul.f32 %v1257, 1.442695
        %v1279 = vpow.pop %v1278
        %v1280 = vmul.f32 %v1258, 1.442695
        %v1281 = vpow.pop %v1280
        %v1282 = vmul.f32 %v1259, 1.442695
        %v1283 = vpow.pop %v1282
        %v1284 = vmul.f32 %v1260, 1.442695
        %v1285 = vpow.pop %v1284
        %v1286 = vmul.f32 %v1261, 1.442695
        %v1287 = vpow.pop %v1286
        %v1288 = vmul.f32 %v1262, 1.442695
        %v1289 = vpow.pop %v1288
        %v1290 = vmul.f32 %v1263, 1.442695
        %v1291 = vpow.pop %v1290
        %v1292 = vmul.f32 %v1264, 1.442695
        %v1293 = vpow.pop %v1292
        %v1294 = vmul.f32 %v1265, 1.442695
        %v1295 = vpow.pop %v1294
        %v1296 = vmul.f32 %v1266, 1.442695
        %v1297 = vpow.pop %v1296
        %v1298 = vmul.f32 %v1267, 1.442695
        %v1299 = vpow.pop %v1298
        %1300 = vadd.xlane.f32.xlu0 %v1269
        %v1301 = vpop.xlane.xlu0 %1300
        %1302 = vadd.xlane.f32.xlu0 %v1271
        %v1303 = vpop.xlane.xlu0 %1302
        %1304 = vadd.xlane.f32.xlu0 %v1273
        %v1305 = vpop.xlane.xlu0 %1304
        %1306 = vadd.xlane.f32.xlu0 %v1275
        %v1307 = vpop.xlane.xlu0 %1306
        %1308 = vadd.xlane.f32.xlu0 %v1277
        %v1309 = vpop.xlane.xlu0 %1308
        %1310 = vadd.xlane.f32.xlu0 %v1279
        %v1311 = vpop.xlane.xlu0 %1310
        %1312 = vadd.xlane.f32.xlu0 %v1281
        %v1313 = vpop.xlane.xlu0 %1312
        %1314 = vadd.xlane.f32.xlu0 %v1283
        %v1315 = vpop.xlane.xlu0 %1314
        %1316 = vadd.xlane.f32.xlu0 %v1285
        %v1317 = vpop.xlane.xlu0 %1316
        %1318 = vadd.xlane.f32.xlu0 %v1287
        %v1319 = vpop.xlane.xlu0 %1318
        %1320 = vadd.xlane.f32.xlu0 %v1289
        %v1321 = vpop.xlane.xlu0 %1320
        %1322 = vadd.xlane.f32.xlu0 %v1291
        %v1323 = vpop.xlane.xlu0 %1322
        %1324 = vadd.xlane.f32.xlu0 %v1293
        %v1325 = vpop.xlane.xlu0 %1324
        %1326 = vadd.xlane.f32.xlu0 %v1295
        %v1327 = vpop.xlane.xlu0 %1326
        %1328 = vadd.xlane.f32.xlu0 %v1297
        %v1329 = vpop.xlane.xlu0 %1328
        %1330 = vadd.xlane.f32.xlu0 %v1299
        %v1331 = vpop.xlane.xlu0 %1330
        %v1332 = vlog2.pop %v1301
        %v1333 = vmul.f32 %v1332, 0.6931472
        %v1334 = vlog2.pop %v1303
        %v1335 = vmul.f32 %v1334, 0.6931472
        %v1336 = vlog2.pop %v1305
        %v1337 = vmul.f32 %v1336, 0.6931472
        %v1338 = vlog2.pop %v1307
        %v1339 = vmul.f32 %v1338, 0.6931472
        %v1340 = vlog2.pop %v1309
        %v1341 = vmul.f32 %v1340, 0.6931472
        %v1342 = vlog2.pop %v1311
        %v1343 = vmul.f32 %v1342, 0.6931472
        %v1344 = vlog2.pop %v1313
        %v1345 = vmul.f32 %v1344, 0.6931472
        %v1346 = vlog2.pop %v1315
        %v1347 = vmul.f32 %v1346, 0.6931472
        %v1348 = vlog2.pop %v1317
        %v1349 = vmul.f32 %v1348, 0.6931472
        %v1350 = vlog2.pop %v1319
        %v1351 = vmul.f32 %v1350, 0.6931472
        %v1352 = vlog2.pop %v1321
        %v1353 = vmul.f32 %v1352, 0.6931472
        %v1354 = vlog2.pop %v1323
        %v1355 = vmul.f32 %v1354, 0.6931472
        %v1356 = vlog2.pop %v1325
        %v1357 = vmul.f32 %v1356, 0.6931472
        %v1358 = vlog2.pop %v1327
        %v1359 = vmul.f32 %v1358, 0.6931472
        %v1360 = vlog2.pop %v1329
        %v1361 = vmul.f32 %v1360, 0.6931472
        %v1362 = vlog2.pop %v1331
        %v1363 = vmul.f32 %v1362, 0.6931472
        %v1364 = vadd.f32 %v1221, %v1333
        %v1365 = vadd.f32 %v1223, %v1335
        %v1366 = vadd.f32 %v1225, %v1337
        %v1367 = vadd.f32 %v1227, %v1339
        %v1368 = vadd.f32 %v1229, %v1341
        %v1369 = vadd.f32 %v1231, %v1343
        %v1370 = vadd.f32 %v1233, %v1345
        %v1371 = vadd.f32 %v1235, %v1347
        %v1372 = vadd.f32 %v1237, %v1349
        %v1373 = vadd.f32 %v1239, %v1351
        %v1374 = vadd.f32 %v1241, %v1353
        %v1375 = vadd.f32 %v1243, %v1355
        %v1376 = vadd.f32 %v1245, %v1357
        %v1377 = vadd.f32 %v1247, %v1359
        %v1378 = vadd.f32 %v1249, %v1361
        %v1379 = vadd.f32 %v1251, %v1363
        %v1380 = vsub.f32 0.0, %v1364
        %v1381 = vsub.f32 0.0, %v1365
        %v1382 = vsub.f32 0.0, %v1366
        %v1383 = vsub.f32 0.0, %v1367
        %v1384 = vsub.f32 0.0, %v1368
        %v1385 = vsub.f32 0.0, %v1369
        %v1386 = vsub.f32 0.0, %v1370
        %v1387 = vsub.f32 0.0, %v1371
        %v1388 = vsub.f32 0.0, %v1372
        %v1389 = vsub.f32 0.0, %v1373
        %v1390 = vsub.f32 0.0, %v1374
        %v1391 = vsub.f32 0.0, %v1375
        %v1392 = vsub.f32 0.0, %v1376
        %v1393 = vsub.f32 0.0, %v1377
        %v1394 = vsub.f32 0.0, %v1378
        %v1395 = vsub.f32 0.0, %v1379
        %1396 = vxpose.xlu0.b32.start [1/16] %v1380, 128
        %1397 = vxpose.xlu0.b32.cont [2/16] %v1381, 128
        %1398 = vxpose.xlu0.b32.cont [3/16] %v1382, 128
        %1399 = vxpose.xlu0.b32.cont [4/16] %v1383, 128
        %1400 = vxpose.xlu0.b32.cont [5/16] %v1384, 128
        %1401 = vxpose.xlu0.b32.cont [6/16] %v1385, 128
        %1402 = vxpose.xlu0.b32.cont [7/16] %v1386, 128
        %1403 = vxpose.xlu0.b32.cont [8/16] %v1387, 128
        %1404 = vxpose.xlu0.b32.cont [9/16] %v1388, 128
        %1405 = vxpose.xlu0.b32.cont [10/16] %v1389, 128
        %1406 = vxpose.xlu0.b32.cont [11/16] %v1390, 128
        %1407 = vxpose.xlu0.b32.cont [12/16] %v1391, 128
        %1408 = vxpose.xlu0.b32.cont [13/16] %v1392, 128
        %1409 = vxpose.xlu0.b32.cont [14/16] %v1393, 128
        %1410 = vxpose.xlu0.b32.cont [15/16] %v1394, 128
        %1411 = vxpose.xlu0.b32.end [16/16] %v1395, 128
        %v1412 = vpop.trf.xlu0
        %v1413 = vpop.trf.xlu0
        %v1414 = vpop.trf.xlu0
        %v1415 = vpop.trf.xlu0
        %v1416 = vpop.trf.xlu0
        %v1417 = vpop.trf.xlu0
        %v1418 = vpop.trf.xlu0
        %v1419 = vpop.trf.xlu0
        %v1420 = vpop.trf.xlu0
        %v1421 = vpop.trf.xlu0
        %v1422 = vpop.trf.xlu0
        %v1423 = vpop.trf.xlu0
        %v1424 = vpop.trf.xlu0
        %v1425 = vpop.trf.xlu0
        %v1426 = vpop.trf.xlu0
        %v1427 = vpop.trf.xlu0
        %v1428 = vlaneseq
        %v1429 = vshrl.u32 %v1428, 7
        %v1430 = vsub.s32 0, %v1429
        %v1431 = vrot.slane %v1412, %v1430
        %v1432 = vadd.f32 %v504, %v1431
        %v1433 = vadd.f32 %v505, %v1431
        %v1434 = vadd.f32 %v506, %v1431
        %v1435 = vadd.f32 %v507, %v1431
        %v1436 = vadd.f32 %v508, %v1431
        %v1437 = vadd.f32 %v509, %v1431
        %v1438 = vadd.f32 %v510, %v1431
        %v1439 = vadd.f32 %v511, %v1431
        %v1440 = vadd.f32 %v512, %v1431
        %v1441 = vadd.f32 %v513, %v1431
        %v1442 = vadd.f32 %v514, %v1431
        %v1443 = vadd.f32 %v515, %v1431
        %v1444 = vadd.f32 %v516, %v1431
        %v1445 = vadd.f32 %v517, %v1431
        %v1446 = vadd.f32 %v518, %v1431
        %v1447 = vadd.f32 %v519, %v1431
        %1448 = vmax.xlane.f32.xlu0 %v1432
        %v1449 = vpop.xlane.xlu0 %1448
        %1450 = vmax.xlane.f32.xlu0 %v1433
        %v1451 = vpop.xlane.xlu0 %1450
        %1452 = vmax.xlane.f32.xlu0 %v1434
        %v1453 = vpop.xlane.xlu0 %1452
        %1454 = vmax.xlane.f32.xlu0 %v1435
        %v1455 = vpop.xlane.xlu0 %1454
        %1456 = vmax.xlane.f32.xlu0 %v1436
        %v1457 = vpop.xlane.xlu0 %1456
        %1458 = vmax.xlane.f32.xlu0 %v1437
        %v1459 = vpop.xlane.xlu0 %1458
        %1460 = vmax.xlane.f32.xlu0 %v1438
        %v1461 = vpop.xlane.xlu0 %1460
        %1462 = vmax.xlane.f32.xlu0 %v1439
        %v1463 = vpop.xlane.xlu0 %1462
        %1464 = vmax.xlane.f32.xlu0 %v1440
        %v1465 = vpop.xlane.xlu0 %1464
        %1466 = vmax.xlane.f32.xlu0 %v1441
        %v1467 = vpop.xlane.xlu0 %1466
        %1468 = vmax.xlane.f32.xlu0 %v1442
        %v1469 = vpop.xlane.xlu0 %1468
        %1470 = vmax.xlane.f32.xlu0 %v1443
        %v1471 = vpop.xlane.xlu0 %1470
        %1472 = vmax.xlane.f32.xlu0 %v1444
        %v1473 = vpop.xlane.xlu0 %1472
        %1474 = vmax.xlane.f32.xlu0 %v1445
        %v1475 = vpop.xlane.xlu0 %1474
        %1476 = vmax.xlane.f32.xlu0 %v1446
        %v1477 = vpop.xlane.xlu0 %1476
        %1478 = vmax.xlane.f32.xlu0 %v1447
        %v1479 = vpop.xlane.xlu0 %1478
        %v1480 = vsub.f32 %v1432, %v1449
        %v1481 = vsub.f32 %v1433, %v1451
        %v1482 = vsub.f32 %v1434, %v1453
        %v1483 = vsub.f32 %v1435, %v1455
        %v1484 = vsub.f32 %v1436, %v1457
        %v1485 = vsub.f32 %v1437, %v1459
        %v1486 = vsub.f32 %v1438, %v1461
        %v1487 = vsub.f32 %v1439, %v1463
        %v1488 = vsub.f32 %v1440, %v1465
        %v1489 = vsub.f32 %v1441, %v1467
        %v1490 = vsub.f32 %v1442, %v1469
        %v1491 = vsub.f32 %v1443, %v1471
        %v1492 = vsub.f32 %v1444, %v1473
        %v1493 = vsub.f32 %v1445, %v1475
        %v1494 = vsub.f32 %v1446, %v1477
        %v1495 = vsub.f32 %v1447, %v1479
        %v1496 = vmul.f32 %v1480, 1.442695
        %v1497 = vpow.pop %v1496
        %v1498 = vmul.f32 %v1481, 1.442695
        %v1499 = vpow.pop %v1498
        %v1500 = vmul.f32 %v1482, 1.442695
        %v1501 = vpow.pop %v1500
        %v1502 = vmul.f32 %v1483, 1.442695
        %v1503 = vpow.pop %v1502
        %v1504 = vmul.f32 %v1484, 1.442695
        %v1505 = vpow.pop %v1504
        %v1506 = vmul.f32 %v1485, 1.442695
        %v1507 = vpow.pop %v1506
        %v1508 = vmul.f32 %v1486, 1.442695
        %v1509 = vpow.pop %v1508
        %v1510 = vmul.f32 %v1487, 1.442695
        %v1511 = vpow.pop %v1510
        %v1512 = vmul.f32 %v1488, 1.442695
        %v1513 = vpow.pop %v1512
        %v1514 = vmul.f32 %v1489, 1.442695
        %v1515 = vpow.pop %v1514
        %v1516 = vmul.f32 %v1490, 1.442695
        %v1517 = vpow.pop %v1516
        %v1518 = vmul.f32 %v1491, 1.442695
        %v1519 = vpow.pop %v1518
        %v1520 = vmul.f32 %v1492, 1.442695
        %v1521 = vpow.pop %v1520
        %v1522 = vmul.f32 %v1493, 1.442695
        %v1523 = vpow.pop %v1522
        %v1524 = vmul.f32 %v1494, 1.442695
        %v1525 = vpow.pop %v1524
        %v1526 = vmul.f32 %v1495, 1.442695
        %v1527 = vpow.pop %v1526
        %1528 = vadd.xlane.f32.xlu0 %v1497
        %v1529 = vpop.xlane.xlu0 %1528
        %1530 = vadd.xlane.f32.xlu0 %v1499
        %v1531 = vpop.xlane.xlu0 %1530
        %1532 = vadd.xlane.f32.xlu0 %v1501
        %v1533 = vpop.xlane.xlu0 %1532
        %1534 = vadd.xlane.f32.xlu0 %v1503
        %v1535 = vpop.xlane.xlu0 %1534
        %1536 = vadd.xlane.f32.xlu0 %v1505
        %v1537 = vpop.xlane.xlu0 %1536
        %1538 = vadd.xlane.f32.xlu0 %v1507
        %v1539 = vpop.xlane.xlu0 %1538
        %1540 = vadd.xlane.f32.xlu0 %v1509
        %v1541 = vpop.xlane.xlu0 %1540
        %1542 = vadd.xlane.f32.xlu0 %v1511
        %v1543 = vpop.xlane.xlu0 %1542
        %1544 = vadd.xlane.f32.xlu0 %v1513
        %v1545 = vpop.xlane.xlu0 %1544
        %1546 = vadd.xlane.f32.xlu0 %v1515
        %v1547 = vpop.xlane.xlu0 %1546
        %1548 = vadd.xlane.f32.xlu0 %v1517
        %v1549 = vpop.xlane.xlu0 %1548
        %1550 = vadd.xlane.f32.xlu0 %v1519
        %v1551 = vpop.xlane.xlu0 %1550
        %1552 = vadd.xlane.f32.xlu0 %v1521
        %v1553 = vpop.xlane.xlu0 %1552
        %1554 = vadd.xlane.f32.xlu0 %v1523
        %v1555 = vpop.xlane.xlu0 %1554
        %1556 = vadd.xlane.f32.xlu0 %v1525
        %v1557 = vpop.xlane.xlu0 %1556
        %1558 = vadd.xlane.f32.xlu0 %v1527
        %v1559 = vpop.xlane.xlu0 %1558
        %v1560 = vlog2.pop %v1529
        %v1561 = vmul.f32 %v1560, 0.6931472
        %v1562 = vlog2.pop %v1531
        %v1563 = vmul.f32 %v1562, 0.6931472
        %v1564 = vlog2.pop %v1533
        %v1565 = vmul.f32 %v1564, 0.6931472
        %v1566 = vlog2.pop %v1535
        %v1567 = vmul.f32 %v1566, 0.6931472
        %v1568 = vlog2.pop %v1537
        %v1569 = vmul.f32 %v1568, 0.6931472
        %v1570 = vlog2.pop %v1539
        %v1571 = vmul.f32 %v1570, 0.6931472
        %v1572 = vlog2.pop %v1541
        %v1573 = vmul.f32 %v1572, 0.6931472
        %v1574 = vlog2.pop %v1543
        %v1575 = vmul.f32 %v1574, 0.6931472
        %v1576 = vlog2.pop %v1545
        %v1577 = vmul.f32 %v1576, 0.6931472
        %v1578 = vlog2.pop %v1547
        %v1579 = vmul.f32 %v1578, 0.6931472
        %v1580 = vlog2.pop %v1549
        %v1581 = vmul.f32 %v1580, 0.6931472
        %v1582 = vlog2.pop %v1551
        %v1583 = vmul.f32 %v1582, 0.6931472
        %v1584 = vlog2.pop %v1553
        %v1585 = vmul.f32 %v1584, 0.6931472
        %v1586 = vlog2.pop %v1555
        %v1587 = vmul.f32 %v1586, 0.6931472
        %v1588 = vlog2.pop %v1557
        %v1589 = vmul.f32 %v1588, 0.6931472
        %v1590 = vlog2.pop %v1559
        %v1591 = vmul.f32 %v1590, 0.6931472
        %v1592 = vadd.f32 %v1449, %v1561
        %v1593 = vadd.f32 %v1451, %v1563
        %v1594 = vadd.f32 %v1453, %v1565
        %v1595 = vadd.f32 %v1455, %v1567
        %v1596 = vadd.f32 %v1457, %v1569
        %v1597 = vadd.f32 %v1459, %v1571
        %v1598 = vadd.f32 %v1461, %v1573
        %v1599 = vadd.f32 %v1463, %v1575
        %v1600 = vadd.f32 %v1465, %v1577
        %v1601 = vadd.f32 %v1467, %v1579
        %v1602 = vadd.f32 %v1469, %v1581
        %v1603 = vadd.f32 %v1471, %v1583
        %v1604 = vadd.f32 %v1473, %v1585
        %v1605 = vadd.f32 %v1475, %v1587
        %v1606 = vadd.f32 %v1477, %v1589
        %v1607 = vadd.f32 %v1479, %v1591
        %v1608 = vsub.f32 0.0, %v1592
        %v1609 = vsub.f32 0.0, %v1593
        %v1610 = vsub.f32 0.0, %v1594
        %v1611 = vsub.f32 0.0, %v1595
        %v1612 = vsub.f32 0.0, %v1596
        %v1613 = vsub.f32 0.0, %v1597
        %v1614 = vsub.f32 0.0, %v1598
        %v1615 = vsub.f32 0.0, %v1599
        %v1616 = vsub.f32 0.0, %v1600
        %v1617 = vsub.f32 0.0, %v1601
        %v1618 = vsub.f32 0.0, %v1602
        %v1619 = vsub.f32 0.0, %v1603
        %v1620 = vsub.f32 0.0, %v1604
        %v1621 = vsub.f32 0.0, %v1605
        %v1622 = vsub.f32 0.0, %v1606
        %v1623 = vsub.f32 0.0, %v1607
        %1624 = vxpose.xlu0.b32.start [1/16] %v1608, 128
        %1625 = vxpose.xlu0.b32.cont [2/16] %v1609, 128
        %1626 = vxpose.xlu0.b32.cont [3/16] %v1610, 128
        %1627 = vxpose.xlu0.b32.cont [4/16] %v1611, 128
        %1628 = vxpose.xlu0.b32.cont [5/16] %v1612, 128
        %1629 = vxpose.xlu0.b32.cont [6/16] %v1613, 128
        %1630 = vxpose.xlu0.b32.cont [7/16] %v1614, 128
        %1631 = vxpose.xlu0.b32.cont [8/16] %v1615, 128
        %1632 = vxpose.xlu0.b32.cont [9/16] %v1616, 128
        %1633 = vxpose.xlu0.b32.cont [10/16] %v1617, 128
        %1634 = vxpose.xlu0.b32.cont [11/16] %v1618, 128
        %1635 = vxpose.xlu0.b32.cont [12/16] %v1619, 128
        %1636 = vxpose.xlu0.b32.cont [13/16] %v1620, 128
        %1637 = vxpose.xlu0.b32.cont [14/16] %v1621, 128
        %1638 = vxpose.xlu0.b32.cont [15/16] %v1622, 128
        %1639 = vxpose.xlu0.b32.end [16/16] %v1623, 128
        %v1640 = vpop.trf.xlu0
        %v1641 = vpop.trf.xlu0
        %v1642 = vpop.trf.xlu0
        %v1643 = vpop.trf.xlu0
        %v1644 = vpop.trf.xlu0
        %v1645 = vpop.trf.xlu0
        %v1646 = vpop.trf.xlu0
        %v1647 = vpop.trf.xlu0
        %v1648 = vpop.trf.xlu0
        %v1649 = vpop.trf.xlu0
        %v1650 = vpop.trf.xlu0
        %v1651 = vpop.trf.xlu0
        %v1652 = vpop.trf.xlu0
        %v1653 = vpop.trf.xlu0
        %v1654 = vpop.trf.xlu0
        %v1655 = vpop.trf.xlu0
        %v1656 = vlaneseq
        %v1657 = vshrl.u32 %v1656, 7
        %v1658 = vsub.s32 0, %v1657
        %v1659 = vrot.slane %v1640, %v1658
        %v1660 = vadd.f32 %v504, %v1659
        %v1661 = vadd.f32 %v505, %v1659
        %v1662 = vadd.f32 %v506, %v1659
        %v1663 = vadd.f32 %v507, %v1659
        %v1664 = vadd.f32 %v508, %v1659
        %v1665 = vadd.f32 %v509, %v1659
        %v1666 = vadd.f32 %v510, %v1659
        %v1667 = vadd.f32 %v511, %v1659
        %v1668 = vadd.f32 %v512, %v1659
        %v1669 = vadd.f32 %v513, %v1659
        %v1670 = vadd.f32 %v514, %v1659
        %v1671 = vadd.f32 %v515, %v1659
        %v1672 = vadd.f32 %v516, %v1659
        %v1673 = vadd.f32 %v517, %v1659
        %v1674 = vadd.f32 %v518, %v1659
        %v1675 = vadd.f32 %v519, %v1659
        %1676 = vmax.xlane.f32.xlu0 %v1660
        %v1677 = vpop.xlane.xlu0 %1676
        %1678 = vmax.xlane.f32.xlu0 %v1661
        %v1679 = vpop.xlane.xlu0 %1678
        %1680 = vmax.xlane.f32.xlu0 %v1662
        %v1681 = vpop.xlane.xlu0 %1680
        %1682 = vmax.xlane.f32.xlu0 %v1663
        %v1683 = vpop.xlane.xlu0 %1682
        %1684 = vmax.xlane.f32.xlu0 %v1664
        %v1685 = vpop.xlane.xlu0 %1684
        %1686 = vmax.xlane.f32.xlu0 %v1665
        %v1687 = vpop.xlane.xlu0 %1686
        %1688 = vmax.xlane.f32.xlu0 %v1666
        %v1689 = vpop.xlane.xlu0 %1688
        %1690 = vmax.xlane.f32.xlu0 %v1667
        %v1691 = vpop.xlane.xlu0 %1690
        %1692 = vmax.xlane.f32.xlu0 %v1668
        %v1693 = vpop.xlane.xlu0 %1692
        %1694 = vmax.xlane.f32.xlu0 %v1669
        %v1695 = vpop.xlane.xlu0 %1694
        %1696 = vmax.xlane.f32.xlu0 %v1670
        %v1697 = vpop.xlane.xlu0 %1696
        %1698 = vmax.xlane.f32.xlu0 %v1671
        %v1699 = vpop.xlane.xlu0 %1698
        %1700 = vmax.xlane.f32.xlu0 %v1672
        %v1701 = vpop.xlane.xlu0 %1700
        %1702 = vmax.xlane.f32.xlu0 %v1673
        %v1703 = vpop.xlane.xlu0 %1702
        %1704 = vmax.xlane.f32.xlu0 %v1674
        %v1705 = vpop.xlane.xlu0 %1704
        %1706 = vmax.xlane.f32.xlu0 %v1675
        %v1707 = vpop.xlane.xlu0 %1706
        %v1708 = vsub.f32 %v1660, %v1677
        %v1709 = vsub.f32 %v1661, %v1679
        %v1710 = vsub.f32 %v1662, %v1681
        %v1711 = vsub.f32 %v1663, %v1683
        %v1712 = vsub.f32 %v1664, %v1685
        %v1713 = vsub.f32 %v1665, %v1687
        %v1714 = vsub.f32 %v1666, %v1689
        %v1715 = vsub.f32 %v1667, %v1691
        %v1716 = vsub.f32 %v1668, %v1693
        %v1717 = vsub.f32 %v1669, %v1695
        %v1718 = vsub.f32 %v1670, %v1697
        %v1719 = vsub.f32 %v1671, %v1699
        %v1720 = vsub.f32 %v1672, %v1701
        %v1721 = vsub.f32 %v1673, %v1703
        %v1722 = vsub.f32 %v1674, %v1705
        %v1723 = vsub.f32 %v1675, %v1707
        %v1724 = vmul.f32 %v1708, 1.442695
        %v1725 = vpow.pop %v1724
        %v1726 = vmul.f32 %v1709, 1.442695
        %v1727 = vpow.pop %v1726
        %v1728 = vmul.f32 %v1710, 1.442695
        %v1729 = vpow.pop %v1728
        %v1730 = vmul.f32 %v1711, 1.442695
        %v1731 = vpow.pop %v1730
        %v1732 = vmul.f32 %v1712, 1.442695
        %v1733 = vpow.pop %v1732
        %v1734 = vmul.f32 %v1713, 1.442695
        %v1735 = vpow.pop %v1734
        %v1736 = vmul.f32 %v1714, 1.442695
        %v1737 = vpow.pop %v1736
        %v1738 = vmul.f32 %v1715, 1.442695
        %v1739 = vpow.pop %v1738
        %v1740 = vmul.f32 %v1716, 1.442695
        %v1741 = vpow.pop %v1740
        %v1742 = vmul.f32 %v1717, 1.442695
        %v1743 = vpow.pop %v1742
        %v1744 = vmul.f32 %v1718, 1.442695
        %v1745 = vpow.pop %v1744
        %v1746 = vmul.f32 %v1719, 1.442695
        %v1747 = vpow.pop %v1746
        %v1748 = vmul.f32 %v1720, 1.442695
        %v1749 = vpow.pop %v1748
        %v1750 = vmul.f32 %v1721, 1.442695
        %v1751 = vpow.pop %v1750
        %v1752 = vmul.f32 %v1722, 1.442695
        %v1753 = vpow.pop %v1752
        %v1754 = vmul.f32 %v1723, 1.442695
        %v1755 = vpow.pop %v1754
        %1756 = vadd.xlane.f32.xlu0 %v1725
        %v1757 = vpop.xlane.xlu0 %1756
        %1758 = vadd.xlane.f32.xlu0 %v1727
        %v1759 = vpop.xlane.xlu0 %1758
        %1760 = vadd.xlane.f32.xlu0 %v1729
        %v1761 = vpop.xlane.xlu0 %1760
        %1762 = vadd.xlane.f32.xlu0 %v1731
        %v1763 = vpop.xlane.xlu0 %1762
        %1764 = vadd.xlane.f32.xlu0 %v1733
        %v1765 = vpop.xlane.xlu0 %1764
        %1766 = vadd.xlane.f32.xlu0 %v1735
        %v1767 = vpop.xlane.xlu0 %1766
        %1768 = vadd.xlane.f32.xlu0 %v1737
        %v1769 = vpop.xlane.xlu0 %1768
        %1770 = vadd.xlane.f32.xlu0 %v1739
        %v1771 = vpop.xlane.xlu0 %1770
        %1772 = vadd.xlane.f32.xlu0 %v1741
        %v1773 = vpop.xlane.xlu0 %1772
        %1774 = vadd.xlane.f32.xlu0 %v1743
        %v1775 = vpop.xlane.xlu0 %1774
        %1776 = vadd.xlane.f32.xlu0 %v1745
        %v1777 = vpop.xlane.xlu0 %1776
        %1778 = vadd.xlane.f32.xlu0 %v1747
        %v1779 = vpop.xlane.xlu0 %1778
        %1780 = vadd.xlane.f32.xlu0 %v1749
        %v1781 = vpop.xlane.xlu0 %1780
        %1782 = vadd.xlane.f32.xlu0 %v1751
        %v1783 = vpop.xlane.xlu0 %1782
        %1784 = vadd.xlane.f32.xlu0 %v1753
        %v1785 = vpop.xlane.xlu0 %1784
        %1786 = vadd.xlane.f32.xlu0 %v1755
        %v1787 = vpop.xlane.xlu0 %1786
        %v1788 = vlog2.pop %v1757
        %v1789 = vmul.f32 %v1788, 0.6931472
        %v1790 = vlog2.pop %v1759
        %v1791 = vmul.f32 %v1790, 0.6931472
        %v1792 = vlog2.pop %v1761
        %v1793 = vmul.f32 %v1792, 0.6931472
        %v1794 = vlog2.pop %v1763
        %v1795 = vmul.f32 %v1794, 0.6931472
        %v1796 = vlog2.pop %v1765
        %v1797 = vmul.f32 %v1796, 0.6931472
        %v1798 = vlog2.pop %v1767
        %v1799 = vmul.f32 %v1798, 0.6931472
        %v1800 = vlog2.pop %v1769
        %v1801 = vmul.f32 %v1800, 0.6931472
        %v1802 = vlog2.pop %v1771
        %v1803 = vmul.f32 %v1802, 0.6931472
        %v1804 = vlog2.pop %v1773
        %v1805 = vmul.f32 %v1804, 0.6931472
        %v1806 = vlog2.pop %v1775
        %v1807 = vmul.f32 %v1806, 0.6931472
        %v1808 = vlog2.pop %v1777
        %v1809 = vmul.f32 %v1808, 0.6931472
        %v1810 = vlog2.pop %v1779
        %v1811 = vmul.f32 %v1810, 0.6931472
        %v1812 = vlog2.pop %v1781
        %v1813 = vmul.f32 %v1812, 0.6931472
        %v1814 = vlog2.pop %v1783
        %v1815 = vmul.f32 %v1814, 0.6931472
        %v1816 = vlog2.pop %v1785
        %v1817 = vmul.f32 %v1816, 0.6931472
        %v1818 = vlog2.pop %v1787
        %v1819 = vmul.f32 %v1818, 0.6931472
        %v1820 = vadd.f32 %v1677, %v1789
        %v1821 = vadd.f32 %v1679, %v1791
        %v1822 = vadd.f32 %v1681, %v1793
        %v1823 = vadd.f32 %v1683, %v1795
        %v1824 = vadd.f32 %v1685, %v1797
        %v1825 = vadd.f32 %v1687, %v1799
        %v1826 = vadd.f32 %v1689, %v1801
        %v1827 = vadd.f32 %v1691, %v1803
        %v1828 = vadd.f32 %v1693, %v1805
        %v1829 = vadd.f32 %v1695, %v1807
        %v1830 = vadd.f32 %v1697, %v1809
        %v1831 = vadd.f32 %v1699, %v1811
        %v1832 = vadd.f32 %v1701, %v1813
        %v1833 = vadd.f32 %v1703, %v1815
        %v1834 = vadd.f32 %v1705, %v1817
        %v1835 = vadd.f32 %v1707, %v1819
        %v1836 = vsub.f32 0.0, %v1820
        %v1837 = vsub.f32 0.0, %v1821
        %v1838 = vsub.f32 0.0, %v1822
        %v1839 = vsub.f32 0.0, %v1823
        %v1840 = vsub.f32 0.0, %v1824
        %v1841 = vsub.f32 0.0, %v1825
        %v1842 = vsub.f32 0.0, %v1826
        %v1843 = vsub.f32 0.0, %v1827
        %v1844 = vsub.f32 0.0, %v1828
        %v1845 = vsub.f32 0.0, %v1829
        %v1846 = vsub.f32 0.0, %v1830
        %v1847 = vsub.f32 0.0, %v1831
        %v1848 = vsub.f32 0.0, %v1832
        %v1849 = vsub.f32 0.0, %v1833
        %v1850 = vsub.f32 0.0, %v1834
        %v1851 = vsub.f32 0.0, %v1835
        %1852 = vxpose.xlu0.b32.start [1/16] %v1836, 128
        %1853 = vxpose.xlu0.b32.cont [2/16] %v1837, 128
        %1854 = vxpose.xlu0.b32.cont [3/16] %v1838, 128
        %1855 = vxpose.xlu0.b32.cont [4/16] %v1839, 128
        %1856 = vxpose.xlu0.b32.cont [5/16] %v1840, 128
        %1857 = vxpose.xlu0.b32.cont [6/16] %v1841, 128
        %1858 = vxpose.xlu0.b32.cont [7/16] %v1842, 128
        %1859 = vxpose.xlu0.b32.cont [8/16] %v1843, 128
        %1860 = vxpose.xlu0.b32.cont [9/16] %v1844, 128
        %1861 = vxpose.xlu0.b32.cont [10/16] %v1845, 128
        %1862 = vxpose.xlu0.b32.cont [11/16] %v1846, 128
        %1863 = vxpose.xlu0.b32.cont [12/16] %v1847, 128
        %1864 = vxpose.xlu0.b32.cont [13/16] %v1848, 128
        %1865 = vxpose.xlu0.b32.cont [14/16] %v1849, 128
        %1866 = vxpose.xlu0.b32.cont [15/16] %v1850, 128
        %1867 = vxpose.xlu0.b32.end [16/16] %v1851, 128
        %v1868 = vpop.trf.xlu0
        %v1869 = vpop.trf.xlu0
        %v1870 = vpop.trf.xlu0
        %v1871 = vpop.trf.xlu0
        %v1872 = vpop.trf.xlu0
        %v1873 = vpop.trf.xlu0
        %v1874 = vpop.trf.xlu0
        %v1875 = vpop.trf.xlu0
        %v1876 = vpop.trf.xlu0
        %v1877 = vpop.trf.xlu0
        %v1878 = vpop.trf.xlu0
        %v1879 = vpop.trf.xlu0
        %v1880 = vpop.trf.xlu0
        %v1881 = vpop.trf.xlu0
        %v1882 = vpop.trf.xlu0
        %v1883 = vpop.trf.xlu0
        %v1884 = vlaneseq
        %v1885 = vshrl.u32 %v1884, 7
        %v1886 = vsub.s32 0, %v1885
        %v1887 = vrot.slane %v1868, %v1886
        %v1888 = vadd.f32 %v504, %v1887
        %v1889 = vadd.f32 %v505, %v1887
        %v1890 = vadd.f32 %v506, %v1887
        %v1891 = vadd.f32 %v507, %v1887
        %v1892 = vadd.f32 %v508, %v1887
        %v1893 = vadd.f32 %v509, %v1887
        %v1894 = vadd.f32 %v510, %v1887
        %v1895 = vadd.f32 %v511, %v1887
        %v1896 = vadd.f32 %v512, %v1887
        %v1897 = vadd.f32 %v513, %v1887
        %v1898 = vadd.f32 %v514, %v1887
        %v1899 = vadd.f32 %v515, %v1887
        %v1900 = vadd.f32 %v516, %v1887
        %v1901 = vadd.f32 %v517, %v1887
        %v1902 = vadd.f32 %v518, %v1887
        %v1903 = vadd.f32 %v519, %v1887
        %1904 = vmax.xlane.f32.xlu0 %v1888
        %v1905 = vpop.xlane.xlu0 %1904
        %1906 = vmax.xlane.f32.xlu0 %v1889
        %v1907 = vpop.xlane.xlu0 %1906
        %1908 = vmax.xlane.f32.xlu0 %v1890
        %v1909 = vpop.xlane.xlu0 %1908
        %1910 = vmax.xlane.f32.xlu0 %v1891
        %v1911 = vpop.xlane.xlu0 %1910
        %1912 = vmax.xlane.f32.xlu0 %v1892
        %v1913 = vpop.xlane.xlu0 %1912
        %1914 = vmax.xlane.f32.xlu0 %v1893
        %v1915 = vpop.xlane.xlu0 %1914
        %1916 = vmax.xlane.f32.xlu0 %v1894
        %v1917 = vpop.xlane.xlu0 %1916
        %1918 = vmax.xlane.f32.xlu0 %v1895
        %v1919 = vpop.xlane.xlu0 %1918
        %1920 = vmax.xlane.f32.xlu0 %v1896
        %v1921 = vpop.xlane.xlu0 %1920
        %1922 = vmax.xlane.f32.xlu0 %v1897
        %v1923 = vpop.xlane.xlu0 %1922
        %1924 = vmax.xlane.f32.xlu0 %v1898
        %v1925 = vpop.xlane.xlu0 %1924
        %1926 = vmax.xlane.f32.xlu0 %v1899
        %v1927 = vpop.xlane.xlu0 %1926
        %1928 = vmax.xlane.f32.xlu0 %v1900
        %v1929 = vpop.xlane.xlu0 %1928
        %1930 = vmax.xlane.f32.xlu0 %v1901
        %v1931 = vpop.xlane.xlu0 %1930
        %1932 = vmax.xlane.f32.xlu0 %v1902
        %v1933 = vpop.xlane.xlu0 %1932
        %1934 = vmax.xlane.f32.xlu0 %v1903
        %v1935 = vpop.xlane.xlu0 %1934
        %v1936 = vsub.f32 %v1888, %v1905
        %v1937 = vsub.f32 %v1889, %v1907
        %v1938 = vsub.f32 %v1890, %v1909
        %v1939 = vsub.f32 %v1891, %v1911
        %v1940 = vsub.f32 %v1892, %v1913
        %v1941 = vsub.f32 %v1893, %v1915
        %v1942 = vsub.f32 %v1894, %v1917
        %v1943 = vsub.f32 %v1895, %v1919
        %v1944 = vsub.f32 %v1896, %v1921
        %v1945 = vsub.f32 %v1897, %v1923
        %v1946 = vsub.f32 %v1898, %v1925
        %v1947 = vsub.f32 %v1899, %v1927
        %v1948 = vsub.f32 %v1900, %v1929
        %v1949 = vsub.f32 %v1901, %v1931
        %v1950 = vsub.f32 %v1902, %v1933
        %v1951 = vsub.f32 %v1903, %v1935
        %v1952 = vmul.f32 %v1936, 1.442695
        %v1953 = vpow.pop %v1952
        %v1954 = vmul.f32 %v1937, 1.442695
        %v1955 = vpow.pop %v1954
        %v1956 = vmul.f32 %v1938, 1.442695
        %v1957 = vpow.pop %v1956
        %v1958 = vmul.f32 %v1939, 1.442695
        %v1959 = vpow.pop %v1958
        %v1960 = vmul.f32 %v1940, 1.442695
        %v1961 = vpow.pop %v1960
        %v1962 = vmul.f32 %v1941, 1.442695
        %v1963 = vpow.pop %v1962
        %v1964 = vmul.f32 %v1942, 1.442695
        %v1965 = vpow.pop %v1964
        %v1966 = vmul.f32 %v1943, 1.442695
        %v1967 = vpow.pop %v1966
        %v1968 = vmul.f32 %v1944, 1.442695
        %v1969 = vpow.pop %v1968
        %v1970 = vmul.f32 %v1945, 1.442695
        %v1971 = vpow.pop %v1970
        %v1972 = vmul.f32 %v1946, 1.442695
        %v1973 = vpow.pop %v1972
        %v1974 = vmul.f32 %v1947, 1.442695
        %v1975 = vpow.pop %v1974
        %v1976 = vmul.f32 %v1948, 1.442695
        %v1977 = vpow.pop %v1976
        %v1978 = vmul.f32 %v1949, 1.442695
        %v1979 = vpow.pop %v1978
        %v1980 = vmul.f32 %v1950, 1.442695
        %v1981 = vpow.pop %v1980
        %v1982 = vmul.f32 %v1951, 1.442695
        %v1983 = vpow.pop %v1982
        %1984 = vadd.xlane.f32.xlu0 %v1953
        %v1985 = vpop.xlane.xlu0 %1984
        %1986 = vadd.xlane.f32.xlu0 %v1955
        %v1987 = vpop.xlane.xlu0 %1986
        %1988 = vadd.xlane.f32.xlu0 %v1957
        %v1989 = vpop.xlane.xlu0 %1988
        %1990 = vadd.xlane.f32.xlu0 %v1959
        %v1991 = vpop.xlane.xlu0 %1990
        %1992 = vadd.xlane.f32.xlu0 %v1961
        %v1993 = vpop.xlane.xlu0 %1992
        %1994 = vadd.xlane.f32.xlu0 %v1963
        %v1995 = vpop.xlane.xlu0 %1994
        %1996 = vadd.xlane.f32.xlu0 %v1965
        %v1997 = vpop.xlane.xlu0 %1996
        %1998 = vadd.xlane.f32.xlu0 %v1967
        %v1999 = vpop.xlane.xlu0 %1998
        %2000 = vadd.xlane.f32.xlu0 %v1969
        %v2001 = vpop.xlane.xlu0 %2000
        %2002 = vadd.xlane.f32.xlu0 %v1971
        %v2003 = vpop.xlane.xlu0 %2002
        %2004 = vadd.xlane.f32.xlu0 %v1973
        %v2005 = vpop.xlane.xlu0 %2004
        %2006 = vadd.xlane.f32.xlu0 %v1975
        %v2007 = vpop.xlane.xlu0 %2006
        %2008 = vadd.xlane.f32.xlu0 %v1977
        %v2009 = vpop.xlane.xlu0 %2008
        %2010 = vadd.xlane.f32.xlu0 %v1979
        %v2011 = vpop.xlane.xlu0 %2010
        %2012 = vadd.xlane.f32.xlu0 %v1981
        %v2013 = vpop.xlane.xlu0 %2012
        %2014 = vadd.xlane.f32.xlu0 %v1983
        %v2015 = vpop.xlane.xlu0 %2014
        %v2016 = vlog2.pop %v1985
        %v2017 = vmul.f32 %v2016, 0.6931472
        %v2018 = vlog2.pop %v1987
        %v2019 = vmul.f32 %v2018, 0.6931472
        %v2020 = vlog2.pop %v1989
        %v2021 = vmul.f32 %v2020, 0.6931472
        %v2022 = vlog2.pop %v1991
        %v2023 = vmul.f32 %v2022, 0.6931472
        %v2024 = vlog2.pop %v1993
        %v2025 = vmul.f32 %v2024, 0.6931472
        %v2026 = vlog2.pop %v1995
        %v2027 = vmul.f32 %v2026, 0.6931472
        %v2028 = vlog2.pop %v1997
        %v2029 = vmul.f32 %v2028, 0.6931472
        %v2030 = vlog2.pop %v1999
        %v2031 = vmul.f32 %v2030, 0.6931472
        %v2032 = vlog2.pop %v2001
        %v2033 = vmul.f32 %v2032, 0.6931472
        %v2034 = vlog2.pop %v2003
        %v2035 = vmul.f32 %v2034, 0.6931472
        %v2036 = vlog2.pop %v2005
        %v2037 = vmul.f32 %v2036, 0.6931472
        %v2038 = vlog2.pop %v2007
        %v2039 = vmul.f32 %v2038, 0.6931472
        %v2040 = vlog2.pop %v2009
        %v2041 = vmul.f32 %v2040, 0.6931472
        %v2042 = vlog2.pop %v2011
        %v2043 = vmul.f32 %v2042, 0.6931472
        %v2044 = vlog2.pop %v2013
        %v2045 = vmul.f32 %v2044, 0.6931472
        %v2046 = vlog2.pop %v2015
        %v2047 = vmul.f32 %v2046, 0.6931472
        %v2048 = vadd.f32 %v1905, %v2017
        %v2049 = vadd.f32 %v1907, %v2019
        %v2050 = vadd.f32 %v1909, %v2021
        %v2051 = vadd.f32 %v1911, %v2023
        %v2052 = vadd.f32 %v1913, %v2025
        %v2053 = vadd.f32 %v1915, %v2027
        %v2054 = vadd.f32 %v1917, %v2029
        %v2055 = vadd.f32 %v1919, %v2031
        %v2056 = vadd.f32 %v1921, %v2033
        %v2057 = vadd.f32 %v1923, %v2035
        %v2058 = vadd.f32 %v1925, %v2037
        %v2059 = vadd.f32 %v1927, %v2039
        %v2060 = vadd.f32 %v1929, %v2041
        %v2061 = vadd.f32 %v1931, %v2043
        %v2062 = vadd.f32 %v1933, %v2045
        %v2063 = vadd.f32 %v1935, %v2047
        %v2064 = vsub.f32 0.0, %v2048
        %v2065 = vsub.f32 0.0, %v2049
        %v2066 = vsub.f32 0.0, %v2050
        %v2067 = vsub.f32 0.0, %v2051
        %v2068 = vsub.f32 0.0, %v2052
        %v2069 = vsub.f32 0.0, %v2053
        %v2070 = vsub.f32 0.0, %v2054
        %v2071 = vsub.f32 0.0, %v2055
        %v2072 = vsub.f32 0.0, %v2056
        %v2073 = vsub.f32 0.0, %v2057
        %v2074 = vsub.f32 0.0, %v2058
        %v2075 = vsub.f32 0.0, %v2059
        %v2076 = vsub.f32 0.0, %v2060
        %v2077 = vsub.f32 0.0, %v2061
        %v2078 = vsub.f32 0.0, %v2062
        %v2079 = vsub.f32 0.0, %v2063
        %2080 = vxpose.xlu0.b32.start [1/16] %v2064, 128
        %2081 = vxpose.xlu0.b32.cont [2/16] %v2065, 128
        %2082 = vxpose.xlu0.b32.cont [3/16] %v2066, 128
        %2083 = vxpose.xlu0.b32.cont [4/16] %v2067, 128
        %2084 = vxpose.xlu0.b32.cont [5/16] %v2068, 128
        %2085 = vxpose.xlu0.b32.cont [6/16] %v2069, 128
        %2086 = vxpose.xlu0.b32.cont [7/16] %v2070, 128
        %2087 = vxpose.xlu0.b32.cont [8/16] %v2071, 128
        %2088 = vxpose.xlu0.b32.cont [9/16] %v2072, 128
        %2089 = vxpose.xlu0.b32.cont [10/16] %v2073, 128
        %2090 = vxpose.xlu0.b32.cont [11/16] %v2074, 128
        %2091 = vxpose.xlu0.b32.cont [12/16] %v2075, 128
        %2092 = vxpose.xlu0.b32.cont [13/16] %v2076, 128
        %2093 = vxpose.xlu0.b32.cont [14/16] %v2077, 128
        %2094 = vxpose.xlu0.b32.cont [15/16] %v2078, 128
        %2095 = vxpose.xlu0.b32.end [16/16] %v2079, 128
        %v2096 = vpop.trf.xlu0
        %v2097 = vpop.trf.xlu0
        %v2098 = vpop.trf.xlu0
        %v2099 = vpop.trf.xlu0
        %v2100 = vpop.trf.xlu0
        %v2101 = vpop.trf.xlu0
        %v2102 = vpop.trf.xlu0
        %v2103 = vpop.trf.xlu0
        %v2104 = vpop.trf.xlu0
        %v2105 = vpop.trf.xlu0
        %v2106 = vpop.trf.xlu0
        %v2107 = vpop.trf.xlu0
        %v2108 = vpop.trf.xlu0
        %v2109 = vpop.trf.xlu0
        %v2110 = vpop.trf.xlu0
        %v2111 = vpop.trf.xlu0
        %v2112 = vlaneseq
        %v2113 = vshrl.u32 %v2112, 7
        %v2114 = vsub.s32 0, %v2113
        %v2115 = vrot.slane %v2096, %v2114
        %v2116 = vadd.f32 %v504, %v2115
        %v2117 = vadd.f32 %v505, %v2115
        %v2118 = vadd.f32 %v506, %v2115
        %v2119 = vadd.f32 %v507, %v2115
        %v2120 = vadd.f32 %v508, %v2115
        %v2121 = vadd.f32 %v509, %v2115
        %v2122 = vadd.f32 %v510, %v2115
        %v2123 = vadd.f32 %v511, %v2115
        %v2124 = vadd.f32 %v512, %v2115
        %v2125 = vadd.f32 %v513, %v2115
        %v2126 = vadd.f32 %v514, %v2115
        %v2127 = vadd.f32 %v515, %v2115
        %v2128 = vadd.f32 %v516, %v2115
        %v2129 = vadd.f32 %v517, %v2115
        %v2130 = vadd.f32 %v518, %v2115
        %v2131 = vadd.f32 %v519, %v2115
        %2132 = vmax.xlane.f32.xlu0 %v2116
        %v2133 = vpop.xlane.xlu0 %2132
        %2134 = vmax.xlane.f32.xlu0 %v2117
        %v2135 = vpop.xlane.xlu0 %2134
        %2136 = vmax.xlane.f32.xlu0 %v2118
        %v2137 = vpop.xlane.xlu0 %2136
        %2138 = vmax.xlane.f32.xlu0 %v2119
        %v2139 = vpop.xlane.xlu0 %2138
        %2140 = vmax.xlane.f32.xlu0 %v2120
        %v2141 = vpop.xlane.xlu0 %2140
        %2142 = vmax.xlane.f32.xlu0 %v2121
        %v2143 = vpop.xlane.xlu0 %2142
        %2144 = vmax.xlane.f32.xlu0 %v2122
        %v2145 = vpop.xlane.xlu0 %2144
        %2146 = vmax.xlane.f32.xlu0 %v2123
        %v2147 = vpop.xlane.xlu0 %2146
        %2148 = vmax.xlane.f32.xlu0 %v2124
        %v2149 = vpop.xlane.xlu0 %2148
        %2150 = vmax.xlane.f32.xlu0 %v2125
        %v2151 = vpop.xlane.xlu0 %2150
        %2152 = vmax.xlane.f32.xlu0 %v2126
        %v2153 = vpop.xlane.xlu0 %2152
        %2154 = vmax.xlane.f32.xlu0 %v2127
        %v2155 = vpop.xlane.xlu0 %2154
        %2156 = vmax.xlane.f32.xlu0 %v2128
        %v2157 = vpop.xlane.xlu0 %2156
        %2158 = vmax.xlane.f32.xlu0 %v2129
        %v2159 = vpop.xlane.xlu0 %2158
        %2160 = vmax.xlane.f32.xlu0 %v2130
        %v2161 = vpop.xlane.xlu0 %2160
        %2162 = vmax.xlane.f32.xlu0 %v2131
        %v2163 = vpop.xlane.xlu0 %2162
        %v2164 = vsub.f32 %v2116, %v2133
        %v2165 = vsub.f32 %v2117, %v2135
        %v2166 = vsub.f32 %v2118, %v2137
        %v2167 = vsub.f32 %v2119, %v2139
        %v2168 = vsub.f32 %v2120, %v2141
        %v2169 = vsub.f32 %v2121, %v2143
        %v2170 = vsub.f32 %v2122, %v2145
        %v2171 = vsub.f32 %v2123, %v2147
        %v2172 = vsub.f32 %v2124, %v2149
        %v2173 = vsub.f32 %v2125, %v2151
        %v2174 = vsub.f32 %v2126, %v2153
        %v2175 = vsub.f32 %v2127, %v2155
        %v2176 = vsub.f32 %v2128, %v2157
        %v2177 = vsub.f32 %v2129, %v2159
        %v2178 = vsub.f32 %v2130, %v2161
        %v2179 = vsub.f32 %v2131, %v2163
        %v2180 = vmul.f32 %v2164, 1.442695
        %v2181 = vpow.pop %v2180
        %v2182 = vmul.f32 %v2165, 1.442695
        %v2183 = vpow.pop %v2182
        %v2184 = vmul.f32 %v2166, 1.442695
        %v2185 = vpow.pop %v2184
        %v2186 = vmul.f32 %v2167, 1.442695
        %v2187 = vpow.pop %v2186
        %v2188 = vmul.f32 %v2168, 1.442695
        %v2189 = vpow.pop %v2188
        %v2190 = vmul.f32 %v2169, 1.442695
        %v2191 = vpow.pop %v2190
        %v2192 = vmul.f32 %v2170, 1.442695
        %v2193 = vpow.pop %v2192
        %v2194 = vmul.f32 %v2171, 1.442695
        %v2195 = vpow.pop %v2194
        %v2196 = vmul.f32 %v2172, 1.442695
        %v2197 = vpow.pop %v2196
        %v2198 = vmul.f32 %v2173, 1.442695
        %v2199 = vpow.pop %v2198
        %v2200 = vmul.f32 %v2174, 1.442695
        %v2201 = vpow.pop %v2200
        %v2202 = vmul.f32 %v2175, 1.442695
        %v2203 = vpow.pop %v2202
        %v2204 = vmul.f32 %v2176, 1.442695
        %v2205 = vpow.pop %v2204
        %v2206 = vmul.f32 %v2177, 1.442695
        %v2207 = vpow.pop %v2206
        %v2208 = vmul.f32 %v2178, 1.442695
        %v2209 = vpow.pop %v2208
        %v2210 = vmul.f32 %v2179, 1.442695
        %v2211 = vpow.pop %v2210
        %2212 = vadd.xlane.f32.xlu0 %v2181
        %v2213 = vpop.xlane.xlu0 %2212
        %2214 = vadd.xlane.f32.xlu0 %v2183
        %v2215 = vpop.xlane.xlu0 %2214
        %2216 = vadd.xlane.f32.xlu0 %v2185
        %v2217 = vpop.xlane.xlu0 %2216
        %2218 = vadd.xlane.f32.xlu0 %v2187
        %v2219 = vpop.xlane.xlu0 %2218
        %2220 = vadd.xlane.f32.xlu0 %v2189
        %v2221 = vpop.xlane.xlu0 %2220
        %2222 = vadd.xlane.f32.xlu0 %v2191
        %v2223 = vpop.xlane.xlu0 %2222
        %2224 = vadd.xlane.f32.xlu0 %v2193
        %v2225 = vpop.xlane.xlu0 %2224
        %2226 = vadd.xlane.f32.xlu0 %v2195
        %v2227 = vpop.xlane.xlu0 %2226
        %2228 = vadd.xlane.f32.xlu0 %v2197
        %v2229 = vpop.xlane.xlu0 %2228
        %2230 = vadd.xlane.f32.xlu0 %v2199
        %v2231 = vpop.xlane.xlu0 %2230
        %2232 = vadd.xlane.f32.xlu0 %v2201
        %v2233 = vpop.xlane.xlu0 %2232
        %2234 = vadd.xlane.f32.xlu0 %v2203
        %v2235 = vpop.xlane.xlu0 %2234
        %2236 = vadd.xlane.f32.xlu0 %v2205
        %v2237 = vpop.xlane.xlu0 %2236
        %2238 = vadd.xlane.f32.xlu0 %v2207
        %v2239 = vpop.xlane.xlu0 %2238
        %2240 = vadd.xlane.f32.xlu0 %v2209
        %v2241 = vpop.xlane.xlu0 %2240
        %2242 = vadd.xlane.f32.xlu0 %v2211
        %v2243 = vpop.xlane.xlu0 %2242
        %v2244 = vlog2.pop %v2213
        %v2245 = vmul.f32 %v2244, 0.6931472
        %v2246 = vlog2.pop %v2215
        %v2247 = vmul.f32 %v2246, 0.6931472
        %v2248 = vlog2.pop %v2217
        %v2249 = vmul.f32 %v2248, 0.6931472
        %v2250 = vlog2.pop %v2219
        %v2251 = vmul.f32 %v2250, 0.6931472
        %v2252 = vlog2.pop %v2221
        %v2253 = vmul.f32 %v2252, 0.6931472
        %v2254 = vlog2.pop %v2223
        %v2255 = vmul.f32 %v2254, 0.6931472
        %v2256 = vlog2.pop %v2225
        %v2257 = vmul.f32 %v2256, 0.6931472
        %v2258 = vlog2.pop %v2227
        %v2259 = vmul.f32 %v2258, 0.6931472
        %v2260 = vlog2.pop %v2229
        %v2261 = vmul.f32 %v2260, 0.6931472
        %v2262 = vlog2.pop %v2231
        %v2263 = vmul.f32 %v2262, 0.6931472
        %v2264 = vlog2.pop %v2233
        %v2265 = vmul.f32 %v2264, 0.6931472
        %v2266 = vlog2.pop %v2235
        %v2267 = vmul.f32 %v2266, 0.6931472
        %v2268 = vlog2.pop %v2237
        %v2269 = vmul.f32 %v2268, 0.6931472
        %v2270 = vlog2.pop %v2239
        %v2271 = vmul.f32 %v2270, 0.6931472
        %v2272 = vlog2.pop %v2241
        %v2273 = vmul.f32 %v2272, 0.6931472
        %v2274 = vlog2.pop %v2243
        %v2275 = vmul.f32 %v2274, 0.6931472
        %v2276 = vadd.f32 %v2133, %v2245
        %v2277 = vadd.f32 %v2135, %v2247
        %v2278 = vadd.f32 %v2137, %v2249
        %v2279 = vadd.f32 %v2139, %v2251
        %v2280 = vadd.f32 %v2141, %v2253
        %v2281 = vadd.f32 %v2143, %v2255
        %v2282 = vadd.f32 %v2145, %v2257
        %v2283 = vadd.f32 %v2147, %v2259
        %v2284 = vadd.f32 %v2149, %v2261
        %v2285 = vadd.f32 %v2151, %v2263
        %v2286 = vadd.f32 %v2153, %v2265
        %v2287 = vadd.f32 %v2155, %v2267
        %v2288 = vadd.f32 %v2157, %v2269
        %v2289 = vadd.f32 %v2159, %v2271
        %v2290 = vadd.f32 %v2161, %v2273
        %v2291 = vadd.f32 %v2163, %v2275
        %v2292 = vsub.f32 0.0, %v2276
        %v2293 = vsub.f32 0.0, %v2277
        %v2294 = vsub.f32 0.0, %v2278
        %v2295 = vsub.f32 0.0, %v2279
        %v2296 = vsub.f32 0.0, %v2280
        %v2297 = vsub.f32 0.0, %v2281
        %v2298 = vsub.f32 0.0, %v2282
        %v2299 = vsub.f32 0.0, %v2283
        %v2300 = vsub.f32 0.0, %v2284
        %v2301 = vsub.f32 0.0, %v2285
        %v2302 = vsub.f32 0.0, %v2286
        %v2303 = vsub.f32 0.0, %v2287
        %v2304 = vsub.f32 0.0, %v2288
        %v2305 = vsub.f32 0.0, %v2289
        %v2306 = vsub.f32 0.0, %v2290
        %v2307 = vsub.f32 0.0, %v2291
        %2308 = vxpose.xlu0.b32.start [1/16] %v2292, 128
        %2309 = vxpose.xlu0.b32.cont [2/16] %v2293, 128
        %2310 = vxpose.xlu0.b32.cont [3/16] %v2294, 128
        %2311 = vxpose.xlu0.b32.cont [4/16] %v2295, 128
        %2312 = vxpose.xlu0.b32.cont [5/16] %v2296, 128
        %2313 = vxpose.xlu0.b32.cont [6/16] %v2297, 128
        %2314 = vxpose.xlu0.b32.cont [7/16] %v2298, 128
        %2315 = vxpose.xlu0.b32.cont [8/16] %v2299, 128
        %2316 = vxpose.xlu0.b32.cont [9/16] %v2300, 128
        %2317 = vxpose.xlu0.b32.cont [10/16] %v2301, 128
        %2318 = vxpose.xlu0.b32.cont [11/16] %v2302, 128
        %2319 = vxpose.xlu0.b32.cont [12/16] %v2303, 128
        %2320 = vxpose.xlu0.b32.cont [13/16] %v2304, 128
        %2321 = vxpose.xlu0.b32.cont [14/16] %v2305, 128
        %2322 = vxpose.xlu0.b32.cont [15/16] %v2306, 128
        %2323 = vxpose.xlu0.b32.end [16/16] %v2307, 128
        %v2324 = vpop.trf.xlu0
        %v2325 = vpop.trf.xlu0
        %v2326 = vpop.trf.xlu0
        %v2327 = vpop.trf.xlu0
        %v2328 = vpop.trf.xlu0
        %v2329 = vpop.trf.xlu0
        %v2330 = vpop.trf.xlu0
        %v2331 = vpop.trf.xlu0
        %v2332 = vpop.trf.xlu0
        %v2333 = vpop.trf.xlu0
        %v2334 = vpop.trf.xlu0
        %v2335 = vpop.trf.xlu0
        %v2336 = vpop.trf.xlu0
        %v2337 = vpop.trf.xlu0
        %v2338 = vpop.trf.xlu0
        %v2339 = vpop.trf.xlu0
        %v2340 = vlaneseq
        %v2341 = vshrl.u32 %v2340, 7
        %v2342 = vsub.s32 0, %v2341
        %v2343 = vrot.slane %v2324, %v2342
        %v2344 = vadd.f32 %v504, %v2343
        %v2345 = vadd.f32 %v505, %v2343
        %v2346 = vadd.f32 %v506, %v2343
        %v2347 = vadd.f32 %v507, %v2343
        %v2348 = vadd.f32 %v508, %v2343
        %v2349 = vadd.f32 %v509, %v2343
        %v2350 = vadd.f32 %v510, %v2343
        %v2351 = vadd.f32 %v511, %v2343
        %v2352 = vadd.f32 %v512, %v2343
        %v2353 = vadd.f32 %v513, %v2343
        %v2354 = vadd.f32 %v514, %v2343
        %v2355 = vadd.f32 %v515, %v2343
        %v2356 = vadd.f32 %v516, %v2343
        %v2357 = vadd.f32 %v517, %v2343
        %v2358 = vadd.f32 %v518, %v2343
        %v2359 = vadd.f32 %v519, %v2343
        %2360 = vmax.xlane.f32.xlu0 %v2344
        %v2361 = vpop.xlane.xlu0 %2360
        %2362 = vmax.xlane.f32.xlu0 %v2345
        %v2363 = vpop.xlane.xlu0 %2362
        %2364 = vmax.xlane.f32.xlu0 %v2346
        %v2365 = vpop.xlane.xlu0 %2364
        %2366 = vmax.xlane.f32.xlu0 %v2347
        %v2367 = vpop.xlane.xlu0 %2366
        %2368 = vmax.xlane.f32.xlu0 %v2348
        %v2369 = vpop.xlane.xlu0 %2368
        %2370 = vmax.xlane.f32.xlu0 %v2349
        %v2371 = vpop.xlane.xlu0 %2370
        %2372 = vmax.xlane.f32.xlu0 %v2350
        %v2373 = vpop.xlane.xlu0 %2372
        %2374 = vmax.xlane.f32.xlu0 %v2351
        %v2375 = vpop.xlane.xlu0 %2374
        %2376 = vmax.xlane.f32.xlu0 %v2352
        %v2377 = vpop.xlane.xlu0 %2376
        %2378 = vmax.xlane.f32.xlu0 %v2353
        %v2379 = vpop.xlane.xlu0 %2378
        %2380 = vmax.xlane.f32.xlu0 %v2354
        %v2381 = vpop.xlane.xlu0 %2380
        %2382 = vmax.xlane.f32.xlu0 %v2355
        %v2383 = vpop.xlane.xlu0 %2382
        %2384 = vmax.xlane.f32.xlu0 %v2356
        %v2385 = vpop.xlane.xlu0 %2384
        %2386 = vmax.xlane.f32.xlu0 %v2357
        %v2387 = vpop.xlane.xlu0 %2386
        %2388 = vmax.xlane.f32.xlu0 %v2358
        %v2389 = vpop.xlane.xlu0 %2388
        %2390 = vmax.xlane.f32.xlu0 %v2359
        %v2391 = vpop.xlane.xlu0 %2390
        %v2392 = vsub.f32 %v2344, %v2361
        %v2393 = vsub.f32 %v2345, %v2363
        %v2394 = vsub.f32 %v2346, %v2365
        %v2395 = vsub.f32 %v2347, %v2367
        %v2396 = vsub.f32 %v2348, %v2369
        %v2397 = vsub.f32 %v2349, %v2371
        %v2398 = vsub.f32 %v2350, %v2373
        %v2399 = vsub.f32 %v2351, %v2375
        %v2400 = vsub.f32 %v2352, %v2377
        %v2401 = vsub.f32 %v2353, %v2379
        %v2402 = vsub.f32 %v2354, %v2381
        %v2403 = vsub.f32 %v2355, %v2383
        %v2404 = vsub.f32 %v2356, %v2385
        %v2405 = vsub.f32 %v2357, %v2387
        %v2406 = vsub.f32 %v2358, %v2389
        %v2407 = vsub.f32 %v2359, %v2391
        %v2408 = vmul.f32 %v2392, 1.442695
        %v2409 = vpow.pop %v2408
        %v2410 = vmul.f32 %v2393, 1.442695
        %v2411 = vpow.pop %v2410
        %v2412 = vmul.f32 %v2394, 1.442695
        %v2413 = vpow.pop %v2412
        %v2414 = vmul.f32 %v2395, 1.442695
        %v2415 = vpow.pop %v2414
        %v2416 = vmul.f32 %v2396, 1.442695
        %v2417 = vpow.pop %v2416
        %v2418 = vmul.f32 %v2397, 1.442695
        %v2419 = vpow.pop %v2418
        %v2420 = vmul.f32 %v2398, 1.442695
        %v2421 = vpow.pop %v2420
        %v2422 = vmul.f32 %v2399, 1.442695
        %v2423 = vpow.pop %v2422
        %v2424 = vmul.f32 %v2400, 1.442695
        %v2425 = vpow.pop %v2424
        %v2426 = vmul.f32 %v2401, 1.442695
        %v2427 = vpow.pop %v2426
        %v2428 = vmul.f32 %v2402, 1.442695
        %v2429 = vpow.pop %v2428
        %v2430 = vmul.f32 %v2403, 1.442695
        %v2431 = vpow.pop %v2430
        %v2432 = vmul.f32 %v2404, 1.442695
        %v2433 = vpow.pop %v2432
        %v2434 = vmul.f32 %v2405, 1.442695
        %v2435 = vpow.pop %v2434
        %v2436 = vmul.f32 %v2406, 1.442695
        %v2437 = vpow.pop %v2436
        %v2438 = vmul.f32 %v2407, 1.442695
        %v2439 = vpow.pop %v2438
        %2440 = vadd.xlane.f32.xlu0 %v2409
        %v2441 = vpop.xlane.xlu0 %2440
        %2442 = vadd.xlane.f32.xlu0 %v2411
        %v2443 = vpop.xlane.xlu0 %2442
        %2444 = vadd.xlane.f32.xlu0 %v2413
        %v2445 = vpop.xlane.xlu0 %2444
        %2446 = vadd.xlane.f32.xlu0 %v2415
        %v2447 = vpop.xlane.xlu0 %2446
        %2448 = vadd.xlane.f32.xlu0 %v2417
        %v2449 = vpop.xlane.xlu0 %2448
        %2450 = vadd.xlane.f32.xlu0 %v2419
        %v2451 = vpop.xlane.xlu0 %2450
        %2452 = vadd.xlane.f32.xlu0 %v2421
        %v2453 = vpop.xlane.xlu0 %2452
        %2454 = vadd.xlane.f32.xlu0 %v2423
        %v2455 = vpop.xlane.xlu0 %2454
        %2456 = vadd.xlane.f32.xlu0 %v2425
        %v2457 = vpop.xlane.xlu0 %2456
        %2458 = vadd.xlane.f32.xlu0 %v2427
        %v2459 = vpop.xlane.xlu0 %2458
        %2460 = vadd.xlane.f32.xlu0 %v2429
        %v2461 = vpop.xlane.xlu0 %2460
        %2462 = vadd.xlane.f32.xlu0 %v2431
        %v2463 = vpop.xlane.xlu0 %2462
        %2464 = vadd.xlane.f32.xlu0 %v2433
        %v2465 = vpop.xlane.xlu0 %2464
        %2466 = vadd.xlane.f32.xlu0 %v2435
        %v2467 = vpop.xlane.xlu0 %2466
        %2468 = vadd.xlane.f32.xlu0 %v2437
        %v2469 = vpop.xlane.xlu0 %2468
        %2470 = vadd.xlane.f32.xlu0 %v2439
        %v2471 = vpop.xlane.xlu0 %2470
        %v2472 = vlog2.pop %v2441
        %v2473 = vmul.f32 %v2472, 0.6931472
        %v2474 = vlog2.pop %v2443
        %v2475 = vmul.f32 %v2474, 0.6931472
        %v2476 = vlog2.pop %v2445
        %v2477 = vmul.f32 %v2476, 0.6931472
        %v2478 = vlog2.pop %v2447
        %v2479 = vmul.f32 %v2478, 0.6931472
        %v2480 = vlog2.pop %v2449
        %v2481 = vmul.f32 %v2480, 0.6931472
        %v2482 = vlog2.pop %v2451
        %v2483 = vmul.f32 %v2482, 0.6931472
        %v2484 = vlog2.pop %v2453
        %v2485 = vmul.f32 %v2484, 0.6931472
        %v2486 = vlog2.pop %v2455
        %v2487 = vmul.f32 %v2486, 0.6931472
        %v2488 = vlog2.pop %v2457
        %v2489 = vmul.f32 %v2488, 0.6931472
        %v2490 = vlog2.pop %v2459
        %v2491 = vmul.f32 %v2490, 0.6931472
        %v2492 = vlog2.pop %v2461
        %v2493 = vmul.f32 %v2492, 0.6931472
        %v2494 = vlog2.pop %v2463
        %v2495 = vmul.f32 %v2494, 0.6931472
        %v2496 = vlog2.pop %v2465
        %v2497 = vmul.f32 %v2496, 0.6931472
        %v2498 = vlog2.pop %v2467
        %v2499 = vmul.f32 %v2498, 0.6931472
        %v2500 = vlog2.pop %v2469
        %v2501 = vmul.f32 %v2500, 0.6931472
        %v2502 = vlog2.pop %v2471
        %v2503 = vmul.f32 %v2502, 0.6931472
        %v2504 = vadd.f32 %v2361, %v2473
        %v2505 = vadd.f32 %v2363, %v2475
        %v2506 = vadd.f32 %v2365, %v2477
        %v2507 = vadd.f32 %v2367, %v2479
        %v2508 = vadd.f32 %v2369, %v2481
        %v2509 = vadd.f32 %v2371, %v2483
        %v2510 = vadd.f32 %v2373, %v2485
        %v2511 = vadd.f32 %v2375, %v2487
        %v2512 = vadd.f32 %v2377, %v2489
        %v2513 = vadd.f32 %v2379, %v2491
        %v2514 = vadd.f32 %v2381, %v2493
        %v2515 = vadd.f32 %v2383, %v2495
        %v2516 = vadd.f32 %v2385, %v2497
        %v2517 = vadd.f32 %v2387, %v2499
        %v2518 = vadd.f32 %v2389, %v2501
        %v2519 = vadd.f32 %v2391, %v2503
        %v2520 = vsub.f32 0.0, %v2504
        %v2521 = vsub.f32 0.0, %v2505
        %v2522 = vsub.f32 0.0, %v2506
        %v2523 = vsub.f32 0.0, %v2507
        %v2524 = vsub.f32 0.0, %v2508
        %v2525 = vsub.f32 0.0, %v2509
        %v2526 = vsub.f32 0.0, %v2510
        %v2527 = vsub.f32 0.0, %v2511
        %v2528 = vsub.f32 0.0, %v2512
        %v2529 = vsub.f32 0.0, %v2513
        %v2530 = vsub.f32 0.0, %v2514
        %v2531 = vsub.f32 0.0, %v2515
        %v2532 = vsub.f32 0.0, %v2516
        %v2533 = vsub.f32 0.0, %v2517
        %v2534 = vsub.f32 0.0, %v2518
        %v2535 = vsub.f32 0.0, %v2519
        %2536 = vxpose.xlu0.b32.start [1/16] %v2520, 128
        %2537 = vxpose.xlu0.b32.cont [2/16] %v2521, 128
        %2538 = vxpose.xlu0.b32.cont [3/16] %v2522, 128
        %2539 = vxpose.xlu0.b32.cont [4/16] %v2523, 128
        %2540 = vxpose.xlu0.b32.cont [5/16] %v2524, 128
        %2541 = vxpose.xlu0.b32.cont [6/16] %v2525, 128
        %2542 = vxpose.xlu0.b32.cont [7/16] %v2526, 128
        %2543 = vxpose.xlu0.b32.cont [8/16] %v2527, 128
        %2544 = vxpose.xlu0.b32.cont [9/16] %v2528, 128
        %2545 = vxpose.xlu0.b32.cont [10/16] %v2529, 128
        %2546 = vxpose.xlu0.b32.cont [11/16] %v2530, 128
        %2547 = vxpose.xlu0.b32.cont [12/16] %v2531, 128
        %2548 = vxpose.xlu0.b32.cont [13/16] %v2532, 128
        %2549 = vxpose.xlu0.b32.cont [14/16] %v2533, 128
        %2550 = vxpose.xlu0.b32.cont [15/16] %v2534, 128
        %2551 = vxpose.xlu0.b32.end [16/16] %v2535, 128
        %v2552 = vpop.trf.xlu0
        %v2553 = vpop.trf.xlu0
        %v2554 = vpop.trf.xlu0
        %v2555 = vpop.trf.xlu0
        %v2556 = vpop.trf.xlu0
        %v2557 = vpop.trf.xlu0
        %v2558 = vpop.trf.xlu0
        %v2559 = vpop.trf.xlu0
        %v2560 = vpop.trf.xlu0
        %v2561 = vpop.trf.xlu0
        %v2562 = vpop.trf.xlu0
        %v2563 = vpop.trf.xlu0
        %v2564 = vpop.trf.xlu0
        %v2565 = vpop.trf.xlu0
        %v2566 = vpop.trf.xlu0
        %v2567 = vpop.trf.xlu0
        %v2568 = vlaneseq
        %v2569 = vshrl.u32 %v2568, 7
        %v2570 = vsub.s32 0, %v2569
        %v2571 = vrot.slane %v2552, %v2570
        %v2572 = vadd.f32 %v504, %v2571
        %v2573 = vadd.f32 %v505, %v2571
        %v2574 = vadd.f32 %v506, %v2571
        %v2575 = vadd.f32 %v507, %v2571
        %v2576 = vadd.f32 %v508, %v2571
        %v2577 = vadd.f32 %v509, %v2571
        %v2578 = vadd.f32 %v510, %v2571
        %v2579 = vadd.f32 %v511, %v2571
        %v2580 = vadd.f32 %v512, %v2571
        %v2581 = vadd.f32 %v513, %v2571
        %v2582 = vadd.f32 %v514, %v2571
        %v2583 = vadd.f32 %v515, %v2571
        %v2584 = vadd.f32 %v516, %v2571
        %v2585 = vadd.f32 %v517, %v2571
        %v2586 = vadd.f32 %v518, %v2571
        %v2587 = vadd.f32 %v519, %v2571
        %2588 = vmax.xlane.f32.xlu0 %v2572
        %v2589 = vpop.xlane.xlu0 %2588
        %2590 = vmax.xlane.f32.xlu0 %v2573
        %v2591 = vpop.xlane.xlu0 %2590
        %2592 = vmax.xlane.f32.xlu0 %v2574
        %v2593 = vpop.xlane.xlu0 %2592
        %2594 = vmax.xlane.f32.xlu0 %v2575
        %v2595 = vpop.xlane.xlu0 %2594
        %2596 = vmax.xlane.f32.xlu0 %v2576
        %v2597 = vpop.xlane.xlu0 %2596
        %2598 = vmax.xlane.f32.xlu0 %v2577
        %v2599 = vpop.xlane.xlu0 %2598
        %2600 = vmax.xlane.f32.xlu0 %v2578
        %v2601 = vpop.xlane.xlu0 %2600
        %2602 = vmax.xlane.f32.xlu0 %v2579
        %v2603 = vpop.xlane.xlu0 %2602
        %2604 = vmax.xlane.f32.xlu0 %v2580
        %v2605 = vpop.xlane.xlu0 %2604
        %2606 = vmax.xlane.f32.xlu0 %v2581
        %v2607 = vpop.xlane.xlu0 %2606
        %2608 = vmax.xlane.f32.xlu0 %v2582
        %v2609 = vpop.xlane.xlu0 %2608
        %2610 = vmax.xlane.f32.xlu0 %v2583
        %v2611 = vpop.xlane.xlu0 %2610
        %2612 = vmax.xlane.f32.xlu0 %v2584
        %v2613 = vpop.xlane.xlu0 %2612
        %2614 = vmax.xlane.f32.xlu0 %v2585
        %v2615 = vpop.xlane.xlu0 %2614
        %2616 = vmax.xlane.f32.xlu0 %v2586
        %v2617 = vpop.xlane.xlu0 %2616
        %2618 = vmax.xlane.f32.xlu0 %v2587
        %v2619 = vpop.xlane.xlu0 %2618
        %v2620 = vsub.f32 %v2572, %v2589
        %v2621 = vsub.f32 %v2573, %v2591
        %v2622 = vsub.f32 %v2574, %v2593
        %v2623 = vsub.f32 %v2575, %v2595
        %v2624 = vsub.f32 %v2576, %v2597
        %v2625 = vsub.f32 %v2577, %v2599
        %v2626 = vsub.f32 %v2578, %v2601
        %v2627 = vsub.f32 %v2579, %v2603
        %v2628 = vsub.f32 %v2580, %v2605
        %v2629 = vsub.f32 %v2581, %v2607
        %v2630 = vsub.f32 %v2582, %v2609
        %v2631 = vsub.f32 %v2583, %v2611
        %v2632 = vsub.f32 %v2584, %v2613
        %v2633 = vsub.f32 %v2585, %v2615
        %v2634 = vsub.f32 %v2586, %v2617
        %v2635 = vsub.f32 %v2587, %v2619
        %v2636 = vmul.f32 %v2620, 1.442695
        %v2637 = vpow.pop %v2636
        %v2638 = vmul.f32 %v2621, 1.442695
        %v2639 = vpow.pop %v2638
        %v2640 = vmul.f32 %v2622, 1.442695
        %v2641 = vpow.pop %v2640
        %v2642 = vmul.f32 %v2623, 1.442695
        %v2643 = vpow.pop %v2642
        %v2644 = vmul.f32 %v2624, 1.442695
        %v2645 = vpow.pop %v2644
        %v2646 = vmul.f32 %v2625, 1.442695
        %v2647 = vpow.pop %v2646
        %v2648 = vmul.f32 %v2626, 1.442695
        %v2649 = vpow.pop %v2648
        %v2650 = vmul.f32 %v2627, 1.442695
        %v2651 = vpow.pop %v2650
        %v2652 = vmul.f32 %v2628, 1.442695
        %v2653 = vpow.pop %v2652
        %v2654 = vmul.f32 %v2629, 1.442695
        %v2655 = vpow.pop %v2654
        %v2656 = vmul.f32 %v2630, 1.442695
        %v2657 = vpow.pop %v2656
        %v2658 = vmul.f32 %v2631, 1.442695
        %v2659 = vpow.pop %v2658
        %v2660 = vmul.f32 %v2632, 1.442695
        %v2661 = vpow.pop %v2660
        %v2662 = vmul.f32 %v2633, 1.442695
        %v2663 = vpow.pop %v2662
        %v2664 = vmul.f32 %v2634, 1.442695
        %v2665 = vpow.pop %v2664
        %v2666 = vmul.f32 %v2635, 1.442695
        %v2667 = vpow.pop %v2666
        %2668 = vadd.xlane.f32.xlu0 %v2637
        %v2669 = vpop.xlane.xlu0 %2668
        %2670 = vadd.xlane.f32.xlu0 %v2639
        %v2671 = vpop.xlane.xlu0 %2670
        %2672 = vadd.xlane.f32.xlu0 %v2641
        %v2673 = vpop.xlane.xlu0 %2672
        %2674 = vadd.xlane.f32.xlu0 %v2643
        %v2675 = vpop.xlane.xlu0 %2674
        %2676 = vadd.xlane.f32.xlu0 %v2645
        %v2677 = vpop.xlane.xlu0 %2676
        %2678 = vadd.xlane.f32.xlu0 %v2647
        %v2679 = vpop.xlane.xlu0 %2678
        %2680 = vadd.xlane.f32.xlu0 %v2649
        %v2681 = vpop.xlane.xlu0 %2680
        %2682 = vadd.xlane.f32.xlu0 %v2651
        %v2683 = vpop.xlane.xlu0 %2682
        %2684 = vadd.xlane.f32.xlu0 %v2653
        %v2685 = vpop.xlane.xlu0 %2684
        %2686 = vadd.xlane.f32.xlu0 %v2655
        %v2687 = vpop.xlane.xlu0 %2686
        %2688 = vadd.xlane.f32.xlu0 %v2657
        %v2689 = vpop.xlane.xlu0 %2688
        %2690 = vadd.xlane.f32.xlu0 %v2659
        %v2691 = vpop.xlane.xlu0 %2690
        %2692 = vadd.xlane.f32.xlu0 %v2661
        %v2693 = vpop.xlane.xlu0 %2692
        %2694 = vadd.xlane.f32.xlu0 %v2663
        %v2695 = vpop.xlane.xlu0 %2694
        %2696 = vadd.xlane.f32.xlu0 %v2665
        %v2697 = vpop.xlane.xlu0 %2696
        %2698 = vadd.xlane.f32.xlu0 %v2667
        %v2699 = vpop.xlane.xlu0 %2698
        %v2700 = vlog2.pop %v2669
        %v2701 = vmul.f32 %v2700, 0.6931472
        %v2702 = vlog2.pop %v2671
        %v2703 = vmul.f32 %v2702, 0.6931472
        %v2704 = vlog2.pop %v2673
        %v2705 = vmul.f32 %v2704, 0.6931472
        %v2706 = vlog2.pop %v2675
        %v2707 = vmul.f32 %v2706, 0.6931472
        %v2708 = vlog2.pop %v2677
        %v2709 = vmul.f32 %v2708, 0.6931472
        %v2710 = vlog2.pop %v2679
        %v2711 = vmul.f32 %v2710, 0.6931472
        %v2712 = vlog2.pop %v2681
        %v2713 = vmul.f32 %v2712, 0.6931472
        %v2714 = vlog2.pop %v2683
        %v2715 = vmul.f32 %v2714, 0.6931472
        %v2716 = vlog2.pop %v2685
        %v2717 = vmul.f32 %v2716, 0.6931472
        %v2718 = vlog2.pop %v2687
        %v2719 = vmul.f32 %v2718, 0.6931472
        %v2720 = vlog2.pop %v2689
        %v2721 = vmul.f32 %v2720, 0.6931472
        %v2722 = vlog2.pop %v2691
        %v2723 = vmul.f32 %v2722, 0.6931472
        %v2724 = vlog2.pop %v2693
        %v2725 = vmul.f32 %v2724, 0.6931472
        %v2726 = vlog2.pop %v2695
        %v2727 = vmul.f32 %v2726, 0.6931472
        %v2728 = vlog2.pop %v2697
        %v2729 = vmul.f32 %v2728, 0.6931472
        %v2730 = vlog2.pop %v2699
        %v2731 = vmul.f32 %v2730, 0.6931472
        %v2732 = vadd.f32 %v2589, %v2701
        %v2733 = vadd.f32 %v2591, %v2703
        %v2734 = vadd.f32 %v2593, %v2705
        %v2735 = vadd.f32 %v2595, %v2707
        %v2736 = vadd.f32 %v2597, %v2709
        %v2737 = vadd.f32 %v2599, %v2711
        %v2738 = vadd.f32 %v2601, %v2713
        %v2739 = vadd.f32 %v2603, %v2715
        %v2740 = vadd.f32 %v2605, %v2717
        %v2741 = vadd.f32 %v2607, %v2719
        %v2742 = vadd.f32 %v2609, %v2721
        %v2743 = vadd.f32 %v2611, %v2723
        %v2744 = vadd.f32 %v2613, %v2725
        %v2745 = vadd.f32 %v2615, %v2727
        %v2746 = vadd.f32 %v2617, %v2729
        %v2747 = vadd.f32 %v2619, %v2731
        %v2748 = vsub.f32 0.0, %v2732
        %v2749 = vsub.f32 0.0, %v2733
        %v2750 = vsub.f32 0.0, %v2734
        %v2751 = vsub.f32 0.0, %v2735
        %v2752 = vsub.f32 0.0, %v2736
        %v2753 = vsub.f32 0.0, %v2737
        %v2754 = vsub.f32 0.0, %v2738
        %v2755 = vsub.f32 0.0, %v2739
        %v2756 = vsub.f32 0.0, %v2740
        %v2757 = vsub.f32 0.0, %v2741
        %v2758 = vsub.f32 0.0, %v2742
        %v2759 = vsub.f32 0.0, %v2743
        %v2760 = vsub.f32 0.0, %v2744
        %v2761 = vsub.f32 0.0, %v2745
        %v2762 = vsub.f32 0.0, %v2746
        %v2763 = vsub.f32 0.0, %v2747
        %2764 = vxpose.xlu0.b32.start [1/16] %v2748, 128
        %2765 = vxpose.xlu0.b32.cont [2/16] %v2749, 128
        %2766 = vxpose.xlu0.b32.cont [3/16] %v2750, 128
        %2767 = vxpose.xlu0.b32.cont [4/16] %v2751, 128
        %2768 = vxpose.xlu0.b32.cont [5/16] %v2752, 128
        %2769 = vxpose.xlu0.b32.cont [6/16] %v2753, 128
        %2770 = vxpose.xlu0.b32.cont [7/16] %v2754, 128
        %2771 = vxpose.xlu0.b32.cont [8/16] %v2755, 128
        %2772 = vxpose.xlu0.b32.cont [9/16] %v2756, 128
        %2773 = vxpose.xlu0.b32.cont [10/16] %v2757, 128
        %2774 = vxpose.xlu0.b32.cont [11/16] %v2758, 128
        %2775 = vxpose.xlu0.b32.cont [12/16] %v2759, 128
        %2776 = vxpose.xlu0.b32.cont [13/16] %v2760, 128
        %2777 = vxpose.xlu0.b32.cont [14/16] %v2761, 128
        %2778 = vxpose.xlu0.b32.cont [15/16] %v2762, 128
        %2779 = vxpose.xlu0.b32.end [16/16] %v2763, 128
        %v2780 = vpop.trf.xlu0
        %v2781 = vpop.trf.xlu0
        %v2782 = vpop.trf.xlu0
        %v2783 = vpop.trf.xlu0
        %v2784 = vpop.trf.xlu0
        %v2785 = vpop.trf.xlu0
        %v2786 = vpop.trf.xlu0
        %v2787 = vpop.trf.xlu0
        %v2788 = vpop.trf.xlu0
        %v2789 = vpop.trf.xlu0
        %v2790 = vpop.trf.xlu0
        %v2791 = vpop.trf.xlu0
        %v2792 = vpop.trf.xlu0
        %v2793 = vpop.trf.xlu0
        %v2794 = vpop.trf.xlu0
        %v2795 = vpop.trf.xlu0
        %v2796 = vlaneseq
        %v2797 = vshrl.u32 %v2796, 7
        %v2798 = vsub.s32 0, %v2797
        %v2799 = vrot.slane %v2780, %v2798
        %v2800 = vadd.f32 %v504, %v2799
        %v2801 = vadd.f32 %v505, %v2799
        %v2802 = vadd.f32 %v506, %v2799
        %v2803 = vadd.f32 %v507, %v2799
        %v2804 = vadd.f32 %v508, %v2799
        %v2805 = vadd.f32 %v509, %v2799
        %v2806 = vadd.f32 %v510, %v2799
        %v2807 = vadd.f32 %v511, %v2799
        %v2808 = vadd.f32 %v512, %v2799
        %v2809 = vadd.f32 %v513, %v2799
        %v2810 = vadd.f32 %v514, %v2799
        %v2811 = vadd.f32 %v515, %v2799
        %v2812 = vadd.f32 %v516, %v2799
        %v2813 = vadd.f32 %v517, %v2799
        %v2814 = vadd.f32 %v518, %v2799
        %v2815 = vadd.f32 %v519, %v2799
        %2816 = vmax.xlane.f32.xlu0 %v2800
        %v2817 = vpop.xlane.xlu0 %2816
        %2818 = vmax.xlane.f32.xlu0 %v2801
        %v2819 = vpop.xlane.xlu0 %2818
        %2820 = vmax.xlane.f32.xlu0 %v2802
        %v2821 = vpop.xlane.xlu0 %2820
        %2822 = vmax.xlane.f32.xlu0 %v2803
        %v2823 = vpop.xlane.xlu0 %2822
        %2824 = vmax.xlane.f32.xlu0 %v2804
        %v2825 = vpop.xlane.xlu0 %2824
        %2826 = vmax.xlane.f32.xlu0 %v2805
        %v2827 = vpop.xlane.xlu0 %2826
        %2828 = vmax.xlane.f32.xlu0 %v2806
        %v2829 = vpop.xlane.xlu0 %2828
        %2830 = vmax.xlane.f32.xlu0 %v2807
        %v2831 = vpop.xlane.xlu0 %2830
        %2832 = vmax.xlane.f32.xlu0 %v2808
        %v2833 = vpop.xlane.xlu0 %2832
        %2834 = vmax.xlane.f32.xlu0 %v2809
        %v2835 = vpop.xlane.xlu0 %2834
        %2836 = vmax.xlane.f32.xlu0 %v2810
        %v2837 = vpop.xlane.xlu0 %2836
        %2838 = vmax.xlane.f32.xlu0 %v2811
        %v2839 = vpop.xlane.xlu0 %2838
        %2840 = vmax.xlane.f32.xlu0 %v2812
        %v2841 = vpop.xlane.xlu0 %2840
        %2842 = vmax.xlane.f32.xlu0 %v2813
        %v2843 = vpop.xlane.xlu0 %2842
        %2844 = vmax.xlane.f32.xlu0 %v2814
        %v2845 = vpop.xlane.xlu0 %2844
        %2846 = vmax.xlane.f32.xlu0 %v2815
        %v2847 = vpop.xlane.xlu0 %2846
        %v2848 = vsub.f32 %v2800, %v2817
        %v2849 = vsub.f32 %v2801, %v2819
        %v2850 = vsub.f32 %v2802, %v2821
        %v2851 = vsub.f32 %v2803, %v2823
        %v2852 = vsub.f32 %v2804, %v2825
        %v2853 = vsub.f32 %v2805, %v2827
        %v2854 = vsub.f32 %v2806, %v2829
        %v2855 = vsub.f32 %v2807, %v2831
        %v2856 = vsub.f32 %v2808, %v2833
        %v2857 = vsub.f32 %v2809, %v2835
        %v2858 = vsub.f32 %v2810, %v2837
        %v2859 = vsub.f32 %v2811, %v2839
        %v2860 = vsub.f32 %v2812, %v2841
        %v2861 = vsub.f32 %v2813, %v2843
        %v2862 = vsub.f32 %v2814, %v2845
        %v2863 = vsub.f32 %v2815, %v2847
        %v2864 = vmul.f32 %v2848, 1.442695
        %v2865 = vpow.pop %v2864
        %v2866 = vmul.f32 %v2849, 1.442695
        %v2867 = vpow.pop %v2866
        %v2868 = vmul.f32 %v2850, 1.442695
        %v2869 = vpow.pop %v2868
        %v2870 = vmul.f32 %v2851, 1.442695
        %v2871 = vpow.pop %v2870
        %v2872 = vmul.f32 %v2852, 1.442695
        %v2873 = vpow.pop %v2872
        %v2874 = vmul.f32 %v2853, 1.442695
        %v2875 = vpow.pop %v2874
        %v2876 = vmul.f32 %v2854, 1.442695
        %v2877 = vpow.pop %v2876
        %v2878 = vmul.f32 %v2855, 1.442695
        %v2879 = vpow.pop %v2878
        %v2880 = vmul.f32 %v2856, 1.442695
        %v2881 = vpow.pop %v2880
        %v2882 = vmul.f32 %v2857, 1.442695
        %v2883 = vpow.pop %v2882
        %v2884 = vmul.f32 %v2858, 1.442695
        %v2885 = vpow.pop %v2884
        %v2886 = vmul.f32 %v2859, 1.442695
        %v2887 = vpow.pop %v2886
        %v2888 = vmul.f32 %v2860, 1.442695
        %v2889 = vpow.pop %v2888
        %v2890 = vmul.f32 %v2861, 1.442695
        %v2891 = vpow.pop %v2890
        %v2892 = vmul.f32 %v2862, 1.442695
        %v2893 = vpow.pop %v2892
        %v2894 = vmul.f32 %v2863, 1.442695
        %v2895 = vpow.pop %v2894
        %2896 = vadd.xlane.f32.xlu0 %v2865
        %v2897 = vpop.xlane.xlu0 %2896
        %2898 = vadd.xlane.f32.xlu0 %v2867
        %v2899 = vpop.xlane.xlu0 %2898
        %2900 = vadd.xlane.f32.xlu0 %v2869
        %v2901 = vpop.xlane.xlu0 %2900
        %2902 = vadd.xlane.f32.xlu0 %v2871
        %v2903 = vpop.xlane.xlu0 %2902
        %2904 = vadd.xlane.f32.xlu0 %v2873
        %v2905 = vpop.xlane.xlu0 %2904
        %2906 = vadd.xlane.f32.xlu0 %v2875
        %v2907 = vpop.xlane.xlu0 %2906
        %2908 = vadd.xlane.f32.xlu0 %v2877
        %v2909 = vpop.xlane.xlu0 %2908
        %2910 = vadd.xlane.f32.xlu0 %v2879
        %v2911 = vpop.xlane.xlu0 %2910
        %2912 = vadd.xlane.f32.xlu0 %v2881
        %v2913 = vpop.xlane.xlu0 %2912
        %2914 = vadd.xlane.f32.xlu0 %v2883
        %v2915 = vpop.xlane.xlu0 %2914
        %2916 = vadd.xlane.f32.xlu0 %v2885
        %v2917 = vpop.xlane.xlu0 %2916
        %2918 = vadd.xlane.f32.xlu0 %v2887
        %v2919 = vpop.xlane.xlu0 %2918
        %2920 = vadd.xlane.f32.xlu0 %v2889
        %v2921 = vpop.xlane.xlu0 %2920
        %2922 = vadd.xlane.f32.xlu0 %v2891
        %v2923 = vpop.xlane.xlu0 %2922
        %2924 = vadd.xlane.f32.xlu0 %v2893
        %v2925 = vpop.xlane.xlu0 %2924
        %2926 = vadd.xlane.f32.xlu0 %v2895
        %v2927 = vpop.xlane.xlu0 %2926
        %v2928 = vlog2.pop %v2897
        %v2929 = vmul.f32 %v2928, 0.6931472
        %v2930 = vlog2.pop %v2899
        %v2931 = vmul.f32 %v2930, 0.6931472
        %v2932 = vlog2.pop %v2901
        %v2933 = vmul.f32 %v2932, 0.6931472
        %v2934 = vlog2.pop %v2903
        %v2935 = vmul.f32 %v2934, 0.6931472
        %v2936 = vlog2.pop %v2905
        %v2937 = vmul.f32 %v2936, 0.6931472
        %v2938 = vlog2.pop %v2907
        %v2939 = vmul.f32 %v2938, 0.6931472
        %v2940 = vlog2.pop %v2909
        %v2941 = vmul.f32 %v2940, 0.6931472
        %v2942 = vlog2.pop %v2911
        %v2943 = vmul.f32 %v2942, 0.6931472
        %v2944 = vlog2.pop %v2913
        %v2945 = vmul.f32 %v2944, 0.6931472
        %v2946 = vlog2.pop %v2915
        %v2947 = vmul.f32 %v2946, 0.6931472
        %v2948 = vlog2.pop %v2917
        %v2949 = vmul.f32 %v2948, 0.6931472
        %v2950 = vlog2.pop %v2919
        %v2951 = vmul.f32 %v2950, 0.6931472
        %v2952 = vlog2.pop %v2921
        %v2953 = vmul.f32 %v2952, 0.6931472
        %v2954 = vlog2.pop %v2923
        %v2955 = vmul.f32 %v2954, 0.6931472
        %v2956 = vlog2.pop %v2925
        %v2957 = vmul.f32 %v2956, 0.6931472
        %v2958 = vlog2.pop %v2927
        %v2959 = vmul.f32 %v2958, 0.6931472
        %v2960 = vadd.f32 %v2817, %v2929
        %v2961 = vadd.f32 %v2819, %v2931
        %v2962 = vadd.f32 %v2821, %v2933
        %v2963 = vadd.f32 %v2823, %v2935
        %v2964 = vadd.f32 %v2825, %v2937
        %v2965 = vadd.f32 %v2827, %v2939
        %v2966 = vadd.f32 %v2829, %v2941
        %v2967 = vadd.f32 %v2831, %v2943
        %v2968 = vadd.f32 %v2833, %v2945
        %v2969 = vadd.f32 %v2835, %v2947
        %v2970 = vadd.f32 %v2837, %v2949
        %v2971 = vadd.f32 %v2839, %v2951
        %v2972 = vadd.f32 %v2841, %v2953
        %v2973 = vadd.f32 %v2843, %v2955
        %v2974 = vadd.f32 %v2845, %v2957
        %v2975 = vadd.f32 %v2847, %v2959
        %v2976 = vsub.f32 0.0, %v2960
        %v2977 = vsub.f32 0.0, %v2961
        %v2978 = vsub.f32 0.0, %v2962
        %v2979 = vsub.f32 0.0, %v2963
        %v2980 = vsub.f32 0.0, %v2964
        %v2981 = vsub.f32 0.0, %v2965
        %v2982 = vsub.f32 0.0, %v2966
        %v2983 = vsub.f32 0.0, %v2967
        %v2984 = vsub.f32 0.0, %v2968
        %v2985 = vsub.f32 0.0, %v2969
        %v2986 = vsub.f32 0.0, %v2970
        %v2987 = vsub.f32 0.0, %v2971
        %v2988 = vsub.f32 0.0, %v2972
        %v2989 = vsub.f32 0.0, %v2973
        %v2990 = vsub.f32 0.0, %v2974
        %v2991 = vsub.f32 0.0, %v2975
        %2992 = vxpose.xlu0.b32.start [1/16] %v2976, 128
        %2993 = vxpose.xlu0.b32.cont [2/16] %v2977, 128
        %2994 = vxpose.xlu0.b32.cont [3/16] %v2978, 128
        %2995 = vxpose.xlu0.b32.cont [4/16] %v2979, 128
        %2996 = vxpose.xlu0.b32.cont [5/16] %v2980, 128
        %2997 = vxpose.xlu0.b32.cont [6/16] %v2981, 128
        %2998 = vxpose.xlu0.b32.cont [7/16] %v2982, 128
        %2999 = vxpose.xlu0.b32.cont [8/16] %v2983, 128
        %3000 = vxpose.xlu0.b32.cont [9/16] %v2984, 128
        %3001 = vxpose.xlu0.b32.cont [10/16] %v2985, 128
        %3002 = vxpose.xlu0.b32.cont [11/16] %v2986, 128
        %3003 = vxpose.xlu0.b32.cont [12/16] %v2987, 128
        %3004 = vxpose.xlu0.b32.cont [13/16] %v2988, 128
        %3005 = vxpose.xlu0.b32.cont [14/16] %v2989, 128
        %3006 = vxpose.xlu0.b32.cont [15/16] %v2990, 128
        %3007 = vxpose.xlu0.b32.end [16/16] %v2991, 128
        %v3008 = vpop.trf.xlu0
        %v3009 = vpop.trf.xlu0
        %v3010 = vpop.trf.xlu0
        %v3011 = vpop.trf.xlu0
        %v3012 = vpop.trf.xlu0
        %v3013 = vpop.trf.xlu0
        %v3014 = vpop.trf.xlu0
        %v3015 = vpop.trf.xlu0
        %v3016 = vpop.trf.xlu0
        %v3017 = vpop.trf.xlu0
        %v3018 = vpop.trf.xlu0
        %v3019 = vpop.trf.xlu0
        %v3020 = vpop.trf.xlu0
        %v3021 = vpop.trf.xlu0
        %v3022 = vpop.trf.xlu0
        %v3023 = vpop.trf.xlu0
        %v3024 = vlaneseq
        %v3025 = vshrl.u32 %v3024, 7
        %v3026 = vsub.s32 0, %v3025
        %v3027 = vrot.slane %v3008, %v3026
        %v3028 = vadd.f32 %v504, %v3027
        %v3029 = vadd.f32 %v505, %v3027
        %v3030 = vadd.f32 %v506, %v3027
        %v3031 = vadd.f32 %v507, %v3027
        %v3032 = vadd.f32 %v508, %v3027
        %v3033 = vadd.f32 %v509, %v3027
        %v3034 = vadd.f32 %v510, %v3027
        %v3035 = vadd.f32 %v511, %v3027
        %v3036 = vadd.f32 %v512, %v3027
        %v3037 = vadd.f32 %v513, %v3027
        %v3038 = vadd.f32 %v514, %v3027
        %v3039 = vadd.f32 %v515, %v3027
        %v3040 = vadd.f32 %v516, %v3027
        %v3041 = vadd.f32 %v517, %v3027
        %v3042 = vadd.f32 %v518, %v3027
        %v3043 = vadd.f32 %v519, %v3027
        %3044 = vmax.xlane.f32.xlu0 %v3028
        %v3045 = vpop.xlane.xlu0 %3044
        %3046 = vmax.xlane.f32.xlu0 %v3029
        %v3047 = vpop.xlane.xlu0 %3046
        %3048 = vmax.xlane.f32.xlu0 %v3030
        %v3049 = vpop.xlane.xlu0 %3048
        %3050 = vmax.xlane.f32.xlu0 %v3031
        %v3051 = vpop.xlane.xlu0 %3050
        %3052 = vmax.xlane.f32.xlu0 %v3032
        %v3053 = vpop.xlane.xlu0 %3052
        %3054 = vmax.xlane.f32.xlu0 %v3033
        %v3055 = vpop.xlane.xlu0 %3054
        %3056 = vmax.xlane.f32.xlu0 %v3034
        %v3057 = vpop.xlane.xlu0 %3056
        %3058 = vmax.xlane.f32.xlu0 %v3035
        %v3059 = vpop.xlane.xlu0 %3058
        %3060 = vmax.xlane.f32.xlu0 %v3036
        %v3061 = vpop.xlane.xlu0 %3060
        %3062 = vmax.xlane.f32.xlu0 %v3037
        %v3063 = vpop.xlane.xlu0 %3062
        %3064 = vmax.xlane.f32.xlu0 %v3038
        %v3065 = vpop.xlane.xlu0 %3064
        %3066 = vmax.xlane.f32.xlu0 %v3039
        %v3067 = vpop.xlane.xlu0 %3066
        %3068 = vmax.xlane.f32.xlu0 %v3040
        %v3069 = vpop.xlane.xlu0 %3068
        %3070 = vmax.xlane.f32.xlu0 %v3041
        %v3071 = vpop.xlane.xlu0 %3070
        %3072 = vmax.xlane.f32.xlu0 %v3042
        %v3073 = vpop.xlane.xlu0 %3072
        %3074 = vmax.xlane.f32.xlu0 %v3043
        %v3075 = vpop.xlane.xlu0 %3074
        %v3076 = vsub.f32 %v3028, %v3045
        %v3077 = vsub.f32 %v3029, %v3047
        %v3078 = vsub.f32 %v3030, %v3049
        %v3079 = vsub.f32 %v3031, %v3051
        %v3080 = vsub.f32 %v3032, %v3053
        %v3081 = vsub.f32 %v3033, %v3055
        %v3082 = vsub.f32 %v3034, %v3057
        %v3083 = vsub.f32 %v3035, %v3059
        %v3084 = vsub.f32 %v3036, %v3061
        %v3085 = vsub.f32 %v3037, %v3063
        %v3086 = vsub.f32 %v3038, %v3065
        %v3087 = vsub.f32 %v3039, %v3067
        %v3088 = vsub.f32 %v3040, %v3069
        %v3089 = vsub.f32 %v3041, %v3071
        %v3090 = vsub.f32 %v3042, %v3073
        %v3091 = vsub.f32 %v3043, %v3075
        %v3092 = vmul.f32 %v3076, 1.442695
        %v3093 = vpow.pop %v3092
        %v3094 = vmul.f32 %v3077, 1.442695
        %v3095 = vpow.pop %v3094
        %v3096 = vmul.f32 %v3078, 1.442695
        %v3097 = vpow.pop %v3096
        %v3098 = vmul.f32 %v3079, 1.442695
        %v3099 = vpow.pop %v3098
        %v3100 = vmul.f32 %v3080, 1.442695
        %v3101 = vpow.pop %v3100
        %v3102 = vmul.f32 %v3081, 1.442695
        %v3103 = vpow.pop %v3102
        %v3104 = vmul.f32 %v3082, 1.442695
        %v3105 = vpow.pop %v3104
        %v3106 = vmul.f32 %v3083, 1.442695
        %v3107 = vpow.pop %v3106
        %v3108 = vmul.f32 %v3084, 1.442695
        %v3109 = vpow.pop %v3108
        %v3110 = vmul.f32 %v3085, 1.442695
        %v3111 = vpow.pop %v3110
        %v3112 = vmul.f32 %v3086, 1.442695
        %v3113 = vpow.pop %v3112
        %v3114 = vmul.f32 %v3087, 1.442695
        %v3115 = vpow.pop %v3114
        %v3116 = vmul.f32 %v3088, 1.442695
        %v3117 = vpow.pop %v3116
        %v3118 = vmul.f32 %v3089, 1.442695
        %v3119 = vpow.pop %v3118
        %v3120 = vmul.f32 %v3090, 1.442695
        %v3121 = vpow.pop %v3120
        %v3122 = vmul.f32 %v3091, 1.442695
        %v3123 = vpow.pop %v3122
        %3124 = vadd.xlane.f32.xlu0 %v3093
        %v3125 = vpop.xlane.xlu0 %3124
        %3126 = vadd.xlane.f32.xlu0 %v3095
        %v3127 = vpop.xlane.xlu0 %3126
        %3128 = vadd.xlane.f32.xlu0 %v3097
        %v3129 = vpop.xlane.xlu0 %3128
        %3130 = vadd.xlane.f32.xlu0 %v3099
        %v3131 = vpop.xlane.xlu0 %3130
        %3132 = vadd.xlane.f32.xlu0 %v3101
        %v3133 = vpop.xlane.xlu0 %3132
        %3134 = vadd.xlane.f32.xlu0 %v3103
        %v3135 = vpop.xlane.xlu0 %3134
        %3136 = vadd.xlane.f32.xlu0 %v3105
        %v3137 = vpop.xlane.xlu0 %3136
        %3138 = vadd.xlane.f32.xlu0 %v3107
        %v3139 = vpop.xlane.xlu0 %3138
        %3140 = vadd.xlane.f32.xlu0 %v3109
        %v3141 = vpop.xlane.xlu0 %3140
        %3142 = vadd.xlane.f32.xlu0 %v3111
        %v3143 = vpop.xlane.xlu0 %3142
        %3144 = vadd.xlane.f32.xlu0 %v3113
        %v3145 = vpop.xlane.xlu0 %3144
        %3146 = vadd.xlane.f32.xlu0 %v3115
        %v3147 = vpop.xlane.xlu0 %3146
        %3148 = vadd.xlane.f32.xlu0 %v3117
        %v3149 = vpop.xlane.xlu0 %3148
        %3150 = vadd.xlane.f32.xlu0 %v3119
        %v3151 = vpop.xlane.xlu0 %3150
        %3152 = vadd.xlane.f32.xlu0 %v3121
        %v3153 = vpop.xlane.xlu0 %3152
        %3154 = vadd.xlane.f32.xlu0 %v3123
        %v3155 = vpop.xlane.xlu0 %3154
        %v3156 = vlog2.pop %v3125
        %v3157 = vmul.f32 %v3156, 0.6931472
        %v3158 = vlog2.pop %v3127
        %v3159 = vmul.f32 %v3158, 0.6931472
        %v3160 = vlog2.pop %v3129
        %v3161 = vmul.f32 %v3160, 0.6931472
        %v3162 = vlog2.pop %v3131
        %v3163 = vmul.f32 %v3162, 0.6931472
        %v3164 = vlog2.pop %v3133
        %v3165 = vmul.f32 %v3164, 0.6931472
        %v3166 = vlog2.pop %v3135
        %v3167 = vmul.f32 %v3166, 0.6931472
        %v3168 = vlog2.pop %v3137
        %v3169 = vmul.f32 %v3168, 0.6931472
        %v3170 = vlog2.pop %v3139
        %v3171 = vmul.f32 %v3170, 0.6931472
        %v3172 = vlog2.pop %v3141
        %v3173 = vmul.f32 %v3172, 0.6931472
        %v3174 = vlog2.pop %v3143
        %v3175 = vmul.f32 %v3174, 0.6931472
        %v3176 = vlog2.pop %v3145
        %v3177 = vmul.f32 %v3176, 0.6931472
        %v3178 = vlog2.pop %v3147
        %v3179 = vmul.f32 %v3178, 0.6931472
        %v3180 = vlog2.pop %v3149
        %v3181 = vmul.f32 %v3180, 0.6931472
        %v3182 = vlog2.pop %v3151
        %v3183 = vmul.f32 %v3182, 0.6931472
        %v3184 = vlog2.pop %v3153
        %v3185 = vmul.f32 %v3184, 0.6931472
        %v3186 = vlog2.pop %v3155
        %v3187 = vmul.f32 %v3186, 0.6931472
        %v3188 = vadd.f32 %v3045, %v3157
        %v3189 = vadd.f32 %v3047, %v3159
        %v3190 = vadd.f32 %v3049, %v3161
        %v3191 = vadd.f32 %v3051, %v3163
        %v3192 = vadd.f32 %v3053, %v3165
        %v3193 = vadd.f32 %v3055, %v3167
        %v3194 = vadd.f32 %v3057, %v3169
        %v3195 = vadd.f32 %v3059, %v3171
        %v3196 = vadd.f32 %v3061, %v3173
        %v3197 = vadd.f32 %v3063, %v3175
        %v3198 = vadd.f32 %v3065, %v3177
        %v3199 = vadd.f32 %v3067, %v3179
        %v3200 = vadd.f32 %v3069, %v3181
        %v3201 = vadd.f32 %v3071, %v3183
        %v3202 = vadd.f32 %v3073, %v3185
        %v3203 = vadd.f32 %v3075, %v3187
        %v3204 = vsub.f32 0.0, %v3188
        %v3205 = vsub.f32 0.0, %v3189
        %v3206 = vsub.f32 0.0, %v3190
        %v3207 = vsub.f32 0.0, %v3191
        %v3208 = vsub.f32 0.0, %v3192
        %v3209 = vsub.f32 0.0, %v3193
        %v3210 = vsub.f32 0.0, %v3194
        %v3211 = vsub.f32 0.0, %v3195
        %v3212 = vsub.f32 0.0, %v3196
        %v3213 = vsub.f32 0.0, %v3197
        %v3214 = vsub.f32 0.0, %v3198
        %v3215 = vsub.f32 0.0, %v3199
        %v3216 = vsub.f32 0.0, %v3200
        %v3217 = vsub.f32 0.0, %v3201
        %v3218 = vsub.f32 0.0, %v3202
        %v3219 = vsub.f32 0.0, %v3203
        %3220 = vxpose.xlu0.b32.start [1/16] %v3204, 128
        %3221 = vxpose.xlu0.b32.cont [2/16] %v3205, 128
        %3222 = vxpose.xlu0.b32.cont [3/16] %v3206, 128
        %3223 = vxpose.xlu0.b32.cont [4/16] %v3207, 128
        %3224 = vxpose.xlu0.b32.cont [5/16] %v3208, 128
        %3225 = vxpose.xlu0.b32.cont [6/16] %v3209, 128
        %3226 = vxpose.xlu0.b32.cont [7/16] %v3210, 128
        %3227 = vxpose.xlu0.b32.cont [8/16] %v3211, 128
        %3228 = vxpose.xlu0.b32.cont [9/16] %v3212, 128
        %3229 = vxpose.xlu0.b32.cont [10/16] %v3213, 128
        %3230 = vxpose.xlu0.b32.cont [11/16] %v3214, 128
        %3231 = vxpose.xlu0.b32.cont [12/16] %v3215, 128
        %3232 = vxpose.xlu0.b32.cont [13/16] %v3216, 128
        %3233 = vxpose.xlu0.b32.cont [14/16] %v3217, 128
        %3234 = vxpose.xlu0.b32.cont [15/16] %v3218, 128
        %3235 = vxpose.xlu0.b32.end [16/16] %v3219, 128
        %v3236 = vpop.trf.xlu0
        %v3237 = vpop.trf.xlu0
        %v3238 = vpop.trf.xlu0
        %v3239 = vpop.trf.xlu0
        %v3240 = vpop.trf.xlu0
        %v3241 = vpop.trf.xlu0
        %v3242 = vpop.trf.xlu0
        %v3243 = vpop.trf.xlu0
        %v3244 = vpop.trf.xlu0
        %v3245 = vpop.trf.xlu0
        %v3246 = vpop.trf.xlu0
        %v3247 = vpop.trf.xlu0
        %v3248 = vpop.trf.xlu0
        %v3249 = vpop.trf.xlu0
        %v3250 = vpop.trf.xlu0
        %v3251 = vpop.trf.xlu0
        %v3252 = vlaneseq
        %v3253 = vshrl.u32 %v3252, 7
        %v3254 = vsub.s32 0, %v3253
        %v3255 = vrot.slane %v3236, %v3254
        %v3256 = vadd.f32 %v504, %v3255
        %v3257 = vadd.f32 %v505, %v3255
        %v3258 = vadd.f32 %v506, %v3255
        %v3259 = vadd.f32 %v507, %v3255
        %v3260 = vadd.f32 %v508, %v3255
        %v3261 = vadd.f32 %v509, %v3255
        %v3262 = vadd.f32 %v510, %v3255
        %v3263 = vadd.f32 %v511, %v3255
        %v3264 = vadd.f32 %v512, %v3255
        %v3265 = vadd.f32 %v513, %v3255
        %v3266 = vadd.f32 %v514, %v3255
        %v3267 = vadd.f32 %v515, %v3255
        %v3268 = vadd.f32 %v516, %v3255
        %v3269 = vadd.f32 %v517, %v3255
        %v3270 = vadd.f32 %v518, %v3255
        %v3271 = vadd.f32 %v519, %v3255
        %3272 = vmax.xlane.f32.xlu0 %v3256
        %v3273 = vpop.xlane.xlu0 %3272
        %3274 = vmax.xlane.f32.xlu0 %v3257
        %v3275 = vpop.xlane.xlu0 %3274
        %3276 = vmax.xlane.f32.xlu0 %v3258
        %v3277 = vpop.xlane.xlu0 %3276
        %3278 = vmax.xlane.f32.xlu0 %v3259
        %v3279 = vpop.xlane.xlu0 %3278
        %3280 = vmax.xlane.f32.xlu0 %v3260
        %v3281 = vpop.xlane.xlu0 %3280
        %3282 = vmax.xlane.f32.xlu0 %v3261
        %v3283 = vpop.xlane.xlu0 %3282
        %3284 = vmax.xlane.f32.xlu0 %v3262
        %v3285 = vpop.xlane.xlu0 %3284
        %3286 = vmax.xlane.f32.xlu0 %v3263
        %v3287 = vpop.xlane.xlu0 %3286
        %3288 = vmax.xlane.f32.xlu0 %v3264
        %v3289 = vpop.xlane.xlu0 %3288
        %3290 = vmax.xlane.f32.xlu0 %v3265
        %v3291 = vpop.xlane.xlu0 %3290
        %3292 = vmax.xlane.f32.xlu0 %v3266
        %v3293 = vpop.xlane.xlu0 %3292
        %3294 = vmax.xlane.f32.xlu0 %v3267
        %v3295 = vpop.xlane.xlu0 %3294
        %3296 = vmax.xlane.f32.xlu0 %v3268
        %v3297 = vpop.xlane.xlu0 %3296
        %3298 = vmax.xlane.f32.xlu0 %v3269
        %v3299 = vpop.xlane.xlu0 %3298
        %3300 = vmax.xlane.f32.xlu0 %v3270
        %v3301 = vpop.xlane.xlu0 %3300
        %3302 = vmax.xlane.f32.xlu0 %v3271
        %v3303 = vpop.xlane.xlu0 %3302
        %v3304 = vsub.f32 %v3256, %v3273
        %v3305 = vsub.f32 %v3257, %v3275
        %v3306 = vsub.f32 %v3258, %v3277
        %v3307 = vsub.f32 %v3259, %v3279
        %v3308 = vsub.f32 %v3260, %v3281
        %v3309 = vsub.f32 %v3261, %v3283
        %v3310 = vsub.f32 %v3262, %v3285
        %v3311 = vsub.f32 %v3263, %v3287
        %v3312 = vsub.f32 %v3264, %v3289
        %v3313 = vsub.f32 %v3265, %v3291
        %v3314 = vsub.f32 %v3266, %v3293
        %v3315 = vsub.f32 %v3267, %v3295
        %v3316 = vsub.f32 %v3268, %v3297
        %v3317 = vsub.f32 %v3269, %v3299
        %v3318 = vsub.f32 %v3270, %v3301
        %v3319 = vsub.f32 %v3271, %v3303
        %v3320 = vmul.f32 %v3304, 1.442695
        %v3321 = vpow.pop %v3320
        %v3322 = vmul.f32 %v3305, 1.442695
        %v3323 = vpow.pop %v3322
        %v3324 = vmul.f32 %v3306, 1.442695
        %v3325 = vpow.pop %v3324
        %v3326 = vmul.f32 %v3307, 1.442695
        %v3327 = vpow.pop %v3326
        %v3328 = vmul.f32 %v3308, 1.442695
        %v3329 = vpow.pop %v3328
        %v3330 = vmul.f32 %v3309, 1.442695
        %v3331 = vpow.pop %v3330
        %v3332 = vmul.f32 %v3310, 1.442695
        %v3333 = vpow.pop %v3332
        %v3334 = vmul.f32 %v3311, 1.442695
        %v3335 = vpow.pop %v3334
        %v3336 = vmul.f32 %v3312, 1.442695
        %v3337 = vpow.pop %v3336
        %v3338 = vmul.f32 %v3313, 1.442695
        %v3339 = vpow.pop %v3338
        %v3340 = vmul.f32 %v3314, 1.442695
        %v3341 = vpow.pop %v3340
        %v3342 = vmul.f32 %v3315, 1.442695
        %v3343 = vpow.pop %v3342
        %v3344 = vmul.f32 %v3316, 1.442695
        %v3345 = vpow.pop %v3344
        %v3346 = vmul.f32 %v3317, 1.442695
        %v3347 = vpow.pop %v3346
        %v3348 = vmul.f32 %v3318, 1.442695
        %v3349 = vpow.pop %v3348
        %v3350 = vmul.f32 %v3319, 1.442695
        %v3351 = vpow.pop %v3350
        %3352 = vadd.xlane.f32.xlu0 %v3321
        %v3353 = vpop.xlane.xlu0 %3352
        %3354 = vadd.xlane.f32.xlu0 %v3323
        %v3355 = vpop.xlane.xlu0 %3354
        %3356 = vadd.xlane.f32.xlu0 %v3325
        %v3357 = vpop.xlane.xlu0 %3356
        %3358 = vadd.xlane.f32.xlu0 %v3327
        %v3359 = vpop.xlane.xlu0 %3358
        %3360 = vadd.xlane.f32.xlu0 %v3329
        %v3361 = vpop.xlane.xlu0 %3360
        %3362 = vadd.xlane.f32.xlu0 %v3331
        %v3363 = vpop.xlane.xlu0 %3362
        %3364 = vadd.xlane.f32.xlu0 %v3333
        %v3365 = vpop.xlane.xlu0 %3364
        %3366 = vadd.xlane.f32.xlu0 %v3335
        %v3367 = vpop.xlane.xlu0 %3366
        %3368 = vadd.xlane.f32.xlu0 %v3337
        %v3369 = vpop.xlane.xlu0 %3368
        %3370 = vadd.xlane.f32.xlu0 %v3339
        %v3371 = vpop.xlane.xlu0 %3370
        %3372 = vadd.xlane.f32.xlu0 %v3341
        %v3373 = vpop.xlane.xlu0 %3372
        %3374 = vadd.xlane.f32.xlu0 %v3343
        %v3375 = vpop.xlane.xlu0 %3374
        %3376 = vadd.xlane.f32.xlu0 %v3345
        %v3377 = vpop.xlane.xlu0 %3376
        %3378 = vadd.xlane.f32.xlu0 %v3347
        %v3379 = vpop.xlane.xlu0 %3378
        %3380 = vadd.xlane.f32.xlu0 %v3349
        %v3381 = vpop.xlane.xlu0 %3380
        %3382 = vadd.xlane.f32.xlu0 %v3351
        %v3383 = vpop.xlane.xlu0 %3382
        %v3384 = vlog2.pop %v3353
        %v3385 = vmul.f32 %v3384, 0.6931472
        %v3386 = vlog2.pop %v3355
        %v3387 = vmul.f32 %v3386, 0.6931472
        %v3388 = vlog2.pop %v3357
        %v3389 = vmul.f32 %v3388, 0.6931472
        %v3390 = vlog2.pop %v3359
        %v3391 = vmul.f32 %v3390, 0.6931472
        %v3392 = vlog2.pop %v3361
        %v3393 = vmul.f32 %v3392, 0.6931472
        %v3394 = vlog2.pop %v3363
        %v3395 = vmul.f32 %v3394, 0.6931472
        %v3396 = vlog2.pop %v3365
        %v3397 = vmul.f32 %v3396, 0.6931472
        %v3398 = vlog2.pop %v3367
        %v3399 = vmul.f32 %v3398, 0.6931472
        %v3400 = vlog2.pop %v3369
        %v3401 = vmul.f32 %v3400, 0.6931472
        %v3402 = vlog2.pop %v3371
        %v3403 = vmul.f32 %v3402, 0.6931472
        %v3404 = vlog2.pop %v3373
        %v3405 = vmul.f32 %v3404, 0.6931472
        %v3406 = vlog2.pop %v3375
        %v3407 = vmul.f32 %v3406, 0.6931472
        %v3408 = vlog2.pop %v3377
        %v3409 = vmul.f32 %v3408, 0.6931472
        %v3410 = vlog2.pop %v3379
        %v3411 = vmul.f32 %v3410, 0.6931472
        %v3412 = vlog2.pop %v3381
        %v3413 = vmul.f32 %v3412, 0.6931472
        %v3414 = vlog2.pop %v3383
        %v3415 = vmul.f32 %v3414, 0.6931472
        %v3416 = vadd.f32 %v3273, %v3385
        %v3417 = vadd.f32 %v3275, %v3387
        %v3418 = vadd.f32 %v3277, %v3389
        %v3419 = vadd.f32 %v3279, %v3391
        %v3420 = vadd.f32 %v3281, %v3393
        %v3421 = vadd.f32 %v3283, %v3395
        %v3422 = vadd.f32 %v3285, %v3397
        %v3423 = vadd.f32 %v3287, %v3399
        %v3424 = vadd.f32 %v3289, %v3401
        %v3425 = vadd.f32 %v3291, %v3403
        %v3426 = vadd.f32 %v3293, %v3405
        %v3427 = vadd.f32 %v3295, %v3407
        %v3428 = vadd.f32 %v3297, %v3409
        %v3429 = vadd.f32 %v3299, %v3411
        %v3430 = vadd.f32 %v3301, %v3413
        %v3431 = vadd.f32 %v3303, %v3415
        %v3432 = vsub.f32 0.0, %v3416
        %v3433 = vsub.f32 0.0, %v3417
        %v3434 = vsub.f32 0.0, %v3418
        %v3435 = vsub.f32 0.0, %v3419
        %v3436 = vsub.f32 0.0, %v3420
        %v3437 = vsub.f32 0.0, %v3421
        %v3438 = vsub.f32 0.0, %v3422
        %v3439 = vsub.f32 0.0, %v3423
        %v3440 = vsub.f32 0.0, %v3424
        %v3441 = vsub.f32 0.0, %v3425
        %v3442 = vsub.f32 0.0, %v3426
        %v3443 = vsub.f32 0.0, %v3427
        %v3444 = vsub.f32 0.0, %v3428
        %v3445 = vsub.f32 0.0, %v3429
        %v3446 = vsub.f32 0.0, %v3430
        %v3447 = vsub.f32 0.0, %v3431
        %3448 = vxpose.xlu0.b32.start [1/16] %v3432, 128
        %3449 = vxpose.xlu0.b32.cont [2/16] %v3433, 128
        %3450 = vxpose.xlu0.b32.cont [3/16] %v3434, 128
        %3451 = vxpose.xlu0.b32.cont [4/16] %v3435, 128
        %3452 = vxpose.xlu0.b32.cont [5/16] %v3436, 128
        %3453 = vxpose.xlu0.b32.cont [6/16] %v3437, 128
        %3454 = vxpose.xlu0.b32.cont [7/16] %v3438, 128
        %3455 = vxpose.xlu0.b32.cont [8/16] %v3439, 128
        %3456 = vxpose.xlu0.b32.cont [9/16] %v3440, 128
        %3457 = vxpose.xlu0.b32.cont [10/16] %v3441, 128
        %3458 = vxpose.xlu0.b32.cont [11/16] %v3442, 128
        %3459 = vxpose.xlu0.b32.cont [12/16] %v3443, 128
        %3460 = vxpose.xlu0.b32.cont [13/16] %v3444, 128
        %3461 = vxpose.xlu0.b32.cont [14/16] %v3445, 128
        %3462 = vxpose.xlu0.b32.cont [15/16] %v3446, 128
        %3463 = vxpose.xlu0.b32.end [16/16] %v3447, 128
        %v3464 = vpop.trf.xlu0
        %v3465 = vpop.trf.xlu0
        %v3466 = vpop.trf.xlu0
        %v3467 = vpop.trf.xlu0
        %v3468 = vpop.trf.xlu0
        %v3469 = vpop.trf.xlu0
        %v3470 = vpop.trf.xlu0
        %v3471 = vpop.trf.xlu0
        %v3472 = vpop.trf.xlu0
        %v3473 = vpop.trf.xlu0
        %v3474 = vpop.trf.xlu0
        %v3475 = vpop.trf.xlu0
        %v3476 = vpop.trf.xlu0
        %v3477 = vpop.trf.xlu0
        %v3478 = vpop.trf.xlu0
        %v3479 = vpop.trf.xlu0
        %v3480 = vlaneseq
        %v3481 = vshrl.u32 %v3480, 7
        %v3482 = vsub.s32 0, %v3481
        %v3483 = vrot.slane %v3464, %v3482
        %v3484 = vadd.f32 %v504, %v3483
        %v3485 = vadd.f32 %v505, %v3483
        %v3486 = vadd.f32 %v506, %v3483
        %v3487 = vadd.f32 %v507, %v3483
        %v3488 = vadd.f32 %v508, %v3483
        %v3489 = vadd.f32 %v509, %v3483
        %v3490 = vadd.f32 %v510, %v3483
        %v3491 = vadd.f32 %v511, %v3483
        %v3492 = vadd.f32 %v512, %v3483
        %v3493 = vadd.f32 %v513, %v3483
        %v3494 = vadd.f32 %v514, %v3483
        %v3495 = vadd.f32 %v515, %v3483
        %v3496 = vadd.f32 %v516, %v3483
        %v3497 = vadd.f32 %v517, %v3483
        %v3498 = vadd.f32 %v518, %v3483
        %v3499 = vadd.f32 %v519, %v3483
        %3500 = vmax.xlane.f32.xlu0 %v3484
        %v3501 = vpop.xlane.xlu0 %3500
        %3502 = vmax.xlane.f32.xlu0 %v3485
        %v3503 = vpop.xlane.xlu0 %3502
        %3504 = vmax.xlane.f32.xlu0 %v3486
        %v3505 = vpop.xlane.xlu0 %3504
        %3506 = vmax.xlane.f32.xlu0 %v3487
        %v3507 = vpop.xlane.xlu0 %3506
        %3508 = vmax.xlane.f32.xlu0 %v3488
        %v3509 = vpop.xlane.xlu0 %3508
        %3510 = vmax.xlane.f32.xlu0 %v3489
        %v3511 = vpop.xlane.xlu0 %3510
        %3512 = vmax.xlane.f32.xlu0 %v3490
        %v3513 = vpop.xlane.xlu0 %3512
        %3514 = vmax.xlane.f32.xlu0 %v3491
        %v3515 = vpop.xlane.xlu0 %3514
        %3516 = vmax.xlane.f32.xlu0 %v3492
        %v3517 = vpop.xlane.xlu0 %3516
        %3518 = vmax.xlane.f32.xlu0 %v3493
        %v3519 = vpop.xlane.xlu0 %3518
        %3520 = vmax.xlane.f32.xlu0 %v3494
        %v3521 = vpop.xlane.xlu0 %3520
        %3522 = vmax.xlane.f32.xlu0 %v3495
        %v3523 = vpop.xlane.xlu0 %3522
        %3524 = vmax.xlane.f32.xlu0 %v3496
        %v3525 = vpop.xlane.xlu0 %3524
        %3526 = vmax.xlane.f32.xlu0 %v3497
        %v3527 = vpop.xlane.xlu0 %3526
        %3528 = vmax.xlane.f32.xlu0 %v3498
        %v3529 = vpop.xlane.xlu0 %3528
        %3530 = vmax.xlane.f32.xlu0 %v3499
        %v3531 = vpop.xlane.xlu0 %3530
        %v3532 = vsub.f32 %v3484, %v3501
        %v3533 = vsub.f32 %v3485, %v3503
        %v3534 = vsub.f32 %v3486, %v3505
        %v3535 = vsub.f32 %v3487, %v3507
        %v3536 = vsub.f32 %v3488, %v3509
        %v3537 = vsub.f32 %v3489, %v3511
        %v3538 = vsub.f32 %v3490, %v3513
        %v3539 = vsub.f32 %v3491, %v3515
        %v3540 = vsub.f32 %v3492, %v3517
        %v3541 = vsub.f32 %v3493, %v3519
        %v3542 = vsub.f32 %v3494, %v3521
        %v3543 = vsub.f32 %v3495, %v3523
        %v3544 = vsub.f32 %v3496, %v3525
        %v3545 = vsub.f32 %v3497, %v3527
        %v3546 = vsub.f32 %v3498, %v3529
        %v3547 = vsub.f32 %v3499, %v3531
        %v3548 = vmul.f32 %v3532, 1.442695
        %v3549 = vpow.pop %v3548
        %v3550 = vmul.f32 %v3533, 1.442695
        %v3551 = vpow.pop %v3550
        %v3552 = vmul.f32 %v3534, 1.442695
        %v3553 = vpow.pop %v3552
        %v3554 = vmul.f32 %v3535, 1.442695
        %v3555 = vpow.pop %v3554
        %v3556 = vmul.f32 %v3536, 1.442695
        %v3557 = vpow.pop %v3556
        %v3558 = vmul.f32 %v3537, 1.442695
        %v3559 = vpow.pop %v3558
        %v3560 = vmul.f32 %v3538, 1.442695
        %v3561 = vpow.pop %v3560
        %v3562 = vmul.f32 %v3539, 1.442695
        %v3563 = vpow.pop %v3562
        %v3564 = vmul.f32 %v3540, 1.442695
        %v3565 = vpow.pop %v3564
        %v3566 = vmul.f32 %v3541, 1.442695
        %v3567 = vpow.pop %v3566
        %v3568 = vmul.f32 %v3542, 1.442695
        %v3569 = vpow.pop %v3568
        %v3570 = vmul.f32 %v3543, 1.442695
        %v3571 = vpow.pop %v3570
        %v3572 = vmul.f32 %v3544, 1.442695
        %v3573 = vpow.pop %v3572
        %v3574 = vmul.f32 %v3545, 1.442695
        %v3575 = vpow.pop %v3574
        %v3576 = vmul.f32 %v3546, 1.442695
        %v3577 = vpow.pop %v3576
        %v3578 = vmul.f32 %v3547, 1.442695
        %v3579 = vpow.pop %v3578
        %3580 = vadd.xlane.f32.xlu0 %v3549
        %v3581 = vpop.xlane.xlu0 %3580
        %3582 = vadd.xlane.f32.xlu0 %v3551
        %v3583 = vpop.xlane.xlu0 %3582
        %3584 = vadd.xlane.f32.xlu0 %v3553
        %v3585 = vpop.xlane.xlu0 %3584
        %3586 = vadd.xlane.f32.xlu0 %v3555
        %v3587 = vpop.xlane.xlu0 %3586
        %3588 = vadd.xlane.f32.xlu0 %v3557
        %v3589 = vpop.xlane.xlu0 %3588
        %3590 = vadd.xlane.f32.xlu0 %v3559
        %v3591 = vpop.xlane.xlu0 %3590
        %3592 = vadd.xlane.f32.xlu0 %v3561
        %v3593 = vpop.xlane.xlu0 %3592
        %3594 = vadd.xlane.f32.xlu0 %v3563
        %v3595 = vpop.xlane.xlu0 %3594
        %3596 = vadd.xlane.f32.xlu0 %v3565
        %v3597 = vpop.xlane.xlu0 %3596
        %3598 = vadd.xlane.f32.xlu0 %v3567
        %v3599 = vpop.xlane.xlu0 %3598
        %3600 = vadd.xlane.f32.xlu0 %v3569
        %v3601 = vpop.xlane.xlu0 %3600
        %3602 = vadd.xlane.f32.xlu0 %v3571
        %v3603 = vpop.xlane.xlu0 %3602
        %3604 = vadd.xlane.f32.xlu0 %v3573
        %v3605 = vpop.xlane.xlu0 %3604
        %3606 = vadd.xlane.f32.xlu0 %v3575
        %v3607 = vpop.xlane.xlu0 %3606
        %3608 = vadd.xlane.f32.xlu0 %v3577
        %v3609 = vpop.xlane.xlu0 %3608
        %3610 = vadd.xlane.f32.xlu0 %v3579
        %v3611 = vpop.xlane.xlu0 %3610
        %v3612 = vlog2.pop %v3581
        %v3613 = vmul.f32 %v3612, 0.6931472
        %v3614 = vlog2.pop %v3583
        %v3615 = vmul.f32 %v3614, 0.6931472
        %v3616 = vlog2.pop %v3585
        %v3617 = vmul.f32 %v3616, 0.6931472
        %v3618 = vlog2.pop %v3587
        %v3619 = vmul.f32 %v3618, 0.6931472
        %v3620 = vlog2.pop %v3589
        %v3621 = vmul.f32 %v3620, 0.6931472
        %v3622 = vlog2.pop %v3591
        %v3623 = vmul.f32 %v3622, 0.6931472
        %v3624 = vlog2.pop %v3593
        %v3625 = vmul.f32 %v3624, 0.6931472
        %v3626 = vlog2.pop %v3595
        %v3627 = vmul.f32 %v3626, 0.6931472
        %v3628 = vlog2.pop %v3597
        %v3629 = vmul.f32 %v3628, 0.6931472
        %v3630 = vlog2.pop %v3599
        %v3631 = vmul.f32 %v3630, 0.6931472
        %v3632 = vlog2.pop %v3601
        %v3633 = vmul.f32 %v3632, 0.6931472
        %v3634 = vlog2.pop %v3603
        %v3635 = vmul.f32 %v3634, 0.6931472
        %v3636 = vlog2.pop %v3605
        %v3637 = vmul.f32 %v3636, 0.6931472
        %v3638 = vlog2.pop %v3607
        %v3639 = vmul.f32 %v3638, 0.6931472
        %v3640 = vlog2.pop %v3609
        %v3641 = vmul.f32 %v3640, 0.6931472
        %v3642 = vlog2.pop %v3611
        %v3643 = vmul.f32 %v3642, 0.6931472
        %v3644 = vadd.f32 %v3501, %v3613
        %v3645 = vadd.f32 %v3503, %v3615
        %v3646 = vadd.f32 %v3505, %v3617
        %v3647 = vadd.f32 %v3507, %v3619
        %v3648 = vadd.f32 %v3509, %v3621
        %v3649 = vadd.f32 %v3511, %v3623
        %v3650 = vadd.f32 %v3513, %v3625
        %v3651 = vadd.f32 %v3515, %v3627
        %v3652 = vadd.f32 %v3517, %v3629
        %v3653 = vadd.f32 %v3519, %v3631
        %v3654 = vadd.f32 %v3521, %v3633
        %v3655 = vadd.f32 %v3523, %v3635
        %v3656 = vadd.f32 %v3525, %v3637
        %v3657 = vadd.f32 %v3527, %v3639
        %v3658 = vadd.f32 %v3529, %v3641
        %v3659 = vadd.f32 %v3531, %v3643
        %v3660 = vsub.f32 0.0, %v3644
        %v3661 = vsub.f32 0.0, %v3645
        %v3662 = vsub.f32 0.0, %v3646
        %v3663 = vsub.f32 0.0, %v3647
        %v3664 = vsub.f32 0.0, %v3648
        %v3665 = vsub.f32 0.0, %v3649
        %v3666 = vsub.f32 0.0, %v3650
        %v3667 = vsub.f32 0.0, %v3651
        %v3668 = vsub.f32 0.0, %v3652
        %v3669 = vsub.f32 0.0, %v3653
        %v3670 = vsub.f32 0.0, %v3654
        %v3671 = vsub.f32 0.0, %v3655
        %v3672 = vsub.f32 0.0, %v3656
        %v3673 = vsub.f32 0.0, %v3657
        %v3674 = vsub.f32 0.0, %v3658
        %v3675 = vsub.f32 0.0, %v3659
        %3676 = vxpose.xlu0.b32.start [1/16] %v3660, 128
        %3677 = vxpose.xlu0.b32.cont [2/16] %v3661, 128
        %3678 = vxpose.xlu0.b32.cont [3/16] %v3662, 128
        %3679 = vxpose.xlu0.b32.cont [4/16] %v3663, 128
        %3680 = vxpose.xlu0.b32.cont [5/16] %v3664, 128
        %3681 = vxpose.xlu0.b32.cont [6/16] %v3665, 128
        %3682 = vxpose.xlu0.b32.cont [7/16] %v3666, 128
        %3683 = vxpose.xlu0.b32.cont [8/16] %v3667, 128
        %3684 = vxpose.xlu0.b32.cont [9/16] %v3668, 128
        %3685 = vxpose.xlu0.b32.cont [10/16] %v3669, 128
        %3686 = vxpose.xlu0.b32.cont [11/16] %v3670, 128
        %3687 = vxpose.xlu0.b32.cont [12/16] %v3671, 128
        %3688 = vxpose.xlu0.b32.cont [13/16] %v3672, 128
        %3689 = vxpose.xlu0.b32.cont [14/16] %v3673, 128
        %3690 = vxpose.xlu0.b32.cont [15/16] %v3674, 128
        %3691 = vxpose.xlu0.b32.end [16/16] %v3675, 128
        %v3692 = vpop.trf.xlu0
        %v3693 = vpop.trf.xlu0
        %v3694 = vpop.trf.xlu0
        %v3695 = vpop.trf.xlu0
        %v3696 = vpop.trf.xlu0
        %v3697 = vpop.trf.xlu0
        %v3698 = vpop.trf.xlu0
        %v3699 = vpop.trf.xlu0
        %v3700 = vpop.trf.xlu0
        %v3701 = vpop.trf.xlu0
        %v3702 = vpop.trf.xlu0
        %v3703 = vpop.trf.xlu0
        %v3704 = vpop.trf.xlu0
        %v3705 = vpop.trf.xlu0
        %v3706 = vpop.trf.xlu0
        %v3707 = vpop.trf.xlu0
        %v3708 = vlaneseq
        %v3709 = vshrl.u32 %v3708, 7
        %v3710 = vsub.s32 0, %v3709
        %v3711 = vrot.slane %v3692, %v3710
        %v3712 = vadd.f32 %v504, %v3711
        %v3713 = vadd.f32 %v505, %v3711
        %v3714 = vadd.f32 %v506, %v3711
        %v3715 = vadd.f32 %v507, %v3711
        %v3716 = vadd.f32 %v508, %v3711
        %v3717 = vadd.f32 %v509, %v3711
        %v3718 = vadd.f32 %v510, %v3711
        %v3719 = vadd.f32 %v511, %v3711
        %v3720 = vadd.f32 %v512, %v3711
        %v3721 = vadd.f32 %v513, %v3711
        %v3722 = vadd.f32 %v514, %v3711
        %v3723 = vadd.f32 %v515, %v3711
        %v3724 = vadd.f32 %v516, %v3711
        %v3725 = vadd.f32 %v517, %v3711
        %v3726 = vadd.f32 %v518, %v3711
        %v3727 = vadd.f32 %v519, %v3711
        %3728 = vmax.xlane.f32.xlu0 %v3712
        %v3729 = vpop.xlane.xlu0 %3728
        %3730 = vmax.xlane.f32.xlu0 %v3713
        %v3731 = vpop.xlane.xlu0 %3730
        %3732 = vmax.xlane.f32.xlu0 %v3714
        %v3733 = vpop.xlane.xlu0 %3732
        %3734 = vmax.xlane.f32.xlu0 %v3715
        %v3735 = vpop.xlane.xlu0 %3734
        %3736 = vmax.xlane.f32.xlu0 %v3716
        %v3737 = vpop.xlane.xlu0 %3736
        %3738 = vmax.xlane.f32.xlu0 %v3717
        %v3739 = vpop.xlane.xlu0 %3738
        %3740 = vmax.xlane.f32.xlu0 %v3718
        %v3741 = vpop.xlane.xlu0 %3740
        %3742 = vmax.xlane.f32.xlu0 %v3719
        %v3743 = vpop.xlane.xlu0 %3742
        %3744 = vmax.xlane.f32.xlu0 %v3720
        %v3745 = vpop.xlane.xlu0 %3744
        %3746 = vmax.xlane.f32.xlu0 %v3721
        %v3747 = vpop.xlane.xlu0 %3746
        %3748 = vmax.xlane.f32.xlu0 %v3722
        %v3749 = vpop.xlane.xlu0 %3748
        %3750 = vmax.xlane.f32.xlu0 %v3723
        %v3751 = vpop.xlane.xlu0 %3750
        %3752 = vmax.xlane.f32.xlu0 %v3724
        %v3753 = vpop.xlane.xlu0 %3752
        %3754 = vmax.xlane.f32.xlu0 %v3725
        %v3755 = vpop.xlane.xlu0 %3754
        %3756 = vmax.xlane.f32.xlu0 %v3726
        %v3757 = vpop.xlane.xlu0 %3756
        %3758 = vmax.xlane.f32.xlu0 %v3727
        %v3759 = vpop.xlane.xlu0 %3758
        %v3760 = vsub.f32 %v3712, %v3729
        %v3761 = vsub.f32 %v3713, %v3731
        %v3762 = vsub.f32 %v3714, %v3733
        %v3763 = vsub.f32 %v3715, %v3735
        %v3764 = vsub.f32 %v3716, %v3737
        %v3765 = vsub.f32 %v3717, %v3739
        %v3766 = vsub.f32 %v3718, %v3741
        %v3767 = vsub.f32 %v3719, %v3743
        %v3768 = vsub.f32 %v3720, %v3745
        %v3769 = vsub.f32 %v3721, %v3747
        %v3770 = vsub.f32 %v3722, %v3749
        %v3771 = vsub.f32 %v3723, %v3751
        %v3772 = vsub.f32 %v3724, %v3753
        %v3773 = vsub.f32 %v3725, %v3755
        %v3774 = vsub.f32 %v3726, %v3757
        %v3775 = vsub.f32 %v3727, %v3759
        %v3776 = vmul.f32 %v3760, 1.442695
        %v3777 = vpow.pop %v3776
        %v3778 = vmul.f32 %v3761, 1.442695
        %v3779 = vpow.pop %v3778
        %v3780 = vmul.f32 %v3762, 1.442695
        %v3781 = vpow.pop %v3780
        %v3782 = vmul.f32 %v3763, 1.442695
        %v3783 = vpow.pop %v3782
        %v3784 = vmul.f32 %v3764, 1.442695
        %v3785 = vpow.pop %v3784
        %v3786 = vmul.f32 %v3765, 1.442695
        %v3787 = vpow.pop %v3786
        %v3788 = vmul.f32 %v3766, 1.442695
        %v3789 = vpow.pop %v3788
        %v3790 = vmul.f32 %v3767, 1.442695
        %v3791 = vpow.pop %v3790
        %v3792 = vmul.f32 %v3768, 1.442695
        %v3793 = vpow.pop %v3792
        %v3794 = vmul.f32 %v3769, 1.442695
        %v3795 = vpow.pop %v3794
        %v3796 = vmul.f32 %v3770, 1.442695
        %v3797 = vpow.pop %v3796
        %v3798 = vmul.f32 %v3771, 1.442695
        %v3799 = vpow.pop %v3798
        %v3800 = vmul.f32 %v3772, 1.442695
        %v3801 = vpow.pop %v3800
        %v3802 = vmul.f32 %v3773, 1.442695
        %v3803 = vpow.pop %v3802
        %v3804 = vmul.f32 %v3774, 1.442695
        %v3805 = vpow.pop %v3804
        %v3806 = vmul.f32 %v3775, 1.442695
        %v3807 = vpow.pop %v3806
        %3808 = vadd.xlane.f32.xlu0 %v3777
        %v3809 = vpop.xlane.xlu0 %3808
        %3810 = vadd.xlane.f32.xlu0 %v3779
        %v3811 = vpop.xlane.xlu0 %3810
        %3812 = vadd.xlane.f32.xlu0 %v3781
        %v3813 = vpop.xlane.xlu0 %3812
        %3814 = vadd.xlane.f32.xlu0 %v3783
        %v3815 = vpop.xlane.xlu0 %3814
        %3816 = vadd.xlane.f32.xlu0 %v3785
        %v3817 = vpop.xlane.xlu0 %3816
        %3818 = vadd.xlane.f32.xlu0 %v3787
        %v3819 = vpop.xlane.xlu0 %3818
        %3820 = vadd.xlane.f32.xlu0 %v3789
        %v3821 = vpop.xlane.xlu0 %3820
        %3822 = vadd.xlane.f32.xlu0 %v3791
        %v3823 = vpop.xlane.xlu0 %3822
        %3824 = vadd.xlane.f32.xlu0 %v3793
        %v3825 = vpop.xlane.xlu0 %3824
        %3826 = vadd.xlane.f32.xlu0 %v3795
        %v3827 = vpop.xlane.xlu0 %3826
        %3828 = vadd.xlane.f32.xlu0 %v3797
        %v3829 = vpop.xlane.xlu0 %3828
        %3830 = vadd.xlane.f32.xlu0 %v3799
        %v3831 = vpop.xlane.xlu0 %3830
        %3832 = vadd.xlane.f32.xlu0 %v3801
        %v3833 = vpop.xlane.xlu0 %3832
        %3834 = vadd.xlane.f32.xlu0 %v3803
        %v3835 = vpop.xlane.xlu0 %3834
        %3836 = vadd.xlane.f32.xlu0 %v3805
        %v3837 = vpop.xlane.xlu0 %3836
        %3838 = vadd.xlane.f32.xlu0 %v3807
        %v3839 = vpop.xlane.xlu0 %3838
        %v3840 = vlog2.pop %v3809
        %v3841 = vmul.f32 %v3840, 0.6931472
        %v3842 = vlog2.pop %v3811
        %v3843 = vmul.f32 %v3842, 0.6931472
        %v3844 = vlog2.pop %v3813
        %v3845 = vmul.f32 %v3844, 0.6931472
        %v3846 = vlog2.pop %v3815
        %v3847 = vmul.f32 %v3846, 0.6931472
        %v3848 = vlog2.pop %v3817
        %v3849 = vmul.f32 %v3848, 0.6931472
        %v3850 = vlog2.pop %v3819
        %v3851 = vmul.f32 %v3850, 0.6931472
        %v3852 = vlog2.pop %v3821
        %v3853 = vmul.f32 %v3852, 0.6931472
        %v3854 = vlog2.pop %v3823
        %v3855 = vmul.f32 %v3854, 0.6931472
        %v3856 = vlog2.pop %v3825
        %v3857 = vmul.f32 %v3856, 0.6931472
        %v3858 = vlog2.pop %v3827
        %v3859 = vmul.f32 %v3858, 0.6931472
        %v3860 = vlog2.pop %v3829
        %v3861 = vmul.f32 %v3860, 0.6931472
        %v3862 = vlog2.pop %v3831
        %v3863 = vmul.f32 %v3862, 0.6931472
        %v3864 = vlog2.pop %v3833
        %v3865 = vmul.f32 %v3864, 0.6931472
        %v3866 = vlog2.pop %v3835
        %v3867 = vmul.f32 %v3866, 0.6931472
        %v3868 = vlog2.pop %v3837
        %v3869 = vmul.f32 %v3868, 0.6931472
        %v3870 = vlog2.pop %v3839
        %v3871 = vmul.f32 %v3870, 0.6931472
        %v3872 = vadd.f32 %v3729, %v3841
        %v3873 = vadd.f32 %v3731, %v3843
        %v3874 = vadd.f32 %v3733, %v3845
        %v3875 = vadd.f32 %v3735, %v3847
        %v3876 = vadd.f32 %v3737, %v3849
        %v3877 = vadd.f32 %v3739, %v3851
        %v3878 = vadd.f32 %v3741, %v3853
        %v3879 = vadd.f32 %v3743, %v3855
        %v3880 = vadd.f32 %v3745, %v3857
        %v3881 = vadd.f32 %v3747, %v3859
        %v3882 = vadd.f32 %v3749, %v3861
        %v3883 = vadd.f32 %v3751, %v3863
        %v3884 = vadd.f32 %v3753, %v3865
        %v3885 = vadd.f32 %v3755, %v3867
        %v3886 = vadd.f32 %v3757, %v3869
        %v3887 = vadd.f32 %v3759, %v3871
        %v3888 = vsub.f32 0.0, %v3872
        %v3889 = vsub.f32 0.0, %v3873
        %v3890 = vsub.f32 0.0, %v3874
        %v3891 = vsub.f32 0.0, %v3875
        %v3892 = vsub.f32 0.0, %v3876
        %v3893 = vsub.f32 0.0, %v3877
        %v3894 = vsub.f32 0.0, %v3878
        %v3895 = vsub.f32 0.0, %v3879
        %v3896 = vsub.f32 0.0, %v3880
        %v3897 = vsub.f32 0.0, %v3881
        %v3898 = vsub.f32 0.0, %v3882
        %v3899 = vsub.f32 0.0, %v3883
        %v3900 = vsub.f32 0.0, %v3884
        %v3901 = vsub.f32 0.0, %v3885
        %v3902 = vsub.f32 0.0, %v3886
        %v3903 = vsub.f32 0.0, %v3887
        %3904 = vxpose.xlu0.b32.start [1/16] %v3888, 128
        %3905 = vxpose.xlu0.b32.cont [2/16] %v3889, 128
        %3906 = vxpose.xlu0.b32.cont [3/16] %v3890, 128
        %3907 = vxpose.xlu0.b32.cont [4/16] %v3891, 128
        %3908 = vxpose.xlu0.b32.cont [5/16] %v3892, 128
        %3909 = vxpose.xlu0.b32.cont [6/16] %v3893, 128
        %3910 = vxpose.xlu0.b32.cont [7/16] %v3894, 128
        %3911 = vxpose.xlu0.b32.cont [8/16] %v3895, 128
        %3912 = vxpose.xlu0.b32.cont [9/16] %v3896, 128
        %3913 = vxpose.xlu0.b32.cont [10/16] %v3897, 128
        %3914 = vxpose.xlu0.b32.cont [11/16] %v3898, 128
        %3915 = vxpose.xlu0.b32.cont [12/16] %v3899, 128
        %3916 = vxpose.xlu0.b32.cont [13/16] %v3900, 128
        %3917 = vxpose.xlu0.b32.cont [14/16] %v3901, 128
        %3918 = vxpose.xlu0.b32.cont [15/16] %v3902, 128
        %3919 = vxpose.xlu0.b32.end [16/16] %v3903, 128
        %v3920 = vpop.trf.xlu0
        %v3921 = vpop.trf.xlu0
        %v3922 = vpop.trf.xlu0
        %v3923 = vpop.trf.xlu0
        %v3924 = vpop.trf.xlu0
        %v3925 = vpop.trf.xlu0
        %v3926 = vpop.trf.xlu0
        %v3927 = vpop.trf.xlu0
        %v3928 = vpop.trf.xlu0
        %v3929 = vpop.trf.xlu0
        %v3930 = vpop.trf.xlu0
        %v3931 = vpop.trf.xlu0
        %v3932 = vpop.trf.xlu0
        %v3933 = vpop.trf.xlu0
        %v3934 = vpop.trf.xlu0
        %v3935 = vpop.trf.xlu0
        %v3936 = vlaneseq
        %v3937 = vshrl.u32 %v3936, 7
        %v3938 = vsub.s32 0, %v3937
        %v3939 = vrot.slane %v3920, %v3938
        %v3940 = vadd.f32 %v504, %v3939
        %v3941 = vadd.f32 %v505, %v3939
        %v3942 = vadd.f32 %v506, %v3939
        %v3943 = vadd.f32 %v507, %v3939
        %v3944 = vadd.f32 %v508, %v3939
        %v3945 = vadd.f32 %v509, %v3939
        %v3946 = vadd.f32 %v510, %v3939
        %v3947 = vadd.f32 %v511, %v3939
        %v3948 = vadd.f32 %v512, %v3939
        %v3949 = vadd.f32 %v513, %v3939
        %v3950 = vadd.f32 %v514, %v3939
        %v3951 = vadd.f32 %v515, %v3939
        %v3952 = vadd.f32 %v516, %v3939
        %v3953 = vadd.f32 %v517, %v3939
        %v3954 = vadd.f32 %v518, %v3939
        %v3955 = vadd.f32 %v519, %v3939
        %3956 = vmax.xlane.f32.xlu0 %v3940
        %v3957 = vpop.xlane.xlu0 %3956
        %3958 = vmax.xlane.f32.xlu0 %v3941
        %v3959 = vpop.xlane.xlu0 %3958
        %3960 = vmax.xlane.f32.xlu0 %v3942
        %v3961 = vpop.xlane.xlu0 %3960
        %3962 = vmax.xlane.f32.xlu0 %v3943
        %v3963 = vpop.xlane.xlu0 %3962
        %3964 = vmax.xlane.f32.xlu0 %v3944
        %v3965 = vpop.xlane.xlu0 %3964
        %3966 = vmax.xlane.f32.xlu0 %v3945
        %v3967 = vpop.xlane.xlu0 %3966
        %3968 = vmax.xlane.f32.xlu0 %v3946
        %v3969 = vpop.xlane.xlu0 %3968
        %3970 = vmax.xlane.f32.xlu0 %v3947
        %v3971 = vpop.xlane.xlu0 %3970
        %3972 = vmax.xlane.f32.xlu0 %v3948
        %v3973 = vpop.xlane.xlu0 %3972
        %3974 = vmax.xlane.f32.xlu0 %v3949
        %v3975 = vpop.xlane.xlu0 %3974
        %3976 = vmax.xlane.f32.xlu0 %v3950
        %v3977 = vpop.xlane.xlu0 %3976
        %3978 = vmax.xlane.f32.xlu0 %v3951
        %v3979 = vpop.xlane.xlu0 %3978
        %3980 = vmax.xlane.f32.xlu0 %v3952
        %v3981 = vpop.xlane.xlu0 %3980
        %3982 = vmax.xlane.f32.xlu0 %v3953
        %v3983 = vpop.xlane.xlu0 %3982
        %3984 = vmax.xlane.f32.xlu0 %v3954
        %v3985 = vpop.xlane.xlu0 %3984
        %3986 = vmax.xlane.f32.xlu0 %v3955
        %v3987 = vpop.xlane.xlu0 %3986
        %v3988 = vsub.f32 %v3940, %v3957
        %v3989 = vsub.f32 %v3941, %v3959
        %v3990 = vsub.f32 %v3942, %v3961
        %v3991 = vsub.f32 %v3943, %v3963
        %v3992 = vsub.f32 %v3944, %v3965
        %v3993 = vsub.f32 %v3945, %v3967
        %v3994 = vsub.f32 %v3946, %v3969
        %v3995 = vsub.f32 %v3947, %v3971
        %v3996 = vsub.f32 %v3948, %v3973
        %v3997 = vsub.f32 %v3949, %v3975
        %v3998 = vsub.f32 %v3950, %v3977
        %v3999 = vsub.f32 %v3951, %v3979
        %v4000 = vsub.f32 %v3952, %v3981
        %v4001 = vsub.f32 %v3953, %v3983
        %v4002 = vsub.f32 %v3954, %v3985
        %v4003 = vsub.f32 %v3955, %v3987
        %v4004 = vmul.f32 %v3988, 1.442695
        %v4005 = vpow.pop %v4004
        %v4006 = vmul.f32 %v3989, 1.442695
        %v4007 = vpow.pop %v4006
        %v4008 = vmul.f32 %v3990, 1.442695
        %v4009 = vpow.pop %v4008
        %v4010 = vmul.f32 %v3991, 1.442695
        %v4011 = vpow.pop %v4010
        %v4012 = vmul.f32 %v3992, 1.442695
        %v4013 = vpow.pop %v4012
        %v4014 = vmul.f32 %v3993, 1.442695
        %v4015 = vpow.pop %v4014
        %v4016 = vmul.f32 %v3994, 1.442695
        %v4017 = vpow.pop %v4016
        %v4018 = vmul.f32 %v3995, 1.442695
        %v4019 = vpow.pop %v4018
        %v4020 = vmul.f32 %v3996, 1.442695
        %v4021 = vpow.pop %v4020
        %v4022 = vmul.f32 %v3997, 1.442695
        %v4023 = vpow.pop %v4022
        %v4024 = vmul.f32 %v3998, 1.442695
        %v4025 = vpow.pop %v4024
        %v4026 = vmul.f32 %v3999, 1.442695
        %v4027 = vpow.pop %v4026
        %v4028 = vmul.f32 %v4000, 1.442695
        %v4029 = vpow.pop %v4028
        %v4030 = vmul.f32 %v4001, 1.442695
        %v4031 = vpow.pop %v4030
        %v4032 = vmul.f32 %v4002, 1.442695
        %v4033 = vpow.pop %v4032
        %v4034 = vmul.f32 %v4003, 1.442695
        %v4035 = vpow.pop %v4034
        %4036 = vadd.xlane.f32.xlu0 %v4005
        %v4037 = vpop.xlane.xlu0 %4036
        %4038 = vadd.xlane.f32.xlu0 %v4007
        %v4039 = vpop.xlane.xlu0 %4038
        %4040 = vadd.xlane.f32.xlu0 %v4009
        %v4041 = vpop.xlane.xlu0 %4040
        %4042 = vadd.xlane.f32.xlu0 %v4011
        %v4043 = vpop.xlane.xlu0 %4042
        %4044 = vadd.xlane.f32.xlu0 %v4013
        %v4045 = vpop.xlane.xlu0 %4044
        %4046 = vadd.xlane.f32.xlu0 %v4015
        %v4047 = vpop.xlane.xlu0 %4046
        %4048 = vadd.xlane.f32.xlu0 %v4017
        %v4049 = vpop.xlane.xlu0 %4048
        %4050 = vadd.xlane.f32.xlu0 %v4019
        %v4051 = vpop.xlane.xlu0 %4050
        %4052 = vadd.xlane.f32.xlu0 %v4021
        %v4053 = vpop.xlane.xlu0 %4052
        %4054 = vadd.xlane.f32.xlu0 %v4023
        %v4055 = vpop.xlane.xlu0 %4054
        %4056 = vadd.xlane.f32.xlu0 %v4025
        %v4057 = vpop.xlane.xlu0 %4056
        %4058 = vadd.xlane.f32.xlu0 %v4027
        %v4059 = vpop.xlane.xlu0 %4058
        %4060 = vadd.xlane.f32.xlu0 %v4029
        %v4061 = vpop.xlane.xlu0 %4060
        %4062 = vadd.xlane.f32.xlu0 %v4031
        %v4063 = vpop.xlane.xlu0 %4062
        %4064 = vadd.xlane.f32.xlu0 %v4033
        %v4065 = vpop.xlane.xlu0 %4064
        %4066 = vadd.xlane.f32.xlu0 %v4035
        %v4067 = vpop.xlane.xlu0 %4066
        %v4068 = vlog2.pop %v4037
        %v4069 = vmul.f32 %v4068, 0.6931472
        %v4070 = vlog2.pop %v4039
        %v4071 = vmul.f32 %v4070, 0.6931472
        %v4072 = vlog2.pop %v4041
        %v4073 = vmul.f32 %v4072, 0.6931472
        %v4074 = vlog2.pop %v4043
        %v4075 = vmul.f32 %v4074, 0.6931472
        %v4076 = vlog2.pop %v4045
        %v4077 = vmul.f32 %v4076, 0.6931472
        %v4078 = vlog2.pop %v4047
        %v4079 = vmul.f32 %v4078, 0.6931472
        %v4080 = vlog2.pop %v4049
        %v4081 = vmul.f32 %v4080, 0.6931472
        %v4082 = vlog2.pop %v4051
        %v4083 = vmul.f32 %v4082, 0.6931472
        %v4084 = vlog2.pop %v4053
        %v4085 = vmul.f32 %v4084, 0.6931472
        %v4086 = vlog2.pop %v4055
        %v4087 = vmul.f32 %v4086, 0.6931472
        %v4088 = vlog2.pop %v4057
        %v4089 = vmul.f32 %v4088, 0.6931472
        %v4090 = vlog2.pop %v4059
        %v4091 = vmul.f32 %v4090, 0.6931472
        %v4092 = vlog2.pop %v4061
        %v4093 = vmul.f32 %v4092, 0.6931472
        %v4094 = vlog2.pop %v4063
        %v4095 = vmul.f32 %v4094, 0.6931472
        %v4096 = vlog2.pop %v4065
        %v4097 = vmul.f32 %v4096, 0.6931472
        %v4098 = vlog2.pop %v4067
        %v4099 = vmul.f32 %v4098, 0.6931472
        %v4100 = vadd.f32 %v3957, %v4069
        %v4101 = vadd.f32 %v3959, %v4071
        %v4102 = vadd.f32 %v3961, %v4073
        %v4103 = vadd.f32 %v3963, %v4075
        %v4104 = vadd.f32 %v3965, %v4077
        %v4105 = vadd.f32 %v3967, %v4079
        %v4106 = vadd.f32 %v3969, %v4081
        %v4107 = vadd.f32 %v3971, %v4083
        %v4108 = vadd.f32 %v3973, %v4085
        %v4109 = vadd.f32 %v3975, %v4087
        %v4110 = vadd.f32 %v3977, %v4089
        %v4111 = vadd.f32 %v3979, %v4091
        %v4112 = vadd.f32 %v3981, %v4093
        %v4113 = vadd.f32 %v3983, %v4095
        %v4114 = vadd.f32 %v3985, %v4097
        %v4115 = vadd.f32 %v3987, %v4099
        %v4116 = vsub.f32 0.0, %v4100
        %v4117 = vsub.f32 0.0, %v4101
        %v4118 = vsub.f32 0.0, %v4102
        %v4119 = vsub.f32 0.0, %v4103
        %v4120 = vsub.f32 0.0, %v4104
        %v4121 = vsub.f32 0.0, %v4105
        %v4122 = vsub.f32 0.0, %v4106
        %v4123 = vsub.f32 0.0, %v4107
        %v4124 = vsub.f32 0.0, %v4108
        %v4125 = vsub.f32 0.0, %v4109
        %v4126 = vsub.f32 0.0, %v4110
        %v4127 = vsub.f32 0.0, %v4111
        %v4128 = vsub.f32 0.0, %v4112
        %v4129 = vsub.f32 0.0, %v4113
        %v4130 = vsub.f32 0.0, %v4114
        %v4131 = vsub.f32 0.0, %v4115
        %4132 = vxpose.xlu0.b32.start [1/16] %v4116, 128
        %4133 = vxpose.xlu0.b32.cont [2/16] %v4117, 128
        %4134 = vxpose.xlu0.b32.cont [3/16] %v4118, 128
        %4135 = vxpose.xlu0.b32.cont [4/16] %v4119, 128
        %4136 = vxpose.xlu0.b32.cont [5/16] %v4120, 128
        %4137 = vxpose.xlu0.b32.cont [6/16] %v4121, 128
        %4138 = vxpose.xlu0.b32.cont [7/16] %v4122, 128
        %4139 = vxpose.xlu0.b32.cont [8/16] %v4123, 128
        %4140 = vxpose.xlu0.b32.cont [9/16] %v4124, 128
        %4141 = vxpose.xlu0.b32.cont [10/16] %v4125, 128
        %4142 = vxpose.xlu0.b32.cont [11/16] %v4126, 128
        %4143 = vxpose.xlu0.b32.cont [12/16] %v4127, 128
        %4144 = vxpose.xlu0.b32.cont [13/16] %v4128, 128
        %4145 = vxpose.xlu0.b32.cont [14/16] %v4129, 128
        %4146 = vxpose.xlu0.b32.cont [15/16] %v4130, 128
        %4147 = vxpose.xlu0.b32.end [16/16] %v4131, 128
        %v4148 = vpop.trf.xlu0
        %v4149 = vpop.trf.xlu0
        %v4150 = vpop.trf.xlu0
        %v4151 = vpop.trf.xlu0
        %v4152 = vpop.trf.xlu0
        %v4153 = vpop.trf.xlu0
        %v4154 = vpop.trf.xlu0
        %v4155 = vpop.trf.xlu0
        %v4156 = vpop.trf.xlu0
        %v4157 = vpop.trf.xlu0
        %v4158 = vpop.trf.xlu0
        %v4159 = vpop.trf.xlu0
        %v4160 = vpop.trf.xlu0
        %v4161 = vpop.trf.xlu0
        %v4162 = vpop.trf.xlu0
        %v4163 = vpop.trf.xlu0
        %v4164 = vlaneseq
        %v4165 = vshrl.u32 %v4164, 7
        %v4166 = vsub.s32 0, %v4165
        %v4167 = vrot.slane %v4148, %v4166
        %v4168 = vadd.f32 %v504, %v4167
        %v4169 = vadd.f32 %v505, %v4167
        %v4170 = vadd.f32 %v506, %v4167
        %v4171 = vadd.f32 %v507, %v4167
        %v4172 = vadd.f32 %v508, %v4167
        %v4173 = vadd.f32 %v509, %v4167
        %v4174 = vadd.f32 %v510, %v4167
        %v4175 = vadd.f32 %v511, %v4167
        %v4176 = vadd.f32 %v512, %v4167
        %v4177 = vadd.f32 %v513, %v4167
        %v4178 = vadd.f32 %v514, %v4167
        %v4179 = vadd.f32 %v515, %v4167
        %v4180 = vadd.f32 %v516, %v4167
        %v4181 = vadd.f32 %v517, %v4167
        %v4182 = vadd.f32 %v518, %v4167
        %v4183 = vadd.f32 %v519, %v4167
        %4184 = vmax.xlane.f32.xlu0 %v4168
        %v4185 = vpop.xlane.xlu0 %4184
        %4186 = vmax.xlane.f32.xlu0 %v4169
        %v4187 = vpop.xlane.xlu0 %4186
        %4188 = vmax.xlane.f32.xlu0 %v4170
        %v4189 = vpop.xlane.xlu0 %4188
        %4190 = vmax.xlane.f32.xlu0 %v4171
        %v4191 = vpop.xlane.xlu0 %4190
        %4192 = vmax.xlane.f32.xlu0 %v4172
        %v4193 = vpop.xlane.xlu0 %4192
        %4194 = vmax.xlane.f32.xlu0 %v4173
        %v4195 = vpop.xlane.xlu0 %4194
        %4196 = vmax.xlane.f32.xlu0 %v4174
        %v4197 = vpop.xlane.xlu0 %4196
        %4198 = vmax.xlane.f32.xlu0 %v4175
        %v4199 = vpop.xlane.xlu0 %4198
        %4200 = vmax.xlane.f32.xlu0 %v4176
        %v4201 = vpop.xlane.xlu0 %4200
        %4202 = vmax.xlane.f32.xlu0 %v4177
        %v4203 = vpop.xlane.xlu0 %4202
        %4204 = vmax.xlane.f32.xlu0 %v4178
        %v4205 = vpop.xlane.xlu0 %4204
        %4206 = vmax.xlane.f32.xlu0 %v4179
        %v4207 = vpop.xlane.xlu0 %4206
        %4208 = vmax.xlane.f32.xlu0 %v4180
        %v4209 = vpop.xlane.xlu0 %4208
        %4210 = vmax.xlane.f32.xlu0 %v4181
        %v4211 = vpop.xlane.xlu0 %4210
        %4212 = vmax.xlane.f32.xlu0 %v4182
        %v4213 = vpop.xlane.xlu0 %4212
        %4214 = vmax.xlane.f32.xlu0 %v4183
        %v4215 = vpop.xlane.xlu0 %4214
        %v4216 = vsub.f32 %v4168, %v4185
        %v4217 = vsub.f32 %v4169, %v4187
        %v4218 = vsub.f32 %v4170, %v4189
        %v4219 = vsub.f32 %v4171, %v4191
        %v4220 = vsub.f32 %v4172, %v4193
        %v4221 = vsub.f32 %v4173, %v4195
        %v4222 = vsub.f32 %v4174, %v4197
        %v4223 = vsub.f32 %v4175, %v4199
        %v4224 = vsub.f32 %v4176, %v4201
        %v4225 = vsub.f32 %v4177, %v4203
        %v4226 = vsub.f32 %v4178, %v4205
        %v4227 = vsub.f32 %v4179, %v4207
        %v4228 = vsub.f32 %v4180, %v4209
        %v4229 = vsub.f32 %v4181, %v4211
        %v4230 = vsub.f32 %v4182, %v4213
        %v4231 = vsub.f32 %v4183, %v4215
        %v4232 = vmul.f32 %v4216, 1.442695
        %v4233 = vpow.pop %v4232
        %v4234 = vmul.f32 %v4217, 1.442695
        %v4235 = vpow.pop %v4234
        %v4236 = vmul.f32 %v4218, 1.442695
        %v4237 = vpow.pop %v4236
        %v4238 = vmul.f32 %v4219, 1.442695
        %v4239 = vpow.pop %v4238
        %v4240 = vmul.f32 %v4220, 1.442695
        %v4241 = vpow.pop %v4240
        %v4242 = vmul.f32 %v4221, 1.442695
        %v4243 = vpow.pop %v4242
        %v4244 = vmul.f32 %v4222, 1.442695
        %v4245 = vpow.pop %v4244
        %v4246 = vmul.f32 %v4223, 1.442695
        %v4247 = vpow.pop %v4246
        %v4248 = vmul.f32 %v4224, 1.442695
        %v4249 = vpow.pop %v4248
        %v4250 = vmul.f32 %v4225, 1.442695
        %v4251 = vpow.pop %v4250
        %v4252 = vmul.f32 %v4226, 1.442695
        %v4253 = vpow.pop %v4252
        %v4254 = vmul.f32 %v4227, 1.442695
        %v4255 = vpow.pop %v4254
        %v4256 = vmul.f32 %v4228, 1.442695
        %v4257 = vpow.pop %v4256
        %v4258 = vmul.f32 %v4229, 1.442695
        %v4259 = vpow.pop %v4258
        %v4260 = vmul.f32 %v4230, 1.442695
        %v4261 = vpow.pop %v4260
        %v4262 = vmul.f32 %v4231, 1.442695
        %v4263 = vpow.pop %v4262
        %4264 = vadd.xlane.f32.xlu0 %v4233
        %v4265 = vpop.xlane.xlu0 %4264
        %4266 = vadd.xlane.f32.xlu0 %v4235
        %v4267 = vpop.xlane.xlu0 %4266
        %4268 = vadd.xlane.f32.xlu0 %v4237
        %v4269 = vpop.xlane.xlu0 %4268
        %4270 = vadd.xlane.f32.xlu0 %v4239
        %v4271 = vpop.xlane.xlu0 %4270
        %4272 = vadd.xlane.f32.xlu0 %v4241
        %v4273 = vpop.xlane.xlu0 %4272
        %4274 = vadd.xlane.f32.xlu0 %v4243
        %v4275 = vpop.xlane.xlu0 %4274
        %4276 = vadd.xlane.f32.xlu0 %v4245
        %v4277 = vpop.xlane.xlu0 %4276
        %4278 = vadd.xlane.f32.xlu0 %v4247
        %v4279 = vpop.xlane.xlu0 %4278
        %4280 = vadd.xlane.f32.xlu0 %v4249
        %v4281 = vpop.xlane.xlu0 %4280
        %4282 = vadd.xlane.f32.xlu0 %v4251
        %v4283 = vpop.xlane.xlu0 %4282
        %4284 = vadd.xlane.f32.xlu0 %v4253
        %v4285 = vpop.xlane.xlu0 %4284
        %4286 = vadd.xlane.f32.xlu0 %v4255
        %v4287 = vpop.xlane.xlu0 %4286
        %4288 = vadd.xlane.f32.xlu0 %v4257
        %v4289 = vpop.xlane.xlu0 %4288
        %4290 = vadd.xlane.f32.xlu0 %v4259
        %v4291 = vpop.xlane.xlu0 %4290
        %4292 = vadd.xlane.f32.xlu0 %v4261
        %v4293 = vpop.xlane.xlu0 %4292
        %4294 = vadd.xlane.f32.xlu0 %v4263
        %v4295 = vpop.xlane.xlu0 %4294
        %v4296 = vlog2.pop %v4265
        %v4297 = vmul.f32 %v4296, 0.6931472
        %v4298 = vlog2.pop %v4267
        %v4299 = vmul.f32 %v4298, 0.6931472
        %v4300 = vlog2.pop %v4269
        %v4301 = vmul.f32 %v4300, 0.6931472
        %v4302 = vlog2.pop %v4271
        %v4303 = vmul.f32 %v4302, 0.6931472
        %v4304 = vlog2.pop %v4273
        %v4305 = vmul.f32 %v4304, 0.6931472
        %v4306 = vlog2.pop %v4275
        %v4307 = vmul.f32 %v4306, 0.6931472
        %v4308 = vlog2.pop %v4277
        %v4309 = vmul.f32 %v4308, 0.6931472
        %v4310 = vlog2.pop %v4279
        %v4311 = vmul.f32 %v4310, 0.6931472
        %v4312 = vlog2.pop %v4281
        %v4313 = vmul.f32 %v4312, 0.6931472
        %v4314 = vlog2.pop %v4283
        %v4315 = vmul.f32 %v4314, 0.6931472
        %v4316 = vlog2.pop %v4285
        %v4317 = vmul.f32 %v4316, 0.6931472
        %v4318 = vlog2.pop %v4287
        %v4319 = vmul.f32 %v4318, 0.6931472
        %v4320 = vlog2.pop %v4289
        %v4321 = vmul.f32 %v4320, 0.6931472
        %v4322 = vlog2.pop %v4291
        %v4323 = vmul.f32 %v4322, 0.6931472
        %v4324 = vlog2.pop %v4293
        %v4325 = vmul.f32 %v4324, 0.6931472
        %v4326 = vlog2.pop %v4295
        %v4327 = vmul.f32 %v4326, 0.6931472
        %v4328 = vadd.f32 %v4185, %v4297
        %v4329 = vadd.f32 %v4187, %v4299
        %v4330 = vadd.f32 %v4189, %v4301
        %v4331 = vadd.f32 %v4191, %v4303
        %v4332 = vadd.f32 %v4193, %v4305
        %v4333 = vadd.f32 %v4195, %v4307
        %v4334 = vadd.f32 %v4197, %v4309
        %v4335 = vadd.f32 %v4199, %v4311
        %v4336 = vadd.f32 %v4201, %v4313
        %v4337 = vadd.f32 %v4203, %v4315
        %v4338 = vadd.f32 %v4205, %v4317
        %v4339 = vadd.f32 %v4207, %v4319
        %v4340 = vadd.f32 %v4209, %v4321
        %v4341 = vadd.f32 %v4211, %v4323
        %v4342 = vadd.f32 %v4213, %v4325
        %v4343 = vadd.f32 %v4215, %v4327
        %v4344 = vsub.f32 0.0, %v4328
        %v4345 = vsub.f32 0.0, %v4329
        %v4346 = vsub.f32 0.0, %v4330
        %v4347 = vsub.f32 0.0, %v4331
        %v4348 = vsub.f32 0.0, %v4332
        %v4349 = vsub.f32 0.0, %v4333
        %v4350 = vsub.f32 0.0, %v4334
        %v4351 = vsub.f32 0.0, %v4335
        %v4352 = vsub.f32 0.0, %v4336
        %v4353 = vsub.f32 0.0, %v4337
        %v4354 = vsub.f32 0.0, %v4338
        %v4355 = vsub.f32 0.0, %v4339
        %v4356 = vsub.f32 0.0, %v4340
        %v4357 = vsub.f32 0.0, %v4341
        %v4358 = vsub.f32 0.0, %v4342
        %v4359 = vsub.f32 0.0, %v4343
        %4360 = vxpose.xlu0.b32.start [1/16] %v4344, 128
        %4361 = vxpose.xlu0.b32.cont [2/16] %v4345, 128
        %4362 = vxpose.xlu0.b32.cont [3/16] %v4346, 128
        %4363 = vxpose.xlu0.b32.cont [4/16] %v4347, 128
        %4364 = vxpose.xlu0.b32.cont [5/16] %v4348, 128
        %4365 = vxpose.xlu0.b32.cont [6/16] %v4349, 128
        %4366 = vxpose.xlu0.b32.cont [7/16] %v4350, 128
        %4367 = vxpose.xlu0.b32.cont [8/16] %v4351, 128
        %4368 = vxpose.xlu0.b32.cont [9/16] %v4352, 128
        %4369 = vxpose.xlu0.b32.cont [10/16] %v4353, 128
        %4370 = vxpose.xlu0.b32.cont [11/16] %v4354, 128
        %4371 = vxpose.xlu0.b32.cont [12/16] %v4355, 128
        %4372 = vxpose.xlu0.b32.cont [13/16] %v4356, 128
        %4373 = vxpose.xlu0.b32.cont [14/16] %v4357, 128
        %4374 = vxpose.xlu0.b32.cont [15/16] %v4358, 128
        %4375 = vxpose.xlu0.b32.end [16/16] %v4359, 128
        %v4376 = vpop.trf.xlu0
        %v4377 = vpop.trf.xlu0
        %v4378 = vpop.trf.xlu0
        %v4379 = vpop.trf.xlu0
        %v4380 = vpop.trf.xlu0
        %v4381 = vpop.trf.xlu0
        %v4382 = vpop.trf.xlu0
        %v4383 = vpop.trf.xlu0
        %v4384 = vpop.trf.xlu0
        %v4385 = vpop.trf.xlu0
        %v4386 = vpop.trf.xlu0
        %v4387 = vpop.trf.xlu0
        %v4388 = vpop.trf.xlu0
        %v4389 = vpop.trf.xlu0
        %v4390 = vpop.trf.xlu0
        %v4391 = vpop.trf.xlu0
        %v4392 = vlaneseq
        %v4393 = vshrl.u32 %v4392, 7
        %v4394 = vsub.s32 0, %v4393
        %v4395 = vrot.slane %v4376, %v4394
        %v4396 = vadd.f32 %v504, %v4395
        %v4397 = vadd.f32 %v505, %v4395
        %v4398 = vadd.f32 %v506, %v4395
        %v4399 = vadd.f32 %v507, %v4395
        %v4400 = vadd.f32 %v508, %v4395
        %v4401 = vadd.f32 %v509, %v4395
        %v4402 = vadd.f32 %v510, %v4395
        %v4403 = vadd.f32 %v511, %v4395
        %v4404 = vadd.f32 %v512, %v4395
        %v4405 = vadd.f32 %v513, %v4395
        %v4406 = vadd.f32 %v514, %v4395
        %v4407 = vadd.f32 %v515, %v4395
        %v4408 = vadd.f32 %v516, %v4395
        %v4409 = vadd.f32 %v517, %v4395
        %v4410 = vadd.f32 %v518, %v4395
        %v4411 = vadd.f32 %v519, %v4395
        %4412 = vmax.xlane.f32.xlu0 %v4396
        %v4413 = vpop.xlane.xlu0 %4412
        %4414 = vmax.xlane.f32.xlu0 %v4397
        %v4415 = vpop.xlane.xlu0 %4414
        %4416 = vmax.xlane.f32.xlu0 %v4398
        %v4417 = vpop.xlane.xlu0 %4416
        %4418 = vmax.xlane.f32.xlu0 %v4399
        %v4419 = vpop.xlane.xlu0 %4418
        %4420 = vmax.xlane.f32.xlu0 %v4400
        %v4421 = vpop.xlane.xlu0 %4420
        %4422 = vmax.xlane.f32.xlu0 %v4401
        %v4423 = vpop.xlane.xlu0 %4422
        %4424 = vmax.xlane.f32.xlu0 %v4402
        %v4425 = vpop.xlane.xlu0 %4424
        %4426 = vmax.xlane.f32.xlu0 %v4403
        %v4427 = vpop.xlane.xlu0 %4426
        %4428 = vmax.xlane.f32.xlu0 %v4404
        %v4429 = vpop.xlane.xlu0 %4428
        %4430 = vmax.xlane.f32.xlu0 %v4405
        %v4431 = vpop.xlane.xlu0 %4430
        %4432 = vmax.xlane.f32.xlu0 %v4406
        %v4433 = vpop.xlane.xlu0 %4432
        %4434 = vmax.xlane.f32.xlu0 %v4407
        %v4435 = vpop.xlane.xlu0 %4434
        %4436 = vmax.xlane.f32.xlu0 %v4408
        %v4437 = vpop.xlane.xlu0 %4436
        %4438 = vmax.xlane.f32.xlu0 %v4409
        %v4439 = vpop.xlane.xlu0 %4438
        %4440 = vmax.xlane.f32.xlu0 %v4410
        %v4441 = vpop.xlane.xlu0 %4440
        %4442 = vmax.xlane.f32.xlu0 %v4411
        %v4443 = vpop.xlane.xlu0 %4442
        %v4444 = vsub.f32 %v4396, %v4413
        %v4445 = vsub.f32 %v4397, %v4415
        %v4446 = vsub.f32 %v4398, %v4417
        %v4447 = vsub.f32 %v4399, %v4419
        %v4448 = vsub.f32 %v4400, %v4421
        %v4449 = vsub.f32 %v4401, %v4423
        %v4450 = vsub.f32 %v4402, %v4425
        %v4451 = vsub.f32 %v4403, %v4427
        %v4452 = vsub.f32 %v4404, %v4429
        %v4453 = vsub.f32 %v4405, %v4431
        %v4454 = vsub.f32 %v4406, %v4433
        %v4455 = vsub.f32 %v4407, %v4435
        %v4456 = vsub.f32 %v4408, %v4437
        %v4457 = vsub.f32 %v4409, %v4439
        %v4458 = vsub.f32 %v4410, %v4441
        %v4459 = vsub.f32 %v4411, %v4443
        %v4460 = vmul.f32 %v4444, 1.442695
        %v4461 = vpow.pop %v4460
        %v4462 = vmul.f32 %v4445, 1.442695
        %v4463 = vpow.pop %v4462
        %v4464 = vmul.f32 %v4446, 1.442695
        %v4465 = vpow.pop %v4464
        %v4466 = vmul.f32 %v4447, 1.442695
        %v4467 = vpow.pop %v4466
        %v4468 = vmul.f32 %v4448, 1.442695
        %v4469 = vpow.pop %v4468
        %v4470 = vmul.f32 %v4449, 1.442695
        %v4471 = vpow.pop %v4470
        %v4472 = vmul.f32 %v4450, 1.442695
        %v4473 = vpow.pop %v4472
        %v4474 = vmul.f32 %v4451, 1.442695
        %v4475 = vpow.pop %v4474
        %v4476 = vmul.f32 %v4452, 1.442695
        %v4477 = vpow.pop %v4476
        %v4478 = vmul.f32 %v4453, 1.442695
        %v4479 = vpow.pop %v4478
        %v4480 = vmul.f32 %v4454, 1.442695
        %v4481 = vpow.pop %v4480
        %v4482 = vmul.f32 %v4455, 1.442695
        %v4483 = vpow.pop %v4482
        %v4484 = vmul.f32 %v4456, 1.442695
        %v4485 = vpow.pop %v4484
        %v4486 = vmul.f32 %v4457, 1.442695
        %v4487 = vpow.pop %v4486
        %v4488 = vmul.f32 %v4458, 1.442695
        %v4489 = vpow.pop %v4488
        %v4490 = vmul.f32 %v4459, 1.442695
        %v4491 = vpow.pop %v4490
        %4492 = vadd.xlane.f32.xlu0 %v4461
        %v4493 = vpop.xlane.xlu0 %4492
        %4494 = vadd.xlane.f32.xlu0 %v4463
        %v4495 = vpop.xlane.xlu0 %4494
        %4496 = vadd.xlane.f32.xlu0 %v4465
        %v4497 = vpop.xlane.xlu0 %4496
        %4498 = vadd.xlane.f32.xlu0 %v4467
        %v4499 = vpop.xlane.xlu0 %4498
        %4500 = vadd.xlane.f32.xlu0 %v4469
        %v4501 = vpop.xlane.xlu0 %4500
        %4502 = vadd.xlane.f32.xlu0 %v4471
        %v4503 = vpop.xlane.xlu0 %4502
        %4504 = vadd.xlane.f32.xlu0 %v4473
        %v4505 = vpop.xlane.xlu0 %4504
        %4506 = vadd.xlane.f32.xlu0 %v4475
        %v4507 = vpop.xlane.xlu0 %4506
        %4508 = vadd.xlane.f32.xlu0 %v4477
        %v4509 = vpop.xlane.xlu0 %4508
        %4510 = vadd.xlane.f32.xlu0 %v4479
        %v4511 = vpop.xlane.xlu0 %4510
        %4512 = vadd.xlane.f32.xlu0 %v4481
        %v4513 = vpop.xlane.xlu0 %4512
        %4514 = vadd.xlane.f32.xlu0 %v4483
        %v4515 = vpop.xlane.xlu0 %4514
        %4516 = vadd.xlane.f32.xlu0 %v4485
        %v4517 = vpop.xlane.xlu0 %4516
        %4518 = vadd.xlane.f32.xlu0 %v4487
        %v4519 = vpop.xlane.xlu0 %4518
        %4520 = vadd.xlane.f32.xlu0 %v4489
        %v4521 = vpop.xlane.xlu0 %4520
        %4522 = vadd.xlane.f32.xlu0 %v4491
        %v4523 = vpop.xlane.xlu0 %4522
        %v4524 = vlog2.pop %v4493
        %v4525 = vmul.f32 %v4524, 0.6931472
        %v4526 = vlog2.pop %v4495
        %v4527 = vmul.f32 %v4526, 0.6931472
        %v4528 = vlog2.pop %v4497
        %v4529 = vmul.f32 %v4528, 0.6931472
        %v4530 = vlog2.pop %v4499
        %v4531 = vmul.f32 %v4530, 0.6931472
        %v4532 = vlog2.pop %v4501
        %v4533 = vmul.f32 %v4532, 0.6931472
        %v4534 = vlog2.pop %v4503
        %v4535 = vmul.f32 %v4534, 0.6931472
        %v4536 = vlog2.pop %v4505
        %v4537 = vmul.f32 %v4536, 0.6931472
        %v4538 = vlog2.pop %v4507
        %v4539 = vmul.f32 %v4538, 0.6931472
        %v4540 = vlog2.pop %v4509
        %v4541 = vmul.f32 %v4540, 0.6931472
        %v4542 = vlog2.pop %v4511
        %v4543 = vmul.f32 %v4542, 0.6931472
        %v4544 = vlog2.pop %v4513
        %v4545 = vmul.f32 %v4544, 0.6931472
        %v4546 = vlog2.pop %v4515
        %v4547 = vmul.f32 %v4546, 0.6931472
        %v4548 = vlog2.pop %v4517
        %v4549 = vmul.f32 %v4548, 0.6931472
        %v4550 = vlog2.pop %v4519
        %v4551 = vmul.f32 %v4550, 0.6931472
        %v4552 = vlog2.pop %v4521
        %v4553 = vmul.f32 %v4552, 0.6931472
        %v4554 = vlog2.pop %v4523
        %v4555 = vmul.f32 %v4554, 0.6931472
        %v4556 = vadd.f32 %v4413, %v4525
        %v4557 = vadd.f32 %v4415, %v4527
        %v4558 = vadd.f32 %v4417, %v4529
        %v4559 = vadd.f32 %v4419, %v4531
        %v4560 = vadd.f32 %v4421, %v4533
        %v4561 = vadd.f32 %v4423, %v4535
        %v4562 = vadd.f32 %v4425, %v4537
        %v4563 = vadd.f32 %v4427, %v4539
        %v4564 = vadd.f32 %v4429, %v4541
        %v4565 = vadd.f32 %v4431, %v4543
        %v4566 = vadd.f32 %v4433, %v4545
        %v4567 = vadd.f32 %v4435, %v4547
        %v4568 = vadd.f32 %v4437, %v4549
        %v4569 = vadd.f32 %v4439, %v4551
        %v4570 = vadd.f32 %v4441, %v4553
        %v4571 = vadd.f32 %v4443, %v4555
        %v4572 = vsub.f32 0.0, %v4556
        %v4573 = vsub.f32 0.0, %v4557
        %v4574 = vsub.f32 0.0, %v4558
        %v4575 = vsub.f32 0.0, %v4559
        %v4576 = vsub.f32 0.0, %v4560
        %v4577 = vsub.f32 0.0, %v4561
        %v4578 = vsub.f32 0.0, %v4562
        %v4579 = vsub.f32 0.0, %v4563
        %v4580 = vsub.f32 0.0, %v4564
        %v4581 = vsub.f32 0.0, %v4565
        %v4582 = vsub.f32 0.0, %v4566
        %v4583 = vsub.f32 0.0, %v4567
        %v4584 = vsub.f32 0.0, %v4568
        %v4585 = vsub.f32 0.0, %v4569
        %v4586 = vsub.f32 0.0, %v4570
        %v4587 = vsub.f32 0.0, %v4571
        %4588 = vxpose.xlu0.b32.start [1/16] %v4572, 128
        %4589 = vxpose.xlu0.b32.cont [2/16] %v4573, 128
        %4590 = vxpose.xlu0.b32.cont [3/16] %v4574, 128
        %4591 = vxpose.xlu0.b32.cont [4/16] %v4575, 128
        %4592 = vxpose.xlu0.b32.cont [5/16] %v4576, 128
        %4593 = vxpose.xlu0.b32.cont [6/16] %v4577, 128
        %4594 = vxpose.xlu0.b32.cont [7/16] %v4578, 128
        %4595 = vxpose.xlu0.b32.cont [8/16] %v4579, 128
        %4596 = vxpose.xlu0.b32.cont [9/16] %v4580, 128
        %4597 = vxpose.xlu0.b32.cont [10/16] %v4581, 128
        %4598 = vxpose.xlu0.b32.cont [11/16] %v4582, 128
        %4599 = vxpose.xlu0.b32.cont [12/16] %v4583, 128
        %4600 = vxpose.xlu0.b32.cont [13/16] %v4584, 128
        %4601 = vxpose.xlu0.b32.cont [14/16] %v4585, 128
        %4602 = vxpose.xlu0.b32.cont [15/16] %v4586, 128
        %4603 = vxpose.xlu0.b32.end [16/16] %v4587, 128
        %v4604 = vpop.trf.xlu0
        %v4605 = vpop.trf.xlu0
        %v4606 = vpop.trf.xlu0
        %v4607 = vpop.trf.xlu0
        %v4608 = vpop.trf.xlu0
        %v4609 = vpop.trf.xlu0
        %v4610 = vpop.trf.xlu0
        %v4611 = vpop.trf.xlu0
        %v4612 = vpop.trf.xlu0
        %v4613 = vpop.trf.xlu0
        %v4614 = vpop.trf.xlu0
        %v4615 = vpop.trf.xlu0
        %v4616 = vpop.trf.xlu0
        %v4617 = vpop.trf.xlu0
        %v4618 = vpop.trf.xlu0
        %v4619 = vpop.trf.xlu0
        %v4620 = vlaneseq
        %v4621 = vshrl.u32 %v4620, 7
        %v4622 = vsub.s32 0, %v4621
        %v4623 = vrot.slane %v4604, %v4622
        %v4624 = vadd.f32 %v504, %v4623
        %v4625 = vadd.f32 %v505, %v4623
        %v4626 = vadd.f32 %v506, %v4623
        %v4627 = vadd.f32 %v507, %v4623
        %v4628 = vadd.f32 %v508, %v4623
        %v4629 = vadd.f32 %v509, %v4623
        %v4630 = vadd.f32 %v510, %v4623
        %v4631 = vadd.f32 %v511, %v4623
        %v4632 = vadd.f32 %v512, %v4623
        %v4633 = vadd.f32 %v513, %v4623
        %v4634 = vadd.f32 %v514, %v4623
        %v4635 = vadd.f32 %v515, %v4623
        %v4636 = vadd.f32 %v516, %v4623
        %v4637 = vadd.f32 %v517, %v4623
        %v4638 = vadd.f32 %v518, %v4623
        %v4639 = vadd.f32 %v519, %v4623
        %4640 = vmax.xlane.f32.xlu0 %v4624
        %v4641 = vpop.xlane.xlu0 %4640
        %4642 = vmax.xlane.f32.xlu0 %v4625
        %v4643 = vpop.xlane.xlu0 %4642
        %4644 = vmax.xlane.f32.xlu0 %v4626
        %v4645 = vpop.xlane.xlu0 %4644
        %4646 = vmax.xlane.f32.xlu0 %v4627
        %v4647 = vpop.xlane.xlu0 %4646
        %4648 = vmax.xlane.f32.xlu0 %v4628
        %v4649 = vpop.xlane.xlu0 %4648
        %4650 = vmax.xlane.f32.xlu0 %v4629
        %v4651 = vpop.xlane.xlu0 %4650
        %4652 = vmax.xlane.f32.xlu0 %v4630
        %v4653 = vpop.xlane.xlu0 %4652
        %4654 = vmax.xlane.f32.xlu0 %v4631
        %v4655 = vpop.xlane.xlu0 %4654
        %4656 = vmax.xlane.f32.xlu0 %v4632
        %v4657 = vpop.xlane.xlu0 %4656
        %4658 = vmax.xlane.f32.xlu0 %v4633
        %v4659 = vpop.xlane.xlu0 %4658
        %4660 = vmax.xlane.f32.xlu0 %v4634
        %v4661 = vpop.xlane.xlu0 %4660
        %4662 = vmax.xlane.f32.xlu0 %v4635
        %v4663 = vpop.xlane.xlu0 %4662
        %4664 = vmax.xlane.f32.xlu0 %v4636
        %v4665 = vpop.xlane.xlu0 %4664
        %4666 = vmax.xlane.f32.xlu0 %v4637
        %v4667 = vpop.xlane.xlu0 %4666
        %4668 = vmax.xlane.f32.xlu0 %v4638
        %v4669 = vpop.xlane.xlu0 %4668
        %4670 = vmax.xlane.f32.xlu0 %v4639
        %v4671 = vpop.xlane.xlu0 %4670
        %v4672 = vsub.f32 %v4624, %v4641
        %v4673 = vsub.f32 %v4625, %v4643
        %v4674 = vsub.f32 %v4626, %v4645
        %v4675 = vsub.f32 %v4627, %v4647
        %v4676 = vsub.f32 %v4628, %v4649
        %v4677 = vsub.f32 %v4629, %v4651
        %v4678 = vsub.f32 %v4630, %v4653
        %v4679 = vsub.f32 %v4631, %v4655
        %v4680 = vsub.f32 %v4632, %v4657
        %v4681 = vsub.f32 %v4633, %v4659
        %v4682 = vsub.f32 %v4634, %v4661
        %v4683 = vsub.f32 %v4635, %v4663
        %v4684 = vsub.f32 %v4636, %v4665
        %v4685 = vsub.f32 %v4637, %v4667
        %v4686 = vsub.f32 %v4638, %v4669
        %v4687 = vsub.f32 %v4639, %v4671
        %v4688 = vmul.f32 %v4672, 1.442695
        %v4689 = vpow.pop %v4688
        %v4690 = vmul.f32 %v4673, 1.442695
        %v4691 = vpow.pop %v4690
        %v4692 = vmul.f32 %v4674, 1.442695
        %v4693 = vpow.pop %v4692
        %v4694 = vmul.f32 %v4675, 1.442695
        %v4695 = vpow.pop %v4694
        %v4696 = vmul.f32 %v4676, 1.442695
        %v4697 = vpow.pop %v4696
        %v4698 = vmul.f32 %v4677, 1.442695
        %v4699 = vpow.pop %v4698
        %v4700 = vmul.f32 %v4678, 1.442695
        %v4701 = vpow.pop %v4700
        %v4702 = vmul.f32 %v4679, 1.442695
        %v4703 = vpow.pop %v4702
        %v4704 = vmul.f32 %v4680, 1.442695
        %v4705 = vpow.pop %v4704
        %v4706 = vmul.f32 %v4681, 1.442695
        %v4707 = vpow.pop %v4706
        %v4708 = vmul.f32 %v4682, 1.442695
        %v4709 = vpow.pop %v4708
        %v4710 = vmul.f32 %v4683, 1.442695
        %v4711 = vpow.pop %v4710
        %v4712 = vmul.f32 %v4684, 1.442695
        %v4713 = vpow.pop %v4712
        %v4714 = vmul.f32 %v4685, 1.442695
        %v4715 = vpow.pop %v4714
        %v4716 = vmul.f32 %v4686, 1.442695
        %v4717 = vpow.pop %v4716
        %v4718 = vmul.f32 %v4687, 1.442695
        %v4719 = vpow.pop %v4718
        %4720 = vadd.xlane.f32.xlu0 %v4689
        %v4721 = vpop.xlane.xlu0 %4720
        %4722 = vadd.xlane.f32.xlu0 %v4691
        %v4723 = vpop.xlane.xlu0 %4722
        %4724 = vadd.xlane.f32.xlu0 %v4693
        %v4725 = vpop.xlane.xlu0 %4724
        %4726 = vadd.xlane.f32.xlu0 %v4695
        %v4727 = vpop.xlane.xlu0 %4726
        %4728 = vadd.xlane.f32.xlu0 %v4697
        %v4729 = vpop.xlane.xlu0 %4728
        %4730 = vadd.xlane.f32.xlu0 %v4699
        %v4731 = vpop.xlane.xlu0 %4730
        %4732 = vadd.xlane.f32.xlu0 %v4701
        %v4733 = vpop.xlane.xlu0 %4732
        %4734 = vadd.xlane.f32.xlu0 %v4703
        %v4735 = vpop.xlane.xlu0 %4734
        %4736 = vadd.xlane.f32.xlu0 %v4705
        %v4737 = vpop.xlane.xlu0 %4736
        %4738 = vadd.xlane.f32.xlu0 %v4707
        %v4739 = vpop.xlane.xlu0 %4738
        %4740 = vadd.xlane.f32.xlu0 %v4709
        %v4741 = vpop.xlane.xlu0 %4740
        %4742 = vadd.xlane.f32.xlu0 %v4711
        %v4743 = vpop.xlane.xlu0 %4742
        %4744 = vadd.xlane.f32.xlu0 %v4713
        %v4745 = vpop.xlane.xlu0 %4744
        %4746 = vadd.xlane.f32.xlu0 %v4715
        %v4747 = vpop.xlane.xlu0 %4746
        %4748 = vadd.xlane.f32.xlu0 %v4717
        %v4749 = vpop.xlane.xlu0 %4748
        %4750 = vadd.xlane.f32.xlu0 %v4719
        %v4751 = vpop.xlane.xlu0 %4750
        %v4752 = vlog2.pop %v4721
        %v4753 = vmul.f32 %v4752, 0.6931472
        %v4754 = vlog2.pop %v4723
        %v4755 = vmul.f32 %v4754, 0.6931472
        %v4756 = vlog2.pop %v4725
        %v4757 = vmul.f32 %v4756, 0.6931472
        %v4758 = vlog2.pop %v4727
        %v4759 = vmul.f32 %v4758, 0.6931472
        %v4760 = vlog2.pop %v4729
        %v4761 = vmul.f32 %v4760, 0.6931472
        %v4762 = vlog2.pop %v4731
        %v4763 = vmul.f32 %v4762, 0.6931472
        %v4764 = vlog2.pop %v4733
        %v4765 = vmul.f32 %v4764, 0.6931472
        %v4766 = vlog2.pop %v4735
        %v4767 = vmul.f32 %v4766, 0.6931472
        %v4768 = vlog2.pop %v4737
        %v4769 = vmul.f32 %v4768, 0.6931472
        %v4770 = vlog2.pop %v4739
        %v4771 = vmul.f32 %v4770, 0.6931472
        %v4772 = vlog2.pop %v4741
        %v4773 = vmul.f32 %v4772, 0.6931472
        %v4774 = vlog2.pop %v4743
        %v4775 = vmul.f32 %v4774, 0.6931472
        %v4776 = vlog2.pop %v4745
        %v4777 = vmul.f32 %v4776, 0.6931472
        %v4778 = vlog2.pop %v4747
        %v4779 = vmul.f32 %v4778, 0.6931472
        %v4780 = vlog2.pop %v4749
        %v4781 = vmul.f32 %v4780, 0.6931472
        %v4782 = vlog2.pop %v4751
        %v4783 = vmul.f32 %v4782, 0.6931472
        %v4784 = vadd.f32 %v4641, %v4753
        %v4785 = vadd.f32 %v4643, %v4755
        %v4786 = vadd.f32 %v4645, %v4757
        %v4787 = vadd.f32 %v4647, %v4759
        %v4788 = vadd.f32 %v4649, %v4761
        %v4789 = vadd.f32 %v4651, %v4763
        %v4790 = vadd.f32 %v4653, %v4765
        %v4791 = vadd.f32 %v4655, %v4767
        %v4792 = vadd.f32 %v4657, %v4769
        %v4793 = vadd.f32 %v4659, %v4771
        %v4794 = vadd.f32 %v4661, %v4773
        %v4795 = vadd.f32 %v4663, %v4775
        %v4796 = vadd.f32 %v4665, %v4777
        %v4797 = vadd.f32 %v4667, %v4779
        %v4798 = vadd.f32 %v4669, %v4781
        %v4799 = vadd.f32 %v4671, %v4783
        %v4800 = vsub.f32 0.0, %v4784
        %v4801 = vsub.f32 0.0, %v4785
        %v4802 = vsub.f32 0.0, %v4786
        %v4803 = vsub.f32 0.0, %v4787
        %v4804 = vsub.f32 0.0, %v4788
        %v4805 = vsub.f32 0.0, %v4789
        %v4806 = vsub.f32 0.0, %v4790
        %v4807 = vsub.f32 0.0, %v4791
        %v4808 = vsub.f32 0.0, %v4792
        %v4809 = vsub.f32 0.0, %v4793
        %v4810 = vsub.f32 0.0, %v4794
        %v4811 = vsub.f32 0.0, %v4795
        %v4812 = vsub.f32 0.0, %v4796
        %v4813 = vsub.f32 0.0, %v4797
        %v4814 = vsub.f32 0.0, %v4798
        %v4815 = vsub.f32 0.0, %v4799
        %4816 = vxpose.xlu0.b32.start [1/16] %v4800, 128
        %4817 = vxpose.xlu0.b32.cont [2/16] %v4801, 128
        %4818 = vxpose.xlu0.b32.cont [3/16] %v4802, 128
        %4819 = vxpose.xlu0.b32.cont [4/16] %v4803, 128
        %4820 = vxpose.xlu0.b32.cont [5/16] %v4804, 128
        %4821 = vxpose.xlu0.b32.cont [6/16] %v4805, 128
        %4822 = vxpose.xlu0.b32.cont [7/16] %v4806, 128
        %4823 = vxpose.xlu0.b32.cont [8/16] %v4807, 128
        %4824 = vxpose.xlu0.b32.cont [9/16] %v4808, 128
        %4825 = vxpose.xlu0.b32.cont [10/16] %v4809, 128
        %4826 = vxpose.xlu0.b32.cont [11/16] %v4810, 128
        %4827 = vxpose.xlu0.b32.cont [12/16] %v4811, 128
        %4828 = vxpose.xlu0.b32.cont [13/16] %v4812, 128
        %4829 = vxpose.xlu0.b32.cont [14/16] %v4813, 128
        %4830 = vxpose.xlu0.b32.cont [15/16] %v4814, 128
        %4831 = vxpose.xlu0.b32.end [16/16] %v4815, 128
        %v4832 = vpop.trf.xlu0
        %v4833 = vpop.trf.xlu0
        %v4834 = vpop.trf.xlu0
        %v4835 = vpop.trf.xlu0
        %v4836 = vpop.trf.xlu0
        %v4837 = vpop.trf.xlu0
        %v4838 = vpop.trf.xlu0
        %v4839 = vpop.trf.xlu0
        %v4840 = vpop.trf.xlu0
        %v4841 = vpop.trf.xlu0
        %v4842 = vpop.trf.xlu0
        %v4843 = vpop.trf.xlu0
        %v4844 = vpop.trf.xlu0
        %v4845 = vpop.trf.xlu0
        %v4846 = vpop.trf.xlu0
        %v4847 = vpop.trf.xlu0
        %v4848 = vlaneseq
        %v4849 = vshrl.u32 %v4848, 7
        %v4850 = vsub.s32 0, %v4849
        %v4851 = vrot.slane %v4832, %v4850
        %v4852 = vadd.f32 %v504, %v4851
        %v4853 = vadd.f32 %v505, %v4851
        %v4854 = vadd.f32 %v506, %v4851
        %v4855 = vadd.f32 %v507, %v4851
        %v4856 = vadd.f32 %v508, %v4851
        %v4857 = vadd.f32 %v509, %v4851
        %v4858 = vadd.f32 %v510, %v4851
        %v4859 = vadd.f32 %v511, %v4851
        %v4860 = vadd.f32 %v512, %v4851
        %v4861 = vadd.f32 %v513, %v4851
        %v4862 = vadd.f32 %v514, %v4851
        %v4863 = vadd.f32 %v515, %v4851
        %v4864 = vadd.f32 %v516, %v4851
        %v4865 = vadd.f32 %v517, %v4851
        %v4866 = vadd.f32 %v518, %v4851
        %v4867 = vadd.f32 %v519, %v4851
        %4868 = vmax.xlane.f32.xlu0 %v4852
        %v4869 = vpop.xlane.xlu0 %4868
        %4870 = vmax.xlane.f32.xlu0 %v4853
        %v4871 = vpop.xlane.xlu0 %4870
        %4872 = vmax.xlane.f32.xlu0 %v4854
        %v4873 = vpop.xlane.xlu0 %4872
        %4874 = vmax.xlane.f32.xlu0 %v4855
        %v4875 = vpop.xlane.xlu0 %4874
        %4876 = vmax.xlane.f32.xlu0 %v4856
        %v4877 = vpop.xlane.xlu0 %4876
        %4878 = vmax.xlane.f32.xlu0 %v4857
        %v4879 = vpop.xlane.xlu0 %4878
        %4880 = vmax.xlane.f32.xlu0 %v4858
        %v4881 = vpop.xlane.xlu0 %4880
        %4882 = vmax.xlane.f32.xlu0 %v4859
        %v4883 = vpop.xlane.xlu0 %4882
        %4884 = vmax.xlane.f32.xlu0 %v4860
        %v4885 = vpop.xlane.xlu0 %4884
        %4886 = vmax.xlane.f32.xlu0 %v4861
        %v4887 = vpop.xlane.xlu0 %4886
        %4888 = vmax.xlane.f32.xlu0 %v4862
        %v4889 = vpop.xlane.xlu0 %4888
        %4890 = vmax.xlane.f32.xlu0 %v4863
        %v4891 = vpop.xlane.xlu0 %4890
        %4892 = vmax.xlane.f32.xlu0 %v4864
        %v4893 = vpop.xlane.xlu0 %4892
        %4894 = vmax.xlane.f32.xlu0 %v4865
        %v4895 = vpop.xlane.xlu0 %4894
        %4896 = vmax.xlane.f32.xlu0 %v4866
        %v4897 = vpop.xlane.xlu0 %4896
        %4898 = vmax.xlane.f32.xlu0 %v4867
        %v4899 = vpop.xlane.xlu0 %4898
        %v4900 = vsub.f32 %v4852, %v4869
        %v4901 = vsub.f32 %v4853, %v4871
        %v4902 = vsub.f32 %v4854, %v4873
        %v4903 = vsub.f32 %v4855, %v4875
        %v4904 = vsub.f32 %v4856, %v4877
        %v4905 = vsub.f32 %v4857, %v4879
        %v4906 = vsub.f32 %v4858, %v4881
        %v4907 = vsub.f32 %v4859, %v4883
        %v4908 = vsub.f32 %v4860, %v4885
        %v4909 = vsub.f32 %v4861, %v4887
        %v4910 = vsub.f32 %v4862, %v4889
        %v4911 = vsub.f32 %v4863, %v4891
        %v4912 = vsub.f32 %v4864, %v4893
        %v4913 = vsub.f32 %v4865, %v4895
        %v4914 = vsub.f32 %v4866, %v4897
        %v4915 = vsub.f32 %v4867, %v4899
        %v4916 = vmul.f32 %v4900, 1.442695
        %v4917 = vpow.pop %v4916
        %v4918 = vmul.f32 %v4901, 1.442695
        %v4919 = vpow.pop %v4918
        %v4920 = vmul.f32 %v4902, 1.442695
        %v4921 = vpow.pop %v4920
        %v4922 = vmul.f32 %v4903, 1.442695
        %v4923 = vpow.pop %v4922
        %v4924 = vmul.f32 %v4904, 1.442695
        %v4925 = vpow.pop %v4924
        %v4926 = vmul.f32 %v4905, 1.442695
        %v4927 = vpow.pop %v4926
        %v4928 = vmul.f32 %v4906, 1.442695
        %v4929 = vpow.pop %v4928
        %v4930 = vmul.f32 %v4907, 1.442695
        %v4931 = vpow.pop %v4930
        %v4932 = vmul.f32 %v4908, 1.442695
        %v4933 = vpow.pop %v4932
        %v4934 = vmul.f32 %v4909, 1.442695
        %v4935 = vpow.pop %v4934
        %v4936 = vmul.f32 %v4910, 1.442695
        %v4937 = vpow.pop %v4936
        %v4938 = vmul.f32 %v4911, 1.442695
        %v4939 = vpow.pop %v4938
        %v4940 = vmul.f32 %v4912, 1.442695
        %v4941 = vpow.pop %v4940
        %v4942 = vmul.f32 %v4913, 1.442695
        %v4943 = vpow.pop %v4942
        %v4944 = vmul.f32 %v4914, 1.442695
        %v4945 = vpow.pop %v4944
        %v4946 = vmul.f32 %v4915, 1.442695
        %v4947 = vpow.pop %v4946
        %4948 = vadd.xlane.f32.xlu0 %v4917
        %v4949 = vpop.xlane.xlu0 %4948
        %4950 = vadd.xlane.f32.xlu0 %v4919
        %v4951 = vpop.xlane.xlu0 %4950
        %4952 = vadd.xlane.f32.xlu0 %v4921
        %v4953 = vpop.xlane.xlu0 %4952
        %4954 = vadd.xlane.f32.xlu0 %v4923
        %v4955 = vpop.xlane.xlu0 %4954
        %4956 = vadd.xlane.f32.xlu0 %v4925
        %v4957 = vpop.xlane.xlu0 %4956
        %4958 = vadd.xlane.f32.xlu0 %v4927
        %v4959 = vpop.xlane.xlu0 %4958
        %4960 = vadd.xlane.f32.xlu0 %v4929
        %v4961 = vpop.xlane.xlu0 %4960
        %4962 = vadd.xlane.f32.xlu0 %v4931
        %v4963 = vpop.xlane.xlu0 %4962
        %4964 = vadd.xlane.f32.xlu0 %v4933
        %v4965 = vpop.xlane.xlu0 %4964
        %4966 = vadd.xlane.f32.xlu0 %v4935
        %v4967 = vpop.xlane.xlu0 %4966
        %4968 = vadd.xlane.f32.xlu0 %v4937
        %v4969 = vpop.xlane.xlu0 %4968
        %4970 = vadd.xlane.f32.xlu0 %v4939
        %v4971 = vpop.xlane.xlu0 %4970
        %4972 = vadd.xlane.f32.xlu0 %v4941
        %v4973 = vpop.xlane.xlu0 %4972
        %4974 = vadd.xlane.f32.xlu0 %v4943
        %v4975 = vpop.xlane.xlu0 %4974
        %4976 = vadd.xlane.f32.xlu0 %v4945
        %v4977 = vpop.xlane.xlu0 %4976
        %4978 = vadd.xlane.f32.xlu0 %v4947
        %v4979 = vpop.xlane.xlu0 %4978
        %v4980 = vlog2.pop %v4949
        %v4981 = vmul.f32 %v4980, 0.6931472
        %v4982 = vlog2.pop %v4951
        %v4983 = vmul.f32 %v4982, 0.6931472
        %v4984 = vlog2.pop %v4953
        %v4985 = vmul.f32 %v4984, 0.6931472
        %v4986 = vlog2.pop %v4955
        %v4987 = vmul.f32 %v4986, 0.6931472
        %v4988 = vlog2.pop %v4957
        %v4989 = vmul.f32 %v4988, 0.6931472
        %v4990 = vlog2.pop %v4959
        %v4991 = vmul.f32 %v4990, 0.6931472
        %v4992 = vlog2.pop %v4961
        %v4993 = vmul.f32 %v4992, 0.6931472
        %v4994 = vlog2.pop %v4963
        %v4995 = vmul.f32 %v4994, 0.6931472
        %v4996 = vlog2.pop %v4965
        %v4997 = vmul.f32 %v4996, 0.6931472
        %v4998 = vlog2.pop %v4967
        %v4999 = vmul.f32 %v4998, 0.6931472
        %v5000 = vlog2.pop %v4969
        %v5001 = vmul.f32 %v5000, 0.6931472
        %v5002 = vlog2.pop %v4971
        %v5003 = vmul.f32 %v5002, 0.6931472
        %v5004 = vlog2.pop %v4973
        %v5005 = vmul.f32 %v5004, 0.6931472
        %v5006 = vlog2.pop %v4975
        %v5007 = vmul.f32 %v5006, 0.6931472
        %v5008 = vlog2.pop %v4977
        %v5009 = vmul.f32 %v5008, 0.6931472
        %v5010 = vlog2.pop %v4979
        %v5011 = vmul.f32 %v5010, 0.6931472
        %v5012 = vadd.f32 %v4869, %v4981
        %v5013 = vadd.f32 %v4871, %v4983
        %v5014 = vadd.f32 %v4873, %v4985
        %v5015 = vadd.f32 %v4875, %v4987
        %v5016 = vadd.f32 %v4877, %v4989
        %v5017 = vadd.f32 %v4879, %v4991
        %v5018 = vadd.f32 %v4881, %v4993
        %v5019 = vadd.f32 %v4883, %v4995
        %v5020 = vadd.f32 %v4885, %v4997
        %v5021 = vadd.f32 %v4887, %v4999
        %v5022 = vadd.f32 %v4889, %v5001
        %v5023 = vadd.f32 %v4891, %v5003
        %v5024 = vadd.f32 %v4893, %v5005
        %v5025 = vadd.f32 %v4895, %v5007
        %v5026 = vadd.f32 %v4897, %v5009
        %v5027 = vadd.f32 %v4899, %v5011
        %v5028 = vsub.f32 0.0, %v5012
        %v5029 = vsub.f32 0.0, %v5013
        %v5030 = vsub.f32 0.0, %v5014
        %v5031 = vsub.f32 0.0, %v5015
        %v5032 = vsub.f32 0.0, %v5016
        %v5033 = vsub.f32 0.0, %v5017
        %v5034 = vsub.f32 0.0, %v5018
        %v5035 = vsub.f32 0.0, %v5019
        %v5036 = vsub.f32 0.0, %v5020
        %v5037 = vsub.f32 0.0, %v5021
        %v5038 = vsub.f32 0.0, %v5022
        %v5039 = vsub.f32 0.0, %v5023
        %v5040 = vsub.f32 0.0, %v5024
        %v5041 = vsub.f32 0.0, %v5025
        %v5042 = vsub.f32 0.0, %v5026
        %v5043 = vsub.f32 0.0, %v5027
        %5044 = vxpose.xlu0.b32.start [1/16] %v5028, 128
        %5045 = vxpose.xlu0.b32.cont [2/16] %v5029, 128
        %5046 = vxpose.xlu0.b32.cont [3/16] %v5030, 128
        %5047 = vxpose.xlu0.b32.cont [4/16] %v5031, 128
        %5048 = vxpose.xlu0.b32.cont [5/16] %v5032, 128
        %5049 = vxpose.xlu0.b32.cont [6/16] %v5033, 128
        %5050 = vxpose.xlu0.b32.cont [7/16] %v5034, 128
        %5051 = vxpose.xlu0.b32.cont [8/16] %v5035, 128
        %5052 = vxpose.xlu0.b32.cont [9/16] %v5036, 128
        %5053 = vxpose.xlu0.b32.cont [10/16] %v5037, 128
        %5054 = vxpose.xlu0.b32.cont [11/16] %v5038, 128
        %5055 = vxpose.xlu0.b32.cont [12/16] %v5039, 128
        %5056 = vxpose.xlu0.b32.cont [13/16] %v5040, 128
        %5057 = vxpose.xlu0.b32.cont [14/16] %v5041, 128
        %5058 = vxpose.xlu0.b32.cont [15/16] %v5042, 128
        %5059 = vxpose.xlu0.b32.end [16/16] %v5043, 128
        %v5060 = vpop.trf.xlu0
        %v5061 = vpop.trf.xlu0
        %v5062 = vpop.trf.xlu0
        %v5063 = vpop.trf.xlu0
        %v5064 = vpop.trf.xlu0
        %v5065 = vpop.trf.xlu0
        %v5066 = vpop.trf.xlu0
        %v5067 = vpop.trf.xlu0
        %v5068 = vpop.trf.xlu0
        %v5069 = vpop.trf.xlu0
        %v5070 = vpop.trf.xlu0
        %v5071 = vpop.trf.xlu0
        %v5072 = vpop.trf.xlu0
        %v5073 = vpop.trf.xlu0
        %v5074 = vpop.trf.xlu0
        %v5075 = vpop.trf.xlu0
        %v5076 = vadd.f32 %v4800, %v504
        %v5077 = vadd.f32 %v4801, %v505
        %v5078 = vadd.f32 %v4802, %v506
        %v5079 = vadd.f32 %v4803, %v507
        %v5080 = vadd.f32 %v4804, %v508
        %v5081 = vadd.f32 %v4805, %v509
        %v5082 = vadd.f32 %v4806, %v510
        %v5083 = vadd.f32 %v4807, %v511
        %v5084 = vadd.f32 %v4808, %v512
        %v5085 = vadd.f32 %v4809, %v513
        %v5086 = vadd.f32 %v4810, %v514
        %v5087 = vadd.f32 %v4811, %v515
        %v5088 = vadd.f32 %v4812, %v516
        %v5089 = vadd.f32 %v4813, %v517
        %v5090 = vadd.f32 %v4814, %v518
        %v5091 = vadd.f32 %v4815, %v519
        %v5092 = vlaneseq
        %v5093 = vshrl.u32 %v5092, 7
        %v5094 = vsub.s32 0, %v5093
        %v5095 = vrot.slane %v5060, %v5094
        %v5096 = vadd.f32 %v5076, %v5095
        %v5097 = vadd.f32 %v5077, %v5095
        %v5098 = vadd.f32 %v5078, %v5095
        %v5099 = vadd.f32 %v5079, %v5095
        %v5100 = vadd.f32 %v5080, %v5095
        %v5101 = vadd.f32 %v5081, %v5095
        %v5102 = vadd.f32 %v5082, %v5095
        %v5103 = vadd.f32 %v5083, %v5095
        %v5104 = vadd.f32 %v5084, %v5095
        %v5105 = vadd.f32 %v5085, %v5095
        %v5106 = vadd.f32 %v5086, %v5095
        %v5107 = vadd.f32 %v5087, %v5095
        %v5108 = vadd.f32 %v5088, %v5095
        %v5109 = vadd.f32 %v5089, %v5095
        %v5110 = vadd.f32 %v5090, %v5095
        %v5111 = vadd.f32 %v5091, %v5095
        %v5112 = vmul.f32 %v5096, 1.442695
        %v5113 = vpow.pop %v5112
        %v5114 = vmul.f32 %v5097, 1.442695
        %v5115 = vpow.pop %v5114
        %v5116 = vmul.f32 %v5098, 1.442695
        %v5117 = vpow.pop %v5116
        %v5118 = vmul.f32 %v5099, 1.442695
        %v5119 = vpow.pop %v5118
        %v5120 = vmul.f32 %v5100, 1.442695
        %v5121 = vpow.pop %v5120
        %v5122 = vmul.f32 %v5101, 1.442695
        %v5123 = vpow.pop %v5122
        %v5124 = vmul.f32 %v5102, 1.442695
        %v5125 = vpow.pop %v5124
        %v5126 = vmul.f32 %v5103, 1.442695
        %v5127 = vpow.pop %v5126
        %v5128 = vmul.f32 %v5104, 1.442695
        %v5129 = vpow.pop %v5128
        %v5130 = vmul.f32 %v5105, 1.442695
        %v5131 = vpow.pop %v5130
        %v5132 = vmul.f32 %v5106, 1.442695
        %v5133 = vpow.pop %v5132
        %v5134 = vmul.f32 %v5107, 1.442695
        %v5135 = vpow.pop %v5134
        %v5136 = vmul.f32 %v5108, 1.442695
        %v5137 = vpow.pop %v5136
        %v5138 = vmul.f32 %v5109, 1.442695
        %v5139 = vpow.pop %v5138
        %v5140 = vmul.f32 %v5110, 1.442695
        %v5141 = vpow.pop %v5140
        %v5142 = vmul.f32 %v5111, 1.442695
        %v5143 = vpow.pop %v5142
        %v5144 = vmax.f32 %v5113, %v5121
        %v5145 = vmax.f32 %v5115, %v5123
        %v5146 = vmax.f32 %v5117, %v5125
        %v5147 = vmax.f32 %v5119, %v5127
        %v5148 = vmax.f32 %v5144, %v5129
        %v5149 = vmax.f32 %v5145, %v5131
        %v5150 = vmax.f32 %v5146, %v5133
        %v5151 = vmax.f32 %v5147, %v5135
        %v5152 = vmax.f32 %v5148, %v5137
        %v5153 = vmax.f32 %v5149, %v5139
        %v5154 = vmax.f32 %v5150, %v5141
        %v5155 = vmax.f32 %v5151, %v5143
        %v5156 = vmax.f32 %v5152, %v5153
        %v5157 = vmax.f32 %v5154, %v5155
        %v5158 = vmax.f32 %v5156, %v5157
        %5159 = vmax.xlane.f32.xlu0 %v5158
        %v5160 = vpop.xlane.xlu0 %5159
        %v5161 = vrot.slane %v5160, 4
        %v5162 = vmax.f32 %v5160, %v5161
        %v5163 = vrot.slane %v5162, 2
        %v5164 = vmax.f32 %v5162, %v5163
        %v5165 = vrot.slane %v5164, 1
        %v5166 = vmax.f32 %v5164, %v5165
        %s5167 = vtos %v5166
        %v5168 = vstv %s5167
        %v5169 = vrcp.pop %v5168
        %s5170 = vtos %v5169
        %v5171 = vstv %s5170
        %v5172 = vmul.f32 %v5113, %v5171
        %v5173 = vmul.f32 %v5115, %v5171
        %v5174 = vmul.f32 %v5117, %v5171
        %v5175 = vmul.f32 %v5119, %v5171
        %v5176 = vmul.f32 %v5121, %v5171
        %v5177 = vmul.f32 %v5123, %v5171
        %v5178 = vmul.f32 %v5125, %v5171
        %v5179 = vmul.f32 %v5127, %v5171
        %v5180 = vmul.f32 %v5129, %v5171
        %v5181 = vmul.f32 %v5131, %v5171
        %v5182 = vmul.f32 %v5133, %v5171
        %v5183 = vmul.f32 %v5135, %v5171
        %v5184 = vmul.f32 %v5137, %v5171
        %v5185 = vmul.f32 %v5139, %v5171
        %v5186 = vmul.f32 %v5141, %v5171
        %v5187 = vmul.f32 %v5143, %v5171
        %v5188 = vsel %vm456, 1.0, %v5172
        %v5189 = vsel %vm457, 1.0, %v5173
        %v5190 = vsel %vm458, 1.0, %v5174
        %v5191 = vsel %vm459, 1.0, %v5175
        %v5192 = vsel %vm460, 1.0, %v5176
        %v5193 = vsel %vm461, 1.0, %v5177
        %v5194 = vsel %vm462, 1.0, %v5178
        %v5195 = vsel %vm463, 1.0, %v5179
        %v5196 = vsel %vm464, 1.0, %v5180
        %v5197 = vsel %vm465, 1.0, %v5181
        %v5198 = vsel %vm466, 1.0, %v5182
        %v5199 = vsel %vm467, 1.0, %v5183
        %v5200 = vsel %vm468, 1.0, %v5184
        %v5201 = vsel %vm469, 1.0, %v5185
        %v5202 = vsel %vm470, 1.0, %v5186
        %v5203 = vsel %vm471, 1.0, %v5187
        %5204 = vst [vmem:[%s109] sm:$0xff] %v5188
        %5205 = vst [vmem:[%s109 + $0x8] sm:$0xff] %v5189
        %5206 = vst [vmem:[%s109 + $0x10] sm:$0xff] %v5190
        %5207 = vst [vmem:[%s109 + $0x18] sm:$0xff] %v5191
        %5208 = vst [vmem:[%s109 + $0x20] sm:$0xff] %v5192
        %5209 = vst [vmem:[%s109 + $0x28] sm:$0xff] %v5193
        %5210 = vst [vmem:[%s109 + $0x30] sm:$0xff] %v5194
        %5211 = vst [vmem:[%s109 + $0x38] sm:$0xff] %v5195
        %5212 = vst [vmem:[%s109 + $0x40] sm:$0xff] %v5196
        %5213 = vst [vmem:[%s109 + $0x48] sm:$0xff] %v5197
        %5214 = vst [vmem:[%s109 + $0x50] sm:$0xff] %v5198
        %5215 = vst [vmem:[%s109 + $0x58] sm:$0xff] %v5199
        %5216 = vst [vmem:[%s109 + $0x60] sm:$0xff] %v5200
        %5217 = vst [vmem:[%s109 + $0x68] sm:$0xff] %v5201
        %5218 = vst [vmem:[%s109 + $0x70] sm:$0xff] %v5202
        %5219 = vst [vmem:[%s109 + $0x78] sm:$0xff] %v5203
        %s5220 = sand.u32 %s49, 1
        %s5221 = scalar_lea.sflag [#allocation3], %s5220
        %s5222 = sand.u32 %s49, 1
        %s5223 = smul.addr %s5222, 128
        %s5224 = scalar_lea.vmem [#allocation2], %s5223
        // Predicated region
        $region25: #{tpu_custom_call.1} parent=23 // pred_check
          %p5225 = pneg %p59
        $region26: #{tpu_custom_call.1} parent=23 // pred_check_branch
          %5227 = sbr.rel (%p5225) target = $region28
        $region27: #{tpu_custom_call.1} parent=23 // pred_region
          %s5229 = ssub.s32 2048, 2048
          %5230 = vsyncadd %s5221, %s5229
          %s5231 = smul.addr %s15, 16
          %s5232 = smul.addr %s5231, 128
          %s5233 = scalar_lea.hbm %s1, %s5232
          %s5234 = sshll.u32 %s5224, 4
          %s5235 = int_to_ptr.vmem [resolvable:$true] %s5234
          %5240 = dma.vmem_to_hbm [thread:$0]  %s5235, 2048, %s5233, %s5221, 128, 128, 8
        $region28: #{tpu_custom_call.1} parent=23 // pred_fallthru
          _
      $region24: #{tpu_custom_call.1} parent=5 // pred_fallthru
        _
      %p5241 = scmp.le.s32.totalorder 2, %s10
      // Predicated region
      $region29: #{tpu_custom_call.1} parent=5 // pred_check
        %p5242 = pneg %p5241
      $region30: #{tpu_custom_call.1} parent=5 // pred_check_branch
        %5244 = sbr.rel (%p5242) target = $region32
      $region31: #{tpu_custom_call.1} parent=5 // pred_region
        %s5245 = ssub.s32 %s10, 2
        // Predicated region
        $region33: #{tpu_custom_call.1} parent=31 // pred_check
          %p5246 = pneg %p65
        $region34: #{tpu_custom_call.1} parent=31 // pred_check_branch
          %5248 = sbr.rel (%p5246) target = $region36
        $region35: #{tpu_custom_call.1} parent=31 // pred_region
          %s5249 = sand.u32 %s50, 1
          %s5250 = scalar_lea.sflag [#allocation3], %s5249
          %s5251 = sand.u32 %s50, 1
          %s5252 = smul.addr %s5251, 128
          %s5253 = scalar_lea.vmem [#allocation2], %s5252
          %5254 = dma.done %s5250, 2048
        $region36: #{tpu_custom_call.1} parent=31 // pred_fallthru
          _
      $region32: #{tpu_custom_call.1} parent=5 // pred_fallthru
        _
    $region6: #{tpu_custom_call.1} parent=1 // loop_footer
      %s14 = sadd.s32 1, %s10
    $region7: #{tpu_custom_call.1} parent=1 // loop_footer_branch
      %9 = sbr.rel target = $region3
    $region8: #{tpu_custom_call.1} parent=1 // loop_exit
      _
    %5255 = vsyncpa [#allocation3], 1
    %s5256 = scalar_lea.sflag [#allocation3], 1
    %5257 = vsyncpa %s5256, 1

</llo_original>
